<compile_context>
chip_gen: v5e
topology: v5e:2x2
jax: 0.10.0
libtpu: 0.0.40
codegen_flags: <defaults>
</compile_context>

<pallas_src>
import functools

import jax
import jax.numpy as jnp
from jax import lax
from jax.experimental import pallas as pl
from jax.experimental.pallas import tpu as pltpu


# ----------------------------------------------------------------------------
# Fused kernel: `block_b` batch elements per grid step.
#   q_ref  : (Bb, Nq, D) learnable queries (f32)
#   sf_ref : (Bb, S,  D) support features (bf16)
#   weights: grid-invariant, pre-transposed (y = x @ W_t + b), bf16 / f32 biases
#   o_ref  : (Bb, Nq, D) f32
#   ctx_ref: (Bb*Nq, D) bf16 VMEM scratch for per-head context assembly
# ----------------------------------------------------------------------------
def _qr_fused_kernel(q_ref, sf_ref,
                     sa_wqkv_ref, sa_bqkv_ref, sa_wo_ref, sa_bo_ref,
                     ln_g_ref, ln_b_ref,
                     ca_wq_ref, ca_bq_ref, ca_wkv_ref, ca_bkv_ref,
                     ca_wo_ref, ca_bo_ref,
                     o_ref,
                     ctx_ref, *, num_heads):
    f32 = jnp.float32
    bf16 = jnp.bfloat16

    Bb, Nq, D = q_ref.shape
    S = sf_ref.shape[1]
    hd = D // num_heads
    M = Bb * Nq

    q_in = q_ref[...].reshape(M, D)            # (M, D) f32
    sf_in = sf_ref[...].reshape(Bb * S, D)     # (Bb*S, D) bf16

    def attend(qp, kp, vp, kv_len, wo_t_ref, bo_ref_):
        """qp: (M, D) f32 with 1/sqrt(hd) folded in; kp/vp: (Bb*kv_len, D) f32.
        Per head: batched-over-Bb score/softmax/PV einsums; per-head contexts
        written into the (M, D) bf16 scratch, then ONE full-K output matmul."""
        qb = qp.astype(bf16).reshape(Bb, Nq, D)
        kb = kp.astype(bf16).reshape(Bb, kv_len, D)
        vb = vp.astype(bf16).reshape(Bb, kv_len, D)
        for h in range(num_heads):             # static unroll; heads are few
            lo = h * hd
            qh = qb[:, :, lo:lo + hd]          # (Bb, Nq, hd)
            kh = kb[:, :, lo:lo + hd]          # (Bb, kv, hd)
            vh = vb[:, :, lo:lo + hd]          # (Bb, kv, hd)
            s = jnp.einsum('bqd,bkd->bqk', qh, kh,
                           preferred_element_type=f32)        # (Bb, Nq, kv)
            m = jnp.max(s, axis=-1, keepdims=True)
            p = jnp.exp(s - m)
            p = p * pl.reciprocal(jnp.sum(p, axis=-1, keepdims=True), approx=True)
            oh = jnp.einsum('bqk,bkd->bqd', p.astype(bf16), vh,
                            preferred_element_type=f32)       # (Bb, Nq, hd)
            ctx_ref[:, lo:lo + hd] = oh.reshape(M, hd).astype(bf16)
        # single output projection, K = D (full MXU contraction depth)
        return jnp.dot(ctx_ref[...], wo_t_ref[...],
                       preferred_element_type=f32) + bo_ref_[...]

    # ---- self-attention over the learnable queries (q == k == v) ----
    sa_proj = jnp.dot(q_in.astype(bf16), sa_wqkv_ref[...],
                      preferred_element_type=f32) + sa_bqkv_ref[...]      # (M, 3D)
    sa_out = attend(sa_proj[:, :D], sa_proj[:, D:2 * D], sa_proj[:, 2 * D:],
                    Nq, sa_wo_ref, sa_bo_ref)                             # (M, D)

    # ---- residual + LayerNorm (f32, biased variance, eps=1e-5) ----
    z = q_in + sa_out
    mu = jnp.mean(z, axis=-1, keepdims=True)
    var = jnp.mean((z - mu) * (z - mu), axis=-1, keepdims=True)
    x = (z - mu) * lax.rsqrt(var + 1e-5) * ln_g_ref[...] + ln_b_ref[...]  # (M, D)

    # ---- cross-attention against the support features ----
    ca_q = jnp.dot(x.astype(bf16), ca_wq_ref[...],
                   preferred_element_type=f32) + ca_bq_ref[...]           # (M, D)
    ca_kv = jnp.dot(sf_in, ca_wkv_ref[...],
                    preferred_element_type=f32) + ca_bkv_ref[...]         # (Bb*S, 2D)
    out = attend(ca_q, ca_kv[:, :D], ca_kv[:, D:], S, ca_wo_ref, ca_bo_ref)

    o_ref[...] = out.reshape(Bb, Nq, D).astype(o_ref.dtype)


# ----------------------------------------------------------------------------
# Host-side weight fusion (call ONCE per parameter set and cache the result).
# ----------------------------------------------------------------------------
def fuse_query_refiner_params(params, *, num_heads=8):
    D = params["queries"].shape[-1]
    hd = D // num_heads
    scale = 1.0 / float(hd) ** 0.5
    wdt = jnp.bfloat16   # MXU operand dtype (f32 accumulation in-kernel)

    # PyTorch Linear is y = x @ W.T + b : pre-transpose once, fuse Q/K/V
    # projections, fold the 1/sqrt(head_dim) scale into Q.
    sa_wqkv = jnp.concatenate(
        [params["sa_wq"].T * scale, params["sa_wk"].T, params["sa_wv"].T],
        axis=1).astype(wdt)                                                # (D, 3D)
    sa_bqkv = jnp.concatenate(
        [params["sa_bq"] * scale, params["sa_bk"], params["sa_bv"]]
    ).reshape(1, 3 * D).astype(jnp.float32)
    sa_wo_t = params["sa_wo"].T.astype(wdt)                                # (D, D)
    sa_bo = params["sa_bo"].reshape(1, D).astype(jnp.float32)

    ca_wq_t = (params["ca_wq"].T * scale).astype(wdt)                      # (D, D)
    ca_bq = (params["ca_bq"] * scale).reshape(1, D).astype(jnp.float32)
    ca_wkv = jnp.concatenate([params["ca_wk"].T, params["ca_wv"].T],
                             axis=1).astype(wdt)                           # (D, 2D)
    ca_bkv = jnp.concatenate([params["ca_bk"], params["ca_bv"]]
                             ).reshape(1, 2 * D).astype(jnp.float32)
    ca_wo_t = params["ca_wo"].T.astype(wdt)                                # (D, D)
    ca_bo = params["ca_bo"].reshape(1, D).astype(jnp.float32)

    ln_g = params["ln_gamma"].reshape(1, D).astype(jnp.float32)
    ln_b = params["ln_beta"].reshape(1, D).astype(jnp.float32)

    return (params["queries"].astype(jnp.float32),
            sa_wqkv, sa_bqkv, sa_wo_t, sa_bo, ln_g, ln_b,
            ca_wq_t, ca_bq, ca_wkv, ca_bkv, ca_wo_t, ca_bo)


# ----------------------------------------------------------------------------
# Forward wrapper: batch blocking + pallas_call.
# ----------------------------------------------------------------------------
def query_refiner_forward(support_features, fused_params, *, num_heads=8,
                          block_b=None):
    """support_features: (B, S, D) -> refined queries (B, num_queries, D).

    Note: the PyTorch docstring claims (num_queries, batch, dim) output, but
    with batch_first=True the module actually returns (batch, num_queries, dim);
    we reproduce the actual semantics.
    """
    (q, sa_wqkv, sa_bqkv, sa_wo_t, sa_bo, ln_g, ln_b,
     ca_wq_t, ca_bq, ca_wkv, ca_bkv, ca_wo_t, ca_bo) = fused_params

    B, Nq, D = q.shape
    S = support_features.shape[1]
    sf = support_features.astype(jnp.bfloat16)   # bf16 MXU operand -> half the DMA

    # Aim for block_b*Nq >= ~256 rows to fill MXU M; cap at 8 and at B.
    if block_b is None:
        block_b = max(1, min(8, min(B, (256 + Nq - 1) // Nq)))

    # Pad batch to a multiple of block_b; keep grid even when >1 (v7x: 2 TCs).
    Bp = ((B + block_b - 1) // block_b) * block_b
    grid_len = Bp // block_b
    if grid_len > 1 and grid_len % 2 == 1:
        Bp += block_b
        grid_len += 1
    if Bp != B:
        pad = ((0, Bp - B), (0, 0), (0, 0))
        q = jnp.pad(q, pad)
        sf = jnp.pad(sf, pad)

    def invariant(a):  # full array, same block for every grid step
        return pl.BlockSpec(a.shape, lambda b: (0,) * a.ndim)

    out = pl.pallas_call(
        functools.partial(_qr_fused_kernel, num_heads=num_heads),
        out_shape=jax.ShapeDtypeStruct((Bp, Nq, D), jnp.float32),
        grid=(grid_len,),
        in_specs=[
            pl.BlockSpec((block_b, Nq, D), lambda b: (b, 0, 0)),   # queries
            pl.BlockSpec((block_b, S, D), lambda b: (b, 0, 0)),    # support feats
            invariant(sa_wqkv), invariant(sa_bqkv),
            invariant(sa_wo_t), invariant(sa_bo),
            invariant(ln_g), invariant(ln_b),
            invariant(ca_wq_t), invariant(ca_bq),
            invariant(ca_wkv), invariant(ca_bkv),
            invariant(ca_wo_t), invariant(ca_bo),
        ],
        out_specs=pl.BlockSpec((block_b, Nq, D), lambda b: (b, 0, 0)),
        scratch_shapes=[pltpu.VMEM((block_b * Nq, D), jnp.bfloat16)],
        compiler_params=pltpu.CompilerParams(
            dimension_semantics=("parallel",)),
    )(q, sf,
      sa_wqkv, sa_bqkv, sa_wo_t, sa_bo,
      ln_g, ln_b,
      ca_wq_t, ca_bq, ca_wkv, ca_bkv, ca_wo_t, ca_bo)

    return out[:B] if Bp != B else out


# ----------------------------------------------------------------------------
# Pure-JAX f32 reference (matches PyTorch MHA / LayerNorm semantics)
# ----------------------------------------------------------------------------
def _reference_forward(support_features, params, *, num_heads=8):
    def mha(qx, kvx, wq, wk, wv, wo, bq, bk, bv, bo):
        B, L, D = qx.shape
        hd = D // num_heads
        sc = 1.0 / float(hd) ** 0.5
        qp = qx @ wq.T + bq
        kp = kvx @ wk.T + bk
        vp = kvx @ wv.T + bv

        def split(t):
            return t.reshape(t.shape[0], t.shape[1], num_heads, hd).transpose(0, 2, 1, 3)

        qh, kh, vh = split(qp) * sc, split(kp), split(vp)
        s = jnp.einsum('bhqd,bhkd->bhqk', qh, kh)
        p = jax.nn.softmax(s, axis=-1)
        o = jnp.einsum('bhqk,bhkd->bhqd', p, vh)
        o = o.transpose(0, 2, 1, 3).reshape(B, L, D)
        return o @ wo.T + bo

    q = params["queries"]
    sa = mha(q, q, params["sa_wq"], params["sa_wk"], params["sa_wv"], params["sa_wo"],
             params["sa_bq"], params["sa_bk"], params["sa_bv"], params["sa_bo"])
    z = q + sa
    mu = z.mean(-1, keepdims=True)
    var = ((z - mu) ** 2).mean(-1, keepdims=True)
    x = (z - mu) / jnp.sqrt(var + 1e-5) * params["ln_gamma"] + params["ln_beta"]
    return mha(x, support_features,
               params["ca_wq"], params["ca_wk"], params["ca_wv"], params["ca_wo"],
               params["ca_bq"], params["ca_bk"], params["ca_bv"], params["ca_bo"])


def init_params(key, batch_size, num_queries, query_dim):
    ks = jax.random.split(key, 12)
    scale = 0.02

    def w(k):
        return jax.random.normal(k, (query_dim, query_dim), jnp.float32) * scale

    def b(k):
        return jax.random.normal(k, (query_dim,), jnp.float32) * scale

    return {
        "queries": jax.random.normal(ks[0], (batch_size, num_queries, query_dim),
                                     jnp.float32),
        # self-attention in/out projections
        "sa_wq": w(ks[1]), "sa_wk": w(ks[2]), "sa_wv": w(ks[3]), "sa_wo": w(ks[4]),
        "sa_bq": b(ks[5]), "sa_bk": b(ks[6]), "sa_bv": b(ks[7]),
        "sa_bo": jnp.zeros((query_dim,), jnp.float32),
        # cross-attention
        "ca_wq": w(ks[8]), "ca_wk": w(ks[9]), "ca_wv": w(ks[10]), "ca_wo": w(ks[11]),
        "ca_bq": jnp.zeros((query_dim,), jnp.float32),
        "ca_bk": jnp.zeros((query_dim,), jnp.float32),
        "ca_bv": jnp.zeros((query_dim,), jnp.float32),
        "ca_bo": jnp.zeros((query_dim,), jnp.float32),
        # LayerNorm (PyTorch default init)
        "ln_gamma": jnp.ones((query_dim,), jnp.float32),
        "ln_beta": jnp.zeros((query_dim,), jnp.float32),
    }


if __name__ == "__main__":
    # Small shapes consistent with the module (scaled down from 256/49).
    B, NQ, D, S, HEADS = 2, 8, 128, 16, 8

    key = jax.random.PRNGKey(0)
    pkey, xkey = jax.random.split(key)
    params = init_params(pkey, B, NQ, D)
    support_features = jax.random.normal(xkey, (B, S, D), jnp.float32)

    # Weight fusion is hoisted out of the forward call (do once, cache).
    fused = fuse_query_refiner_params(params, num_heads=HEADS)

    out = query_refiner_forward(support_features, fused, num_heads=HEADS)
    out = jax.block_until_ready(out)
    assert out.shape == (B, NQ, D)
    assert jnp.isfinite(out).all()

    # Loose tolerance: kernel uses bf16 MXU operands with f32 accumulation and
    # an approx-reciprocal softmax normalization.
    ref = _reference_forward(support_features, params, num_heads=HEADS)
    assert jnp.allclose(out, ref, atol=0.1, rtol=0.1)

    print("KERNEL_OK")
</pallas_src>

<mosaic_0001>
module attributes {stable_mosaic.version = 11 : i64} {
  func.func @_qr_fused_kernel(%arg0: i32, %arg1: memref<2x8x128xf32, #tpu.memory_space<vmem>>, %arg2: memref<2x16x128xbf16, #tpu.memory_space<vmem>>, %arg3: memref<128x384xbf16, #tpu.memory_space<vmem>>, %arg4: memref<1x384xf32, #tpu.memory_space<vmem>>, %arg5: memref<128x128xbf16, #tpu.memory_space<vmem>>, %arg6: memref<1x128xf32, #tpu.memory_space<vmem>>, %arg7: memref<1x128xf32, #tpu.memory_space<vmem>>, %arg8: memref<1x128xf32, #tpu.memory_space<vmem>>, %arg9: memref<128x128xbf16, #tpu.memory_space<vmem>>, %arg10: memref<1x128xf32, #tpu.memory_space<vmem>>, %arg11: memref<128x256xbf16, #tpu.memory_space<vmem>>, %arg12: memref<1x256xf32, #tpu.memory_space<vmem>>, %arg13: memref<128x128xbf16, #tpu.memory_space<vmem>>, %arg14: memref<1x128xf32, #tpu.memory_space<vmem>>, %arg15: memref<2x8x128xf32, #tpu.memory_space<vmem>>, %arg16: memref<16x128xbf16, #tpu.memory_space<vmem>>) attributes {dimension_semantics = [#tpu.dimension_semantics<parallel>], iteration_bounds = array<i64: 1>, scalar_prefetch = 0 : i64, scratch_operands = 1 : i64, tpu.core_type = #tpu.core_type<tc>, window_params = [{transform_indices = @transform_0, window_bounds = array<i64: 2, 8, 128>}, {transform_indices = @transform_1, window_bounds = array<i64: 2, 16, 128>}, {pipeline_mode = #tpu.pipeline_mode<synchronous>, transform_indices = @transform_2, window_bounds = array<i64: 128, 384>}, {pipeline_mode = #tpu.pipeline_mode<synchronous>, transform_indices = @transform_3, window_bounds = array<i64: 1, 384>}, {pipeline_mode = #tpu.pipeline_mode<synchronous>, transform_indices = @transform_4, window_bounds = array<i64: 128, 128>}, {pipeline_mode = #tpu.pipeline_mode<synchronous>, transform_indices = @transform_5, window_bounds = array<i64: 1, 128>}, {pipeline_mode = #tpu.pipeline_mode<synchronous>, transform_indices = @transform_6, window_bounds = array<i64: 1, 128>}, {pipeline_mode = #tpu.pipeline_mode<synchronous>, transform_indices = @transform_7, window_bounds = array<i64: 1, 128>}, {pipeline_mode = #tpu.pipeline_mode<synchronous>, transform_indices = @transform_8, window_bounds = array<i64: 128, 128>}, {pipeline_mode = #tpu.pipeline_mode<synchronous>, transform_indices = @transform_9, window_bounds = array<i64: 1, 128>}, {pipeline_mode = #tpu.pipeline_mode<synchronous>, transform_indices = @transform_10, window_bounds = array<i64: 128, 256>}, {pipeline_mode = #tpu.pipeline_mode<synchronous>, transform_indices = @transform_11, window_bounds = array<i64: 1, 256>}, {pipeline_mode = #tpu.pipeline_mode<synchronous>, transform_indices = @transform_12, window_bounds = array<i64: 128, 128>}, {pipeline_mode = #tpu.pipeline_mode<synchronous>, transform_indices = @transform_13, window_bounds = array<i64: 1, 128>}, {transform_indices = @transform_14, window_bounds = array<i64: 2, 8, 128>}]} {
    %c0 = arith.constant 0 : index
    %c0_0 = arith.constant 0 : index
    %c0_1 = arith.constant 0 : index
    %0 = vector.load %arg1[%c0, %c0_0, %c0_1] : memref<2x8x128xf32, #tpu.memory_space<vmem>>, vector<2x8x128xf32>
    %1 = vector.shape_cast %0 : vector<2x8x128xf32> to vector<16x128xf32>
    %c0_2 = arith.constant 0 : index
    %c0_3 = arith.constant 0 : index
    %c0_4 = arith.constant 0 : index
    %2 = vector.load %arg2[%c0_2, %c0_3, %c0_4] : memref<2x16x128xbf16, #tpu.memory_space<vmem>>, vector<2x16x128xbf16>
    %3 = vector.shape_cast %2 : vector<2x16x128xbf16> to vector<32x128xbf16>
    %4 = arith.truncf %1 : vector<16x128xf32> to vector<16x128xbf16>
    %c0_5 = arith.constant 0 : index
    %c0_6 = arith.constant 0 : index
    %5 = vector.load %arg3[%c0_5, %c0_6] : memref<128x384xbf16, #tpu.memory_space<vmem>>, vector<128x384xbf16>
    %cst = arith.constant dense<0.000000e+00> : vector<16x384xf32>
    %6 = tpu.matmul %4, %5, %cst {dimension_numbers = #tpu.dot_dimension_numbers<[1], [0], [0], [1], [0, 0, 1, 1], [], []>} : vector<16x128xbf16>, vector<128x384xbf16>, vector<16x384xf32> -> vector<16x384xf32>
    %c0_7 = arith.constant 0 : index
    %c0_8 = arith.constant 0 : index
    %7 = vector.load %arg4[%c0_7, %c0_8] : memref<1x384xf32, #tpu.memory_space<vmem>>, vector<1x384xf32>
    %8 = vector.broadcast %7 : vector<1x384xf32> to vector<16x384xf32>
    %9 = arith.addf %6, %8 : vector<16x384xf32>
    %10 = vector.extract_strided_slice %9 {offsets = [0, 0], sizes = [16, 128], strides = [1, 1]} : vector<16x384xf32> to vector<16x128xf32>
    %11 = vector.extract_strided_slice %9 {offsets = [0, 128], sizes = [16, 128], strides = [1, 1]} : vector<16x384xf32> to vector<16x128xf32>
    %12 = vector.extract_strided_slice %9 {offsets = [0, 256], sizes = [16, 128], strides = [1, 1]} : vector<16x384xf32> to vector<16x128xf32>
    %13 = arith.truncf %10 : vector<16x128xf32> to vector<16x128xbf16>
    %14 = vector.shape_cast %13 : vector<16x128xbf16> to vector<2x8x128xbf16>
    %15 = arith.truncf %11 : vector<16x128xf32> to vector<16x128xbf16>
    %16 = vector.shape_cast %15 : vector<16x128xbf16> to vector<2x8x128xbf16>
    %17 = arith.truncf %12 : vector<16x128xf32> to vector<16x128xbf16>
    %18 = vector.shape_cast %17 : vector<16x128xbf16> to vector<2x8x128xbf16>
    %19 = vector.extract_strided_slice %14 {offsets = [0, 0, 0], sizes = [2, 8, 16], strides = [1, 1, 1]} : vector<2x8x128xbf16> to vector<2x8x16xbf16>
    %20 = vector.extract_strided_slice %16 {offsets = [0, 0, 0], sizes = [2, 8, 16], strides = [1, 1, 1]} : vector<2x8x128xbf16> to vector<2x8x16xbf16>
    %21 = vector.extract_strided_slice %18 {offsets = [0, 0, 0], sizes = [2, 8, 16], strides = [1, 1, 1]} : vector<2x8x128xbf16> to vector<2x8x16xbf16>
    "tpu.trace_start"() <{level = 10 : i32, message = "bqd,bkd->bqk"}> : () -> ()
    %cst_9 = arith.constant dense<0.000000e+00> : vector<2x8x8xf32>
    %22 = tpu.matmul %19, %20, %cst_9 {dimension_numbers = #tpu.dot_dimension_numbers<[2], [2], [1], [1], [0, 0, 0, 1, 1, 1], [0], [0]>} : vector<2x8x16xbf16>, vector<2x8x16xbf16>, vector<2x8x8xf32> -> vector<2x8x8xf32>
    "tpu.trace_stop"() : () -> ()
    %cst_10 = arith.constant dense<0xFF800000> : vector<2x8xf32>
    %23 = vector.multi_reduction <maximumf>, %22, %cst_10 [2] : vector<2x8x8xf32> to vector<2x8xf32>
    %24 = vector.shape_cast %23 : vector<2x8xf32> to vector<2x8x1xf32>
    %25 = vector.broadcast %24 : vector<2x8x1xf32> to vector<2x8x8xf32>
    %26 = arith.subf %22, %25 : vector<2x8x8xf32>
    %27 = math.exp %26 : vector<2x8x8xf32>
    %cst_11 = arith.constant dense<0.000000e+00> : vector<2x8xf32>
    %28 = vector.multi_reduction <add>, %27, %cst_11 [2] : vector<2x8x8xf32> to vector<2x8xf32>
    %29 = vector.shape_cast %28 : vector<2x8xf32> to vector<2x8x1xf32>
    %30 = tpu.reciprocal %29 {approx = true} : vector<2x8x1xf32> -> vector<2x8x1xf32>
    %31 = vector.broadcast %30 : vector<2x8x1xf32> to vector<2x8x8xf32>
    %32 = arith.mulf %27, %31 : vector<2x8x8xf32>
    %33 = arith.truncf %32 : vector<2x8x8xf32> to vector<2x8x8xbf16>
    "tpu.trace_start"() <{level = 10 : i32, message = "bqk,bkd->bqd"}> : () -> ()
    %cst_12 = arith.constant dense<0.000000e+00> : vector<2x8x16xf32>
    %34 = tpu.matmul %33, %21, %cst_12 {dimension_numbers = #tpu.dot_dimension_numbers<[2], [1], [1], [2], [0, 0, 0, 1, 1, 2], [0], [0]>} : vector<2x8x8xbf16>, vector<2x8x16xbf16>, vector<2x8x16xf32> -> vector<2x8x16xf32>
    "tpu.trace_stop"() : () -> ()
    %35 = vector.shape_cast %34 : vector<2x8x16xf32> to vector<16x16xf32>
    %36 = arith.truncf %35 : vector<16x16xf32> to vector<16x16xbf16>
    %c0_13 = arith.constant 0 : index
    %c0_14 = arith.constant 0 : index
    %37 = vector.load %arg16[%c0_13, %c0_14] : memref<16x128xbf16, #tpu.memory_space<vmem>>, vector<16x16xbf16>
    tpu.vector_store %arg16[%c0_13, %c0_14], %36 {strides = array<i32>} : memref<16x128xbf16, #tpu.memory_space<vmem>>, vector<16x16xbf16>,
    %38 = vector.extract_strided_slice %14 {offsets = [0, 0, 16], sizes = [2, 8, 16], strides = [1, 1, 1]} : vector<2x8x128xbf16> to vector<2x8x16xbf16>
    %39 = vector.extract_strided_slice %16 {offsets = [0, 0, 16], sizes = [2, 8, 16], strides = [1, 1, 1]} : vector<2x8x128xbf16> to vector<2x8x16xbf16>
    %40 = vector.extract_strided_slice %18 {offsets = [0, 0, 16], sizes = [2, 8, 16], strides = [1, 1, 1]} : vector<2x8x128xbf16> to vector<2x8x16xbf16>
    "tpu.trace_start"() <{level = 10 : i32, message = "bqd,bkd->bqk"}> : () -> ()
    %cst_15 = arith.constant dense<0.000000e+00> : vector<2x8x8xf32>
    %41 = tpu.matmul %38, %39, %cst_15 {dimension_numbers = #tpu.dot_dimension_numbers<[2], [2], [1], [1], [0, 0, 0, 1, 1, 1], [0], [0]>} : vector<2x8x16xbf16>, vector<2x8x16xbf16>, vector<2x8x8xf32> -> vector<2x8x8xf32>
    "tpu.trace_stop"() : () -> ()
    %cst_16 = arith.constant dense<0xFF800000> : vector<2x8xf32>
    %42 = vector.multi_reduction <maximumf>, %41, %cst_16 [2] : vector<2x8x8xf32> to vector<2x8xf32>
    %43 = vector.shape_cast %42 : vector<2x8xf32> to vector<2x8x1xf32>
    %44 = vector.broadcast %43 : vector<2x8x1xf32> to vector<2x8x8xf32>
    %45 = arith.subf %41, %44 : vector<2x8x8xf32>
    %46 = math.exp %45 : vector<2x8x8xf32>
    %cst_17 = arith.constant dense<0.000000e+00> : vector<2x8xf32>
    %47 = vector.multi_reduction <add>, %46, %cst_17 [2] : vector<2x8x8xf32> to vector<2x8xf32>
    %48 = vector.shape_cast %47 : vector<2x8xf32> to vector<2x8x1xf32>
    %49 = tpu.reciprocal %48 {approx = true} : vector<2x8x1xf32> -> vector<2x8x1xf32>
    %50 = vector.broadcast %49 : vector<2x8x1xf32> to vector<2x8x8xf32>
    %51 = arith.mulf %46, %50 : vector<2x8x8xf32>
    %52 = arith.truncf %51 : vector<2x8x8xf32> to vector<2x8x8xbf16>
    "tpu.trace_start"() <{level = 10 : i32, message = "bqk,bkd->bqd"}> : () -> ()
    %cst_18 = arith.constant dense<0.000000e+00> : vector<2x8x16xf32>
    %53 = tpu.matmul %52, %40, %cst_18 {dimension_numbers = #tpu.dot_dimension_numbers<[2], [1], [1], [2], [0, 0, 0, 1, 1, 2], [0], [0]>} : vector<2x8x8xbf16>, vector<2x8x16xbf16>, vector<2x8x16xf32> -> vector<2x8x16xf32>
    "tpu.trace_stop"() : () -> ()
    %54 = vector.shape_cast %53 : vector<2x8x16xf32> to vector<16x16xf32>
    %55 = arith.truncf %54 : vector<16x16xf32> to vector<16x16xbf16>
    %c0_19 = arith.constant 0 : index
    %c16 = arith.constant 16 : index
    %56 = vector.load %arg16[%c0_19, %c16] : memref<16x128xbf16, #tpu.memory_space<vmem>>, vector<16x16xbf16>
    tpu.vector_store %arg16[%c0_19, %c16], %55 {strides = array<i32>} : memref<16x128xbf16, #tpu.memory_space<vmem>>, vector<16x16xbf16>,
    %57 = vector.extract_strided_slice %14 {offsets = [0, 0, 32], sizes = [2, 8, 16], strides = [1, 1, 1]} : vector<2x8x128xbf16> to vector<2x8x16xbf16>
    %58 = vector.extract_strided_slice %16 {offsets = [0, 0, 32], sizes = [2, 8, 16], strides = [1, 1, 1]} : vector<2x8x128xbf16> to vector<2x8x16xbf16>
    %59 = vector.extract_strided_slice %18 {offsets = [0, 0, 32], sizes = [2, 8, 16], strides = [1, 1, 1]} : vector<2x8x128xbf16> to vector<2x8x16xbf16>
    "tpu.trace_start"() <{level = 10 : i32, message = "bqd,bkd->bqk"}> : () -> ()
    %cst_20 = arith.constant dense<0.000000e+00> : vector<2x8x8xf32>
    %60 = tpu.matmul %57, %58, %cst_20 {dimension_numbers = #tpu.dot_dimension_numbers<[2], [2], [1], [1], [0, 0, 0, 1, 1, 1], [0], [0]>} : vector<2x8x16xbf16>, vector<2x8x16xbf16>, vector<2x8x8xf32> -> vector<2x8x8xf32>
    "tpu.trace_stop"() : () -> ()
    %cst_21 = arith.constant dense<0xFF800000> : vector<2x8xf32>
    %61 = vector.multi_reduction <maximumf>, %60, %cst_21 [2] : vector<2x8x8xf32> to vector<2x8xf32>
    %62 = vector.shape_cast %61 : vector<2x8xf32> to vector<2x8x1xf32>
    %63 = vector.broadcast %62 : vector<2x8x1xf32> to vector<2x8x8xf32>
    %64 = arith.subf %60, %63 : vector<2x8x8xf32>
    %65 = math.exp %64 : vector<2x8x8xf32>
    %cst_22 = arith.constant dense<0.000000e+00> : vector<2x8xf32>
    %66 = vector.multi_reduction <add>, %65, %cst_22 [2] : vector<2x8x8xf32> to vector<2x8xf32>
    %67 = vector.shape_cast %66 : vector<2x8xf32> to vector<2x8x1xf32>
    %68 = tpu.reciprocal %67 {approx = true} : vector<2x8x1xf32> -> vector<2x8x1xf32>
    %69 = vector.broadcast %68 : vector<2x8x1xf32> to vector<2x8x8xf32>
    %70 = arith.mulf %65, %69 : vector<2x8x8xf32>
    %71 = arith.truncf %70 : vector<2x8x8xf32> to vector<2x8x8xbf16>
    "tpu.trace_start"() <{level = 10 : i32, message = "bqk,bkd->bqd"}> : () -> ()
    %cst_23 = arith.constant dense<0.000000e+00> : vector<2x8x16xf32>
    %72 = tpu.matmul %71, %59, %cst_23 {dimension_numbers = #tpu.dot_dimension_numbers<[2], [1], [1], [2], [0, 0, 0, 1, 1, 2], [0], [0]>} : vector<2x8x8xbf16>, vector<2x8x16xbf16>, vector<2x8x16xf32> -> vector<2x8x16xf32>
    "tpu.trace_stop"() : () -> ()
    %73 = vector.shape_cast %72 : vector<2x8x16xf32> to vector<16x16xf32>
    %74 = arith.truncf %73 : vector<16x16xf32> to vector<16x16xbf16>
    %c0_24 = arith.constant 0 : index
    %c32 = arith.constant 32 : index
    %75 = vector.load %arg16[%c0_24, %c32] : memref<16x128xbf16, #tpu.memory_space<vmem>>, vector<16x16xbf16>
    tpu.vector_store %arg16[%c0_24, %c32], %74 {strides = array<i32>} : memref<16x128xbf16, #tpu.memory_space<vmem>>, vector<16x16xbf16>,
    %76 = vector.extract_strided_slice %14 {offsets = [0, 0, 48], sizes = [2, 8, 16], strides = [1, 1, 1]} : vector<2x8x128xbf16> to vector<2x8x16xbf16>
    %77 = vector.extract_strided_slice %16 {offsets = [0, 0, 48], sizes = [2, 8, 16], strides = [1, 1, 1]} : vector<2x8x128xbf16> to vector<2x8x16xbf16>
    %78 = vector.extract_strided_slice %18 {offsets = [0, 0, 48], sizes = [2, 8, 16], strides = [1, 1, 1]} : vector<2x8x128xbf16> to vector<2x8x16xbf16>
    "tpu.trace_start"() <{level = 10 : i32, message = "bqd,bkd->bqk"}> : () -> ()
    %cst_25 = arith.constant dense<0.000000e+00> : vector<2x8x8xf32>
    %79 = tpu.matmul %76, %77, %cst_25 {dimension_numbers = #tpu.dot_dimension_numbers<[2], [2], [1], [1], [0, 0, 0, 1, 1, 1], [0], [0]>} : vector<2x8x16xbf16>, vector<2x8x16xbf16>, vector<2x8x8xf32> -> vector<2x8x8xf32>
    "tpu.trace_stop"() : () -> ()
    %cst_26 = arith.constant dense<0xFF800000> : vector<2x8xf32>
    %80 = vector.multi_reduction <maximumf>, %79, %cst_26 [2] : vector<2x8x8xf32> to vector<2x8xf32>
    %81 = vector.shape_cast %80 : vector<2x8xf32> to vector<2x8x1xf32>
    %82 = vector.broadcast %81 : vector<2x8x1xf32> to vector<2x8x8xf32>
    %83 = arith.subf %79, %82 : vector<2x8x8xf32>
    %84 = math.exp %83 : vector<2x8x8xf32>
    %cst_27 = arith.constant dense<0.000000e+00> : vector<2x8xf32>
    %85 = vector.multi_reduction <add>, %84, %cst_27 [2] : vector<2x8x8xf32> to vector<2x8xf32>
    %86 = vector.shape_cast %85 : vector<2x8xf32> to vector<2x8x1xf32>
    %87 = tpu.reciprocal %86 {approx = true} : vector<2x8x1xf32> -> vector<2x8x1xf32>
    %88 = vector.broadcast %87 : vector<2x8x1xf32> to vector<2x8x8xf32>
    %89 = arith.mulf %84, %88 : vector<2x8x8xf32>
    %90 = arith.truncf %89 : vector<2x8x8xf32> to vector<2x8x8xbf16>
    "tpu.trace_start"() <{level = 10 : i32, message = "bqk,bkd->bqd"}> : () -> ()
    %cst_28 = arith.constant dense<0.000000e+00> : vector<2x8x16xf32>
    %91 = tpu.matmul %90, %78, %cst_28 {dimension_numbers = #tpu.dot_dimension_numbers<[2], [1], [1], [2], [0, 0, 0, 1, 1, 2], [0], [0]>} : vector<2x8x8xbf16>, vector<2x8x16xbf16>, vector<2x8x16xf32> -> vector<2x8x16xf32>
    "tpu.trace_stop"() : () -> ()
    %92 = vector.shape_cast %91 : vector<2x8x16xf32> to vector<16x16xf32>
    %93 = arith.truncf %92 : vector<16x16xf32> to vector<16x16xbf16>
    %c0_29 = arith.constant 0 : index
    %c48 = arith.constant 48 : index
    %94 = vector.load %arg16[%c0_29, %c48] : memref<16x128xbf16, #tpu.memory_space<vmem>>, vector<16x16xbf16>
    tpu.vector_store %arg16[%c0_29, %c48], %93 {strides = array<i32>} : memref<16x128xbf16, #tpu.memory_space<vmem>>, vector<16x16xbf16>,
    %95 = vector.extract_strided_slice %14 {offsets = [0, 0, 64], sizes = [2, 8, 16], strides = [1, 1, 1]} : vector<2x8x128xbf16> to vector<2x8x16xbf16>
    %96 = vector.extract_strided_slice %16 {offsets = [0, 0, 64], sizes = [2, 8, 16], strides = [1, 1, 1]} : vector<2x8x128xbf16> to vector<2x8x16xbf16>
    %97 = vector.extract_strided_slice %18 {offsets = [0, 0, 64], sizes = [2, 8, 16], strides = [1, 1, 1]} : vector<2x8x128xbf16> to vector<2x8x16xbf16>
    "tpu.trace_start"() <{level = 10 : i32, message = "bqd,bkd->bqk"}> : () -> ()
    %cst_30 = arith.constant dense<0.000000e+00> : vector<2x8x8xf32>
    %98 = tpu.matmul %95, %96, %cst_30 {dimension_numbers = #tpu.dot_dimension_numbers<[2], [2], [1], [1], [0, 0, 0, 1, 1, 1], [0], [0]>} : vector<2x8x16xbf16>, vector<2x8x16xbf16>, vector<2x8x8xf32> -> vector<2x8x8xf32>
    "tpu.trace_stop"() : () -> ()
    %cst_31 = arith.constant dense<0xFF800000> : vector<2x8xf32>
    %99 = vector.multi_reduction <maximumf>, %98, %cst_31 [2] : vector<2x8x8xf32> to vector<2x8xf32>
    %100 = vector.shape_cast %99 : vector<2x8xf32> to vector<2x8x1xf32>
    %101 = vector.broadcast %100 : vector<2x8x1xf32> to vector<2x8x8xf32>
    %102 = arith.subf %98, %101 : vector<2x8x8xf32>
    %103 = math.exp %102 : vector<2x8x8xf32>
    %cst_32 = arith.constant dense<0.000000e+00> : vector<2x8xf32>
    %104 = vector.multi_reduction <add>, %103, %cst_32 [2] : vector<2x8x8xf32> to vector<2x8xf32>
    %105 = vector.shape_cast %104 : vector<2x8xf32> to vector<2x8x1xf32>
    %106 = tpu.reciprocal %105 {approx = true} : vector<2x8x1xf32> -> vector<2x8x1xf32>
    %107 = vector.broadcast %106 : vector<2x8x1xf32> to vector<2x8x8xf32>
    %108 = arith.mulf %103, %107 : vector<2x8x8xf32>
    %109 = arith.truncf %108 : vector<2x8x8xf32> to vector<2x8x8xbf16>
    "tpu.trace_start"() <{level = 10 : i32, message = "bqk,bkd->bqd"}> : () -> ()
    %cst_33 = arith.constant dense<0.000000e+00> : vector<2x8x16xf32>
    %110 = tpu.matmul %109, %97, %cst_33 {dimension_numbers = #tpu.dot_dimension_numbers<[2], [1], [1], [2], [0, 0, 0, 1, 1, 2], [0], [0]>} : vector<2x8x8xbf16>, vector<2x8x16xbf16>, vector<2x8x16xf32> -> vector<2x8x16xf32>
    "tpu.trace_stop"() : () -> ()
    %111 = vector.shape_cast %110 : vector<2x8x16xf32> to vector<16x16xf32>
    %112 = arith.truncf %111 : vector<16x16xf32> to vector<16x16xbf16>
    %c0_34 = arith.constant 0 : index
    %c64 = arith.constant 64 : index
    %113 = vector.load %arg16[%c0_34, %c64] : memref<16x128xbf16, #tpu.memory_space<vmem>>, vector<16x16xbf16>
    tpu.vector_store %arg16[%c0_34, %c64], %112 {strides = array<i32>} : memref<16x128xbf16, #tpu.memory_space<vmem>>, vector<16x16xbf16>,
    %114 = vector.extract_strided_slice %14 {offsets = [0, 0, 80], sizes = [2, 8, 16], strides = [1, 1, 1]} : vector<2x8x128xbf16> to vector<2x8x16xbf16>
    %115 = vector.extract_strided_slice %16 {offsets = [0, 0, 80], sizes = [2, 8, 16], strides = [1, 1, 1]} : vector<2x8x128xbf16> to vector<2x8x16xbf16>
    %116 = vector.extract_strided_slice %18 {offsets = [0, 0, 80], sizes = [2, 8, 16], strides = [1, 1, 1]} : vector<2x8x128xbf16> to vector<2x8x16xbf16>
    "tpu.trace_start"() <{level = 10 : i32, message = "bqd,bkd->bqk"}> : () -> ()
    %cst_35 = arith.constant dense<0.000000e+00> : vector<2x8x8xf32>
    %117 = tpu.matmul %114, %115, %cst_35 {dimension_numbers = #tpu.dot_dimension_numbers<[2], [2], [1], [1], [0, 0, 0, 1, 1, 1], [0], [0]>} : vector<2x8x16xbf16>, vector<2x8x16xbf16>, vector<2x8x8xf32> -> vector<2x8x8xf32>
    "tpu.trace_stop"() : () -> ()
    %cst_36 = arith.constant dense<0xFF800000> : vector<2x8xf32>
    %118 = vector.multi_reduction <maximumf>, %117, %cst_36 [2] : vector<2x8x8xf32> to vector<2x8xf32>
    %119 = vector.shape_cast %118 : vector<2x8xf32> to vector<2x8x1xf32>
    %120 = vector.broadcast %119 : vector<2x8x1xf32> to vector<2x8x8xf32>
    %121 = arith.subf %117, %120 : vector<2x8x8xf32>
    %122 = math.exp %121 : vector<2x8x8xf32>
    %cst_37 = arith.constant dense<0.000000e+00> : vector<2x8xf32>
    %123 = vector.multi_reduction <add>, %122, %cst_37 [2] : vector<2x8x8xf32> to vector<2x8xf32>
    %124 = vector.shape_cast %123 : vector<2x8xf32> to vector<2x8x1xf32>
    %125 = tpu.reciprocal %124 {approx = true} : vector<2x8x1xf32> -> vector<2x8x1xf32>
    %126 = vector.broadcast %125 : vector<2x8x1xf32> to vector<2x8x8xf32>
    %127 = arith.mulf %122, %126 : vector<2x8x8xf32>
    %128 = arith.truncf %127 : vector<2x8x8xf32> to vector<2x8x8xbf16>
    "tpu.trace_start"() <{level = 10 : i32, message = "bqk,bkd->bqd"}> : () -> ()
    %cst_38 = arith.constant dense<0.000000e+00> : vector<2x8x16xf32>
    %129 = tpu.matmul %128, %116, %cst_38 {dimension_numbers = #tpu.dot_dimension_numbers<[2], [1], [1], [2], [0, 0, 0, 1, 1, 2], [0], [0]>} : vector<2x8x8xbf16>, vector<2x8x16xbf16>, vector<2x8x16xf32> -> vector<2x8x16xf32>
    "tpu.trace_stop"() : () -> ()
    %130 = vector.shape_cast %129 : vector<2x8x16xf32> to vector<16x16xf32>
    %131 = arith.truncf %130 : vector<16x16xf32> to vector<16x16xbf16>
    %c0_39 = arith.constant 0 : index
    %c80 = arith.constant 80 : index
    %132 = vector.load %arg16[%c0_39, %c80] : memref<16x128xbf16, #tpu.memory_space<vmem>>, vector<16x16xbf16>
    tpu.vector_store %arg16[%c0_39, %c80], %131 {strides = array<i32>} : memref<16x128xbf16, #tpu.memory_space<vmem>>, vector<16x16xbf16>,
    %133 = vector.extract_strided_slice %14 {offsets = [0, 0, 96], sizes = [2, 8, 16], strides = [1, 1, 1]} : vector<2x8x128xbf16> to vector<2x8x16xbf16>
    %134 = vector.extract_strided_slice %16 {offsets = [0, 0, 96], sizes = [2, 8, 16], strides = [1, 1, 1]} : vector<2x8x128xbf16> to vector<2x8x16xbf16>
    %135 = vector.extract_strided_slice %18 {offsets = [0, 0, 96], sizes = [2, 8, 16], strides = [1, 1, 1]} : vector<2x8x128xbf16> to vector<2x8x16xbf16>
    "tpu.trace_start"() <{level = 10 : i32, message = "bqd,bkd->bqk"}> : () -> ()
    %cst_40 = arith.constant dense<0.000000e+00> : vector<2x8x8xf32>
    %136 = tpu.matmul %133, %134, %cst_40 {dimension_numbers = #tpu.dot_dimension_numbers<[2], [2], [1], [1], [0, 0, 0, 1, 1, 1], [0], [0]>} : vector<2x8x16xbf16>, vector<2x8x16xbf16>, vector<2x8x8xf32> -> vector<2x8x8xf32>
    "tpu.trace_stop"() : () -> ()
    %cst_41 = arith.constant dense<0xFF800000> : vector<2x8xf32>
    %137 = vector.multi_reduction <maximumf>, %136, %cst_41 [2] : vector<2x8x8xf32> to vector<2x8xf32>
    %138 = vector.shape_cast %137 : vector<2x8xf32> to vector<2x8x1xf32>
    %139 = vector.broadcast %138 : vector<2x8x1xf32> to vector<2x8x8xf32>
    %140 = arith.subf %136, %139 : vector<2x8x8xf32>
    %141 = math.exp %140 : vector<2x8x8xf32>
    %cst_42 = arith.constant dense<0.000000e+00> : vector<2x8xf32>
    %142 = vector.multi_reduction <add>, %141, %cst_42 [2] : vector<2x8x8xf32> to vector<2x8xf32>
    %143 = vector.shape_cast %142 : vector<2x8xf32> to vector<2x8x1xf32>
    %144 = tpu.reciprocal %143 {approx = true} : vector<2x8x1xf32> -> vector<2x8x1xf32>
    %145 = vector.broadcast %144 : vector<2x8x1xf32> to vector<2x8x8xf32>
    %146 = arith.mulf %141, %145 : vector<2x8x8xf32>
    %147 = arith.truncf %146 : vector<2x8x8xf32> to vector<2x8x8xbf16>
    "tpu.trace_start"() <{level = 10 : i32, message = "bqk,bkd->bqd"}> : () -> ()
    %cst_43 = arith.constant dense<0.000000e+00> : vector<2x8x16xf32>
    %148 = tpu.matmul %147, %135, %cst_43 {dimension_numbers = #tpu.dot_dimension_numbers<[2], [1], [1], [2], [0, 0, 0, 1, 1, 2], [0], [0]>} : vector<2x8x8xbf16>, vector<2x8x16xbf16>, vector<2x8x16xf32> -> vector<2x8x16xf32>
    "tpu.trace_stop"() : () -> ()
    %149 = vector.shape_cast %148 : vector<2x8x16xf32> to vector<16x16xf32>
    %150 = arith.truncf %149 : vector<16x16xf32> to vector<16x16xbf16>
    %c0_44 = arith.constant 0 : index
    %c96 = arith.constant 96 : index
    %151 = vector.load %arg16[%c0_44, %c96] : memref<16x128xbf16, #tpu.memory_space<vmem>>, vector<16x16xbf16>
    tpu.vector_store %arg16[%c0_44, %c96], %150 {strides = array<i32>} : memref<16x128xbf16, #tpu.memory_space<vmem>>, vector<16x16xbf16>,
    %152 = vector.extract_strided_slice %14 {offsets = [0, 0, 112], sizes = [2, 8, 16], strides = [1, 1, 1]} : vector<2x8x128xbf16> to vector<2x8x16xbf16>
    %153 = vector.extract_strided_slice %16 {offsets = [0, 0, 112], sizes = [2, 8, 16], strides = [1, 1, 1]} : vector<2x8x128xbf16> to vector<2x8x16xbf16>
    %154 = vector.extract_strided_slice %18 {offsets = [0, 0, 112], sizes = [2, 8, 16], strides = [1, 1, 1]} : vector<2x8x128xbf16> to vector<2x8x16xbf16>
    "tpu.trace_start"() <{level = 10 : i32, message = "bqd,bkd->bqk"}> : () -> ()
    %cst_45 = arith.constant dense<0.000000e+00> : vector<2x8x8xf32>
    %155 = tpu.matmul %152, %153, %cst_45 {dimension_numbers = #tpu.dot_dimension_numbers<[2], [2], [1], [1], [0, 0, 0, 1, 1, 1], [0], [0]>} : vector<2x8x16xbf16>, vector<2x8x16xbf16>, vector<2x8x8xf32> -> vector<2x8x8xf32>
    "tpu.trace_stop"() : () -> ()
    %cst_46 = arith.constant dense<0xFF800000> : vector<2x8xf32>
    %156 = vector.multi_reduction <maximumf>, %155, %cst_46 [2] : vector<2x8x8xf32> to vector<2x8xf32>
    %157 = vector.shape_cast %156 : vector<2x8xf32> to vector<2x8x1xf32>
    %158 = vector.broadcast %157 : vector<2x8x1xf32> to vector<2x8x8xf32>
    %159 = arith.subf %155, %158 : vector<2x8x8xf32>
    %160 = math.exp %159 : vector<2x8x8xf32>
    %cst_47 = arith.constant dense<0.000000e+00> : vector<2x8xf32>
    %161 = vector.multi_reduction <add>, %160, %cst_47 [2] : vector<2x8x8xf32> to vector<2x8xf32>
    %162 = vector.shape_cast %161 : vector<2x8xf32> to vector<2x8x1xf32>
    %163 = tpu.reciprocal %162 {approx = true} : vector<2x8x1xf32> -> vector<2x8x1xf32>
    %164 = vector.broadcast %163 : vector<2x8x1xf32> to vector<2x8x8xf32>
    %165 = arith.mulf %160, %164 : vector<2x8x8xf32>
    %166 = arith.truncf %165 : vector<2x8x8xf32> to vector<2x8x8xbf16>
    "tpu.trace_start"() <{level = 10 : i32, message = "bqk,bkd->bqd"}> : () -> ()
    %cst_48 = arith.constant dense<0.000000e+00> : vector<2x8x16xf32>
    %167 = tpu.matmul %166, %154, %cst_48 {dimension_numbers = #tpu.dot_dimension_numbers<[2], [1], [1], [2], [0, 0, 0, 1, 1, 2], [0], [0]>} : vector<2x8x8xbf16>, vector<2x8x16xbf16>, vector<2x8x16xf32> -> vector<2x8x16xf32>
    "tpu.trace_stop"() : () -> ()
    %168 = vector.shape_cast %167 : vector<2x8x16xf32> to vector<16x16xf32>
    %169 = arith.truncf %168 : vector<16x16xf32> to vector<16x16xbf16>
    %c0_49 = arith.constant 0 : index
    %c112 = arith.constant 112 : index
    %170 = vector.load %arg16[%c0_49, %c112] : memref<16x128xbf16, #tpu.memory_space<vmem>>, vector<16x16xbf16>
    tpu.vector_store %arg16[%c0_49, %c112], %169 {strides = array<i32>} : memref<16x128xbf16, #tpu.memory_space<vmem>>, vector<16x16xbf16>,
    %c0_50 = arith.constant 0 : index
    %c0_51 = arith.constant 0 : index
    %171 = vector.load %arg16[%c0_50, %c0_51] : memref<16x128xbf16, #tpu.memory_space<vmem>>, vector<16x128xbf16>
    %c0_52 = arith.constant 0 : index
    %c0_53 = arith.constant 0 : index
    %172 = vector.load %arg5[%c0_52, %c0_53] : memref<128x128xbf16, #tpu.memory_space<vmem>>, vector<128x128xbf16>
    %cst_54 = arith.constant dense<0.000000e+00> : vector<16x128xf32>
    %173 = tpu.matmul %171, %172, %cst_54 {dimension_numbers = #tpu.dot_dimension_numbers<[1], [0], [0], [1], [0, 0, 1, 1], [], []>} : vector<16x128xbf16>, vector<128x128xbf16>, vector<16x128xf32> -> vector<16x128xf32>
    %c0_55 = arith.constant 0 : index
    %c0_56 = arith.constant 0 : index
    %174 = vector.load %arg6[%c0_55, %c0_56] : memref<1x128xf32, #tpu.memory_space<vmem>>, vector<1x128xf32>
    %175 = vector.broadcast %174 : vector<1x128xf32> to vector<16x128xf32>
    %176 = arith.addf %173, %175 : vector<16x128xf32>
    %177 = arith.addf %1, %176 : vector<16x128xf32>
    %cst_57 = arith.constant dense<0.000000e+00> : vector<16xf32>
    %178 = vector.multi_reduction <add>, %177, %cst_57 [1] : vector<16x128xf32> to vector<16xf32>
    %179 = vector.shape_cast %178 : vector<16xf32> to vector<16x1xf32>
    %cst_58 = arith.constant 1.280000e+02 : f32
    %180 = vector.broadcast %cst_58 : f32 to vector<16x1xf32>
    %181 = arith.divf %179, %180 : vector<16x1xf32>
    %182 = vector.broadcast %181 : vector<16x1xf32> to vector<16x128xf32>
    %183 = arith.subf %177, %182 : vector<16x128xf32>
    %184 = vector.broadcast %181 : vector<16x1xf32> to vector<16x128xf32>
    %185 = arith.subf %177, %184 : vector<16x128xf32>
    %186 = arith.mulf %183, %185 : vector<16x128xf32>
    %cst_59 = arith.constant dense<0.000000e+00> : vector<16xf32>
    %187 = vector.multi_reduction <add>, %186, %cst_59 [1] : vector<16x128xf32> to vector<16xf32>
    %188 = vector.shape_cast %187 : vector<16xf32> to vector<16x1xf32>
    %cst_60 = arith.constant 1.280000e+02 : f32
    %189 = vector.broadcast %cst_60 : f32 to vector<16x1xf32>
    %190 = arith.divf %188, %189 : vector<16x1xf32>
    %191 = vector.broadcast %181 : vector<16x1xf32> to vector<16x128xf32>
    %192 = arith.subf %177, %191 : vector<16x128xf32>
    %cst_61 = arith.constant 9.99999974E-6 : f32
    %193 = vector.broadcast %cst_61 : f32 to vector<16x1xf32>
    %194 = arith.addf %190, %193 : vector<16x1xf32>
    %195 = math.rsqrt %194 : vector<16x1xf32>
    %196 = vector.broadcast %195 : vector<16x1xf32> to vector<16x128xf32>
    %197 = arith.mulf %192, %196 : vector<16x128xf32>
    %c0_62 = arith.constant 0 : index
    %c0_63 = arith.constant 0 : index
    %198 = vector.load %arg7[%c0_62, %c0_63] : memref<1x128xf32, #tpu.memory_space<vmem>>, vector<1x128xf32>
    %199 = vector.broadcast %198 : vector<1x128xf32> to vector<16x128xf32>
    %200 = arith.mulf %197, %199 : vector<16x128xf32>
    %c0_64 = arith.constant 0 : index
    %c0_65 = arith.constant 0 : index
    %201 = vector.load %arg8[%c0_64, %c0_65] : memref<1x128xf32, #tpu.memory_space<vmem>>, vector<1x128xf32>
    %202 = vector.broadcast %201 : vector<1x128xf32> to vector<16x128xf32>
    %203 = arith.addf %200, %202 : vector<16x128xf32>
    %204 = arith.truncf %203 : vector<16x128xf32> to vector<16x128xbf16>
    %c0_66 = arith.constant 0 : index
    %c0_67 = arith.constant 0 : index
    %205 = vector.load %arg9[%c0_66, %c0_67] : memref<128x128xbf16, #tpu.memory_space<vmem>>, vector<128x128xbf16>
    %cst_68 = arith.constant dense<0.000000e+00> : vector<16x128xf32>
    %206 = tpu.matmul %204, %205, %cst_68 {dimension_numbers = #tpu.dot_dimension_numbers<[1], [0], [0], [1], [0, 0, 1, 1], [], []>} : vector<16x128xbf16>, vector<128x128xbf16>, vector<16x128xf32> -> vector<16x128xf32>
    %c0_69 = arith.constant 0 : index
    %c0_70 = arith.constant 0 : index
    %207 = vector.load %arg10[%c0_69, %c0_70] : memref<1x128xf32, #tpu.memory_space<vmem>>, vector<1x128xf32>
    %208 = vector.broadcast %207 : vector<1x128xf32> to vector<16x128xf32>
    %209 = arith.addf %206, %208 : vector<16x128xf32>
    %c0_71 = arith.constant 0 : index
    %c0_72 = arith.constant 0 : index
    %210 = vector.load %arg11[%c0_71, %c0_72] : memref<128x256xbf16, #tpu.memory_space<vmem>>, vector<128x256xbf16>
    %cst_73 = arith.constant dense<0.000000e+00> : vector<32x256xf32>
    %211 = tpu.matmul %3, %210, %cst_73 {dimension_numbers = #tpu.dot_dimension_numbers<[1], [0], [0], [1], [0, 0, 1, 1], [], []>} : vector<32x128xbf16>, vector<128x256xbf16>, vector<32x256xf32> -> vector<32x256xf32>
    %c0_74 = arith.constant 0 : index
    %c0_75 = arith.constant 0 : index
    %212 = vector.load %arg12[%c0_74, %c0_75] : memref<1x256xf32, #tpu.memory_space<vmem>>, vector<1x256xf32>
    %213 = vector.broadcast %212 : vector<1x256xf32> to vector<32x256xf32>
    %214 = arith.addf %211, %213 : vector<32x256xf32>
    %215 = vector.extract_strided_slice %214 {offsets = [0, 0], sizes = [32, 128], strides = [1, 1]} : vector<32x256xf32> to vector<32x128xf32>
    %216 = vector.extract_strided_slice %214 {offsets = [0, 128], sizes = [32, 128], strides = [1, 1]} : vector<32x256xf32> to vector<32x128xf32>
    %217 = arith.truncf %209 : vector<16x128xf32> to vector<16x128xbf16>
    %218 = vector.shape_cast %217 : vector<16x128xbf16> to vector<2x8x128xbf16>
    %219 = arith.truncf %215 : vector<32x128xf32> to vector<32x128xbf16>
    %220 = vector.shape_cast %219 : vector<32x128xbf16> to vector<2x16x128xbf16>
    %221 = arith.truncf %216 : vector<32x128xf32> to vector<32x128xbf16>
    %222 = vector.shape_cast %221 : vector<32x128xbf16> to vector<2x16x128xbf16>
    %223 = vector.extract_strided_slice %218 {offsets = [0, 0, 0], sizes = [2, 8, 16], strides = [1, 1, 1]} : vector<2x8x128xbf16> to vector<2x8x16xbf16>
    %224 = vector.extract_strided_slice %220 {offsets = [0, 0, 0], sizes = [2, 16, 16], strides = [1, 1, 1]} : vector<2x16x128xbf16> to vector<2x16x16xbf16>
    %225 = vector.extract_strided_slice %222 {offsets = [0, 0, 0], sizes = [2, 16, 16], strides = [1, 1, 1]} : vector<2x16x128xbf16> to vector<2x16x16xbf16>
    "tpu.trace_start"() <{level = 10 : i32, message = "bqd,bkd->bqk"}> : () -> ()
    %cst_76 = arith.constant dense<0.000000e+00> : vector<2x8x16xf32>
    %226 = tpu.matmul %223, %224, %cst_76 {dimension_numbers = #tpu.dot_dimension_numbers<[2], [2], [1], [1], [0, 0, 0, 1, 1, 1], [0], [0]>} : vector<2x8x16xbf16>, vector<2x16x16xbf16>, vector<2x8x16xf32> -> vector<2x8x16xf32>
    "tpu.trace_stop"() : () -> ()
    %cst_77 = arith.constant dense<0xFF800000> : vector<2x8xf32>
    %227 = vector.multi_reduction <maximumf>, %226, %cst_77 [2] : vector<2x8x16xf32> to vector<2x8xf32>
    %228 = vector.shape_cast %227 : vector<2x8xf32> to vector<2x8x1xf32>
    %229 = vector.broadcast %228 : vector<2x8x1xf32> to vector<2x8x16xf32>
    %230 = arith.subf %226, %229 : vector<2x8x16xf32>
    %231 = math.exp %230 : vector<2x8x16xf32>
    %cst_78 = arith.constant dense<0.000000e+00> : vector<2x8xf32>
    %232 = vector.multi_reduction <add>, %231, %cst_78 [2] : vector<2x8x16xf32> to vector<2x8xf32>
    %233 = vector.shape_cast %232 : vector<2x8xf32> to vector<2x8x1xf32>
    %234 = tpu.reciprocal %233 {approx = true} : vector<2x8x1xf32> -> vector<2x8x1xf32>
    %235 = vector.broadcast %234 : vector<2x8x1xf32> to vector<2x8x16xf32>
    %236 = arith.mulf %231, %235 : vector<2x8x16xf32>
    %237 = arith.truncf %236 : vector<2x8x16xf32> to vector<2x8x16xbf16>
    "tpu.trace_start"() <{level = 10 : i32, message = "bqk,bkd->bqd"}> : () -> ()
    %cst_79 = arith.constant dense<0.000000e+00> : vector<2x8x16xf32>
    %238 = tpu.matmul %237, %225, %cst_79 {dimension_numbers = #tpu.dot_dimension_numbers<[2], [1], [1], [2], [0, 0, 0, 1, 1, 2], [0], [0]>} : vector<2x8x16xbf16>, vector<2x16x16xbf16>, vector<2x8x16xf32> -> vector<2x8x16xf32>
    "tpu.trace_stop"() : () -> ()
    %239 = vector.shape_cast %238 : vector<2x8x16xf32> to vector<16x16xf32>
    %240 = arith.truncf %239 : vector<16x16xf32> to vector<16x16xbf16>
    %c0_80 = arith.constant 0 : index
    %c0_81 = arith.constant 0 : index
    %241 = vector.load %arg16[%c0_80, %c0_81] : memref<16x128xbf16, #tpu.memory_space<vmem>>, vector<16x16xbf16>
    tpu.vector_store %arg16[%c0_80, %c0_81], %240 {strides = array<i32>} : memref<16x128xbf16, #tpu.memory_space<vmem>>, vector<16x16xbf16>,
    %242 = vector.extract_strided_slice %218 {offsets = [0, 0, 16], sizes = [2, 8, 16], strides = [1, 1, 1]} : vector<2x8x128xbf16> to vector<2x8x16xbf16>
    %243 = vector.extract_strided_slice %220 {offsets = [0, 0, 16], sizes = [2, 16, 16], strides = [1, 1, 1]} : vector<2x16x128xbf16> to vector<2x16x16xbf16>
    %244 = vector.extract_strided_slice %222 {offsets = [0, 0, 16], sizes = [2, 16, 16], strides = [1, 1, 1]} : vector<2x16x128xbf16> to vector<2x16x16xbf16>
    "tpu.trace_start"() <{level = 10 : i32, message = "bqd,bkd->bqk"}> : () -> ()
    %cst_82 = arith.constant dense<0.000000e+00> : vector<2x8x16xf32>
    %245 = tpu.matmul %242, %243, %cst_82 {dimension_numbers = #tpu.dot_dimension_numbers<[2], [2], [1], [1], [0, 0, 0, 1, 1, 1], [0], [0]>} : vector<2x8x16xbf16>, vector<2x16x16xbf16>, vector<2x8x16xf32> -> vector<2x8x16xf32>
    "tpu.trace_stop"() : () -> ()
    %cst_83 = arith.constant dense<0xFF800000> : vector<2x8xf32>
    %246 = vector.multi_reduction <maximumf>, %245, %cst_83 [2] : vector<2x8x16xf32> to vector<2x8xf32>
    %247 = vector.shape_cast %246 : vector<2x8xf32> to vector<2x8x1xf32>
    %248 = vector.broadcast %247 : vector<2x8x1xf32> to vector<2x8x16xf32>
    %249 = arith.subf %245, %248 : vector<2x8x16xf32>
    %250 = math.exp %249 : vector<2x8x16xf32>
    %cst_84 = arith.constant dense<0.000000e+00> : vector<2x8xf32>
    %251 = vector.multi_reduction <add>, %250, %cst_84 [2] : vector<2x8x16xf32> to vector<2x8xf32>
    %252 = vector.shape_cast %251 : vector<2x8xf32> to vector<2x8x1xf32>
    %253 = tpu.reciprocal %252 {approx = true} : vector<2x8x1xf32> -> vector<2x8x1xf32>
    %254 = vector.broadcast %253 : vector<2x8x1xf32> to vector<2x8x16xf32>
    %255 = arith.mulf %250, %254 : vector<2x8x16xf32>
    %256 = arith.truncf %255 : vector<2x8x16xf32> to vector<2x8x16xbf16>
    "tpu.trace_start"() <{level = 10 : i32, message = "bqk,bkd->bqd"}> : () -> ()
    %cst_85 = arith.constant dense<0.000000e+00> : vector<2x8x16xf32>
    %257 = tpu.matmul %256, %244, %cst_85 {dimension_numbers = #tpu.dot_dimension_numbers<[2], [1], [1], [2], [0, 0, 0, 1, 1, 2], [0], [0]>} : vector<2x8x16xbf16>, vector<2x16x16xbf16>, vector<2x8x16xf32> -> vector<2x8x16xf32>
    "tpu.trace_stop"() : () -> ()
    %258 = vector.shape_cast %257 : vector<2x8x16xf32> to vector<16x16xf32>
    %259 = arith.truncf %258 : vector<16x16xf32> to vector<16x16xbf16>
    %c0_86 = arith.constant 0 : index
    %c16_87 = arith.constant 16 : index
    %260 = vector.load %arg16[%c0_86, %c16_87] : memref<16x128xbf16, #tpu.memory_space<vmem>>, vector<16x16xbf16>
    tpu.vector_store %arg16[%c0_86, %c16_87], %259 {strides = array<i32>} : memref<16x128xbf16, #tpu.memory_space<vmem>>, vector<16x16xbf16>,
    %261 = vector.extract_strided_slice %218 {offsets = [0, 0, 32], sizes = [2, 8, 16], strides = [1, 1, 1]} : vector<2x8x128xbf16> to vector<2x8x16xbf16>
    %262 = vector.extract_strided_slice %220 {offsets = [0, 0, 32], sizes = [2, 16, 16], strides = [1, 1, 1]} : vector<2x16x128xbf16> to vector<2x16x16xbf16>
    %263 = vector.extract_strided_slice %222 {offsets = [0, 0, 32], sizes = [2, 16, 16], strides = [1, 1, 1]} : vector<2x16x128xbf16> to vector<2x16x16xbf16>
    "tpu.trace_start"() <{level = 10 : i32, message = "bqd,bkd->bqk"}> : () -> ()
    %cst_88 = arith.constant dense<0.000000e+00> : vector<2x8x16xf32>
    %264 = tpu.matmul %261, %262, %cst_88 {dimension_numbers = #tpu.dot_dimension_numbers<[2], [2], [1], [1], [0, 0, 0, 1, 1, 1], [0], [0]>} : vector<2x8x16xbf16>, vector<2x16x16xbf16>, vector<2x8x16xf32> -> vector<2x8x16xf32>
    "tpu.trace_stop"() : () -> ()
    %cst_89 = arith.constant dense<0xFF800000> : vector<2x8xf32>
    %265 = vector.multi_reduction <maximumf>, %264, %cst_89 [2] : vector<2x8x16xf32> to vector<2x8xf32>
    %266 = vector.shape_cast %265 : vector<2x8xf32> to vector<2x8x1xf32>
    %267 = vector.broadcast %266 : vector<2x8x1xf32> to vector<2x8x16xf32>
    %268 = arith.subf %264, %267 : vector<2x8x16xf32>
    %269 = math.exp %268 : vector<2x8x16xf32>
    %cst_90 = arith.constant dense<0.000000e+00> : vector<2x8xf32>
    %270 = vector.multi_reduction <add>, %269, %cst_90 [2] : vector<2x8x16xf32> to vector<2x8xf32>
    %271 = vector.shape_cast %270 : vector<2x8xf32> to vector<2x8x1xf32>
    %272 = tpu.reciprocal %271 {approx = true} : vector<2x8x1xf32> -> vector<2x8x1xf32>
    %273 = vector.broadcast %272 : vector<2x8x1xf32> to vector<2x8x16xf32>
    %274 = arith.mulf %269, %273 : vector<2x8x16xf32>
    %275 = arith.truncf %274 : vector<2x8x16xf32> to vector<2x8x16xbf16>
    "tpu.trace_start"() <{level = 10 : i32, message = "bqk,bkd->bqd"}> : () -> ()
    %cst_91 = arith.constant dense<0.000000e+00> : vector<2x8x16xf32>
    %276 = tpu.matmul %275, %263, %cst_91 {dimension_numbers = #tpu.dot_dimension_numbers<[2], [1], [1], [2], [0, 0, 0, 1, 1, 2], [0], [0]>} : vector<2x8x16xbf16>, vector<2x16x16xbf16>, vector<2x8x16xf32> -> vector<2x8x16xf32>
    "tpu.trace_stop"() : () -> ()
    %277 = vector.shape_cast %276 : vector<2x8x16xf32> to vector<16x16xf32>
    %278 = arith.truncf %277 : vector<16x16xf32> to vector<16x16xbf16>
    %c0_92 = arith.constant 0 : index
    %c32_93 = arith.constant 32 : index
    %279 = vector.load %arg16[%c0_92, %c32_93] : memref<16x128xbf16, #tpu.memory_space<vmem>>, vector<16x16xbf16>
    tpu.vector_store %arg16[%c0_92, %c32_93], %278 {strides = array<i32>} : memref<16x128xbf16, #tpu.memory_space<vmem>>, vector<16x16xbf16>,
    %280 = vector.extract_strided_slice %218 {offsets = [0, 0, 48], sizes = [2, 8, 16], strides = [1, 1, 1]} : vector<2x8x128xbf16> to vector<2x8x16xbf16>
    %281 = vector.extract_strided_slice %220 {offsets = [0, 0, 48], sizes = [2, 16, 16], strides = [1, 1, 1]} : vector<2x16x128xbf16> to vector<2x16x16xbf16>
    %282 = vector.extract_strided_slice %222 {offsets = [0, 0, 48], sizes = [2, 16, 16], strides = [1, 1, 1]} : vector<2x16x128xbf16> to vector<2x16x16xbf16>
    "tpu.trace_start"() <{level = 10 : i32, message = "bqd,bkd->bqk"}> : () -> ()
    %cst_94 = arith.constant dense<0.000000e+00> : vector<2x8x16xf32>
    %283 = tpu.matmul %280, %281, %cst_94 {dimension_numbers = #tpu.dot_dimension_numbers<[2], [2], [1], [1], [0, 0, 0, 1, 1, 1], [0], [0]>} : vector<2x8x16xbf16>, vector<2x16x16xbf16>, vector<2x8x16xf32> -> vector<2x8x16xf32>
    "tpu.trace_stop"() : () -> ()
    %cst_95 = arith.constant dense<0xFF800000> : vector<2x8xf32>
    %284 = vector.multi_reduction <maximumf>, %283, %cst_95 [2] : vector<2x8x16xf32> to vector<2x8xf32>
    %285 = vector.shape_cast %284 : vector<2x8xf32> to vector<2x8x1xf32>
    %286 = vector.broadcast %285 : vector<2x8x1xf32> to vector<2x8x16xf32>
    %287 = arith.subf %283, %286 : vector<2x8x16xf32>
    %288 = math.exp %287 : vector<2x8x16xf32>
    %cst_96 = arith.constant dense<0.000000e+00> : vector<2x8xf32>
    %289 = vector.multi_reduction <add>, %288, %cst_96 [2] : vector<2x8x16xf32> to vector<2x8xf32>
    %290 = vector.shape_cast %289 : vector<2x8xf32> to vector<2x8x1xf32>
    %291 = tpu.reciprocal %290 {approx = true} : vector<2x8x1xf32> -> vector<2x8x1xf32>
    %292 = vector.broadcast %291 : vector<2x8x1xf32> to vector<2x8x16xf32>
    %293 = arith.mulf %288, %292 : vector<2x8x16xf32>
    %294 = arith.truncf %293 : vector<2x8x16xf32> to vector<2x8x16xbf16>
    "tpu.trace_start"() <{level = 10 : i32, message = "bqk,bkd->bqd"}> : () -> ()
    %cst_97 = arith.constant dense<0.000000e+00> : vector<2x8x16xf32>
    %295 = tpu.matmul %294, %282, %cst_97 {dimension_numbers = #tpu.dot_dimension_numbers<[2], [1], [1], [2], [0, 0, 0, 1, 1, 2], [0], [0]>} : vector<2x8x16xbf16>, vector<2x16x16xbf16>, vector<2x8x16xf32> -> vector<2x8x16xf32>
    "tpu.trace_stop"() : () -> ()
    %296 = vector.shape_cast %295 : vector<2x8x16xf32> to vector<16x16xf32>
    %297 = arith.truncf %296 : vector<16x16xf32> to vector<16x16xbf16>
    %c0_98 = arith.constant 0 : index
    %c48_99 = arith.constant 48 : index
    %298 = vector.load %arg16[%c0_98, %c48_99] : memref<16x128xbf16, #tpu.memory_space<vmem>>, vector<16x16xbf16>
    tpu.vector_store %arg16[%c0_98, %c48_99], %297 {strides = array<i32>} : memref<16x128xbf16, #tpu.memory_space<vmem>>, vector<16x16xbf16>,
    %299 = vector.extract_strided_slice %218 {offsets = [0, 0, 64], sizes = [2, 8, 16], strides = [1, 1, 1]} : vector<2x8x128xbf16> to vector<2x8x16xbf16>
    %300 = vector.extract_strided_slice %220 {offsets = [0, 0, 64], sizes = [2, 16, 16], strides = [1, 1, 1]} : vector<2x16x128xbf16> to vector<2x16x16xbf16>
    %301 = vector.extract_strided_slice %222 {offsets = [0, 0, 64], sizes = [2, 16, 16], strides = [1, 1, 1]} : vector<2x16x128xbf16> to vector<2x16x16xbf16>
    "tpu.trace_start"() <{level = 10 : i32, message = "bqd,bkd->bqk"}> : () -> ()
    %cst_100 = arith.constant dense<0.000000e+00> : vector<2x8x16xf32>
    %302 = tpu.matmul %299, %300, %cst_100 {dimension_numbers = #tpu.dot_dimension_numbers<[2], [2], [1], [1], [0, 0, 0, 1, 1, 1], [0], [0]>} : vector<2x8x16xbf16>, vector<2x16x16xbf16>, vector<2x8x16xf32> -> vector<2x8x16xf32>
    "tpu.trace_stop"() : () -> ()
    %cst_101 = arith.constant dense<0xFF800000> : vector<2x8xf32>
    %303 = vector.multi_reduction <maximumf>, %302, %cst_101 [2] : vector<2x8x16xf32> to vector<2x8xf32>
    %304 = vector.shape_cast %303 : vector<2x8xf32> to vector<2x8x1xf32>
    %305 = vector.broadcast %304 : vector<2x8x1xf32> to vector<2x8x16xf32>
    %306 = arith.subf %302, %305 : vector<2x8x16xf32>
    %307 = math.exp %306 : vector<2x8x16xf32>
    %cst_102 = arith.constant dense<0.000000e+00> : vector<2x8xf32>
    %308 = vector.multi_reduction <add>, %307, %cst_102 [2] : vector<2x8x16xf32> to vector<2x8xf32>
    %309 = vector.shape_cast %308 : vector<2x8xf32> to vector<2x8x1xf32>
    %310 = tpu.reciprocal %309 {approx = true} : vector<2x8x1xf32> -> vector<2x8x1xf32>
    %311 = vector.broadcast %310 : vector<2x8x1xf32> to vector<2x8x16xf32>
    %312 = arith.mulf %307, %311 : vector<2x8x16xf32>
    %313 = arith.truncf %312 : vector<2x8x16xf32> to vector<2x8x16xbf16>
    "tpu.trace_start"() <{level = 10 : i32, message = "bqk,bkd->bqd"}> : () -> ()
    %cst_103 = arith.constant dense<0.000000e+00> : vector<2x8x16xf32>
    %314 = tpu.matmul %313, %301, %cst_103 {dimension_numbers = #tpu.dot_dimension_numbers<[2], [1], [1], [2], [0, 0, 0, 1, 1, 2], [0], [0]>} : vector<2x8x16xbf16>, vector<2x16x16xbf16>, vector<2x8x16xf32> -> vector<2x8x16xf32>
    "tpu.trace_stop"() : () -> ()
    %315 = vector.shape_cast %314 : vector<2x8x16xf32> to vector<16x16xf32>
    %316 = arith.truncf %315 : vector<16x16xf32> to vector<16x16xbf16>
    %c0_104 = arith.constant 0 : index
    %c64_105 = arith.constant 64 : index
    %317 = vector.load %arg16[%c0_104, %c64_105] : memref<16x128xbf16, #tpu.memory_space<vmem>>, vector<16x16xbf16>
    tpu.vector_store %arg16[%c0_104, %c64_105], %316 {strides = array<i32>} : memref<16x128xbf16, #tpu.memory_space<vmem>>, vector<16x16xbf16>,
    %318 = vector.extract_strided_slice %218 {offsets = [0, 0, 80], sizes = [2, 8, 16], strides = [1, 1, 1]} : vector<2x8x128xbf16> to vector<2x8x16xbf16>
    %319 = vector.extract_strided_slice %220 {offsets = [0, 0, 80], sizes = [2, 16, 16], strides = [1, 1, 1]} : vector<2x16x128xbf16> to vector<2x16x16xbf16>
    %320 = vector.extract_strided_slice %222 {offsets = [0, 0, 80], sizes = [2, 16, 16], strides = [1, 1, 1]} : vector<2x16x128xbf16> to vector<2x16x16xbf16>
    "tpu.trace_start"() <{level = 10 : i32, message = "bqd,bkd->bqk"}> : () -> ()
    %cst_106 = arith.constant dense<0.000000e+00> : vector<2x8x16xf32>
    %321 = tpu.matmul %318, %319, %cst_106 {dimension_numbers = #tpu.dot_dimension_numbers<[2], [2], [1], [1], [0, 0, 0, 1, 1, 1], [0], [0]>} : vector<2x8x16xbf16>, vector<2x16x16xbf16>, vector<2x8x16xf32> -> vector<2x8x16xf32>
    "tpu.trace_stop"() : () -> ()
    %cst_107 = arith.constant dense<0xFF800000> : vector<2x8xf32>
    %322 = vector.multi_reduction <maximumf>, %321, %cst_107 [2] : vector<2x8x16xf32> to vector<2x8xf32>
    %323 = vector.shape_cast %322 : vector<2x8xf32> to vector<2x8x1xf32>
    %324 = vector.broadcast %323 : vector<2x8x1xf32> to vector<2x8x16xf32>
    %325 = arith.subf %321, %324 : vector<2x8x16xf32>
    %326 = math.exp %325 : vector<2x8x16xf32>
    %cst_108 = arith.constant dense<0.000000e+00> : vector<2x8xf32>
    %327 = vector.multi_reduction <add>, %326, %cst_108 [2] : vector<2x8x16xf32> to vector<2x8xf32>
    %328 = vector.shape_cast %327 : vector<2x8xf32> to vector<2x8x1xf32>
    %329 = tpu.reciprocal %328 {approx = true} : vector<2x8x1xf32> -> vector<2x8x1xf32>
    %330 = vector.broadcast %329 : vector<2x8x1xf32> to vector<2x8x16xf32>
    %331 = arith.mulf %326, %330 : vector<2x8x16xf32>
    %332 = arith.truncf %331 : vector<2x8x16xf32> to vector<2x8x16xbf16>
    "tpu.trace_start"() <{level = 10 : i32, message = "bqk,bkd->bqd"}> : () -> ()
    %cst_109 = arith.constant dense<0.000000e+00> : vector<2x8x16xf32>
    %333 = tpu.matmul %332, %320, %cst_109 {dimension_numbers = #tpu.dot_dimension_numbers<[2], [1], [1], [2], [0, 0, 0, 1, 1, 2], [0], [0]>} : vector<2x8x16xbf16>, vector<2x16x16xbf16>, vector<2x8x16xf32> -> vector<2x8x16xf32>
    "tpu.trace_stop"() : () -> ()
    %334 = vector.shape_cast %333 : vector<2x8x16xf32> to vector<16x16xf32>
    %335 = arith.truncf %334 : vector<16x16xf32> to vector<16x16xbf16>
    %c0_110 = arith.constant 0 : index
    %c80_111 = arith.constant 80 : index
    %336 = vector.load %arg16[%c0_110, %c80_111] : memref<16x128xbf16, #tpu.memory_space<vmem>>, vector<16x16xbf16>
    tpu.vector_store %arg16[%c0_110, %c80_111], %335 {strides = array<i32>} : memref<16x128xbf16, #tpu.memory_space<vmem>>, vector<16x16xbf16>,
    %337 = vector.extract_strided_slice %218 {offsets = [0, 0, 96], sizes = [2, 8, 16], strides = [1, 1, 1]} : vector<2x8x128xbf16> to vector<2x8x16xbf16>
    %338 = vector.extract_strided_slice %220 {offsets = [0, 0, 96], sizes = [2, 16, 16], strides = [1, 1, 1]} : vector<2x16x128xbf16> to vector<2x16x16xbf16>
    %339 = vector.extract_strided_slice %222 {offsets = [0, 0, 96], sizes = [2, 16, 16], strides = [1, 1, 1]} : vector<2x16x128xbf16> to vector<2x16x16xbf16>
    "tpu.trace_start"() <{level = 10 : i32, message = "bqd,bkd->bqk"}> : () -> ()
    %cst_112 = arith.constant dense<0.000000e+00> : vector<2x8x16xf32>
    %340 = tpu.matmul %337, %338, %cst_112 {dimension_numbers = #tpu.dot_dimension_numbers<[2], [2], [1], [1], [0, 0, 0, 1, 1, 1], [0], [0]>} : vector<2x8x16xbf16>, vector<2x16x16xbf16>, vector<2x8x16xf32> -> vector<2x8x16xf32>
    "tpu.trace_stop"() : () -> ()
    %cst_113 = arith.constant dense<0xFF800000> : vector<2x8xf32>
    %341 = vector.multi_reduction <maximumf>, %340, %cst_113 [2] : vector<2x8x16xf32> to vector<2x8xf32>
    %342 = vector.shape_cast %341 : vector<2x8xf32> to vector<2x8x1xf32>
    %343 = vector.broadcast %342 : vector<2x8x1xf32> to vector<2x8x16xf32>
    %344 = arith.subf %340, %343 : vector<2x8x16xf32>
    %345 = math.exp %344 : vector<2x8x16xf32>
    %cst_114 = arith.constant dense<0.000000e+00> : vector<2x8xf32>
    %346 = vector.multi_reduction <add>, %345, %cst_114 [2] : vector<2x8x16xf32> to vector<2x8xf32>
    %347 = vector.shape_cast %346 : vector<2x8xf32> to vector<2x8x1xf32>
    %348 = tpu.reciprocal %347 {approx = true} : vector<2x8x1xf32> -> vector<2x8x1xf32>
    %349 = vector.broadcast %348 : vector<2x8x1xf32> to vector<2x8x16xf32>
    %350 = arith.mulf %345, %349 : vector<2x8x16xf32>
    %351 = arith.truncf %350 : vector<2x8x16xf32> to vector<2x8x16xbf16>
    "tpu.trace_start"() <{level = 10 : i32, message = "bqk,bkd->bqd"}> : () -> ()
    %cst_115 = arith.constant dense<0.000000e+00> : vector<2x8x16xf32>
    %352 = tpu.matmul %351, %339, %cst_115 {dimension_numbers = #tpu.dot_dimension_numbers<[2], [1], [1], [2], [0, 0, 0, 1, 1, 2], [0], [0]>} : vector<2x8x16xbf16>, vector<2x16x16xbf16>, vector<2x8x16xf32> -> vector<2x8x16xf32>
    "tpu.trace_stop"() : () -> ()
    %353 = vector.shape_cast %352 : vector<2x8x16xf32> to vector<16x16xf32>
    %354 = arith.truncf %353 : vector<16x16xf32> to vector<16x16xbf16>
    %c0_116 = arith.constant 0 : index
    %c96_117 = arith.constant 96 : index
    %355 = vector.load %arg16[%c0_116, %c96_117] : memref<16x128xbf16, #tpu.memory_space<vmem>>, vector<16x16xbf16>
    tpu.vector_store %arg16[%c0_116, %c96_117], %354 {strides = array<i32>} : memref<16x128xbf16, #tpu.memory_space<vmem>>, vector<16x16xbf16>,
    %356 = vector.extract_strided_slice %218 {offsets = [0, 0, 112], sizes = [2, 8, 16], strides = [1, 1, 1]} : vector<2x8x128xbf16> to vector<2x8x16xbf16>
    %357 = vector.extract_strided_slice %220 {offsets = [0, 0, 112], sizes = [2, 16, 16], strides = [1, 1, 1]} : vector<2x16x128xbf16> to vector<2x16x16xbf16>
    %358 = vector.extract_strided_slice %222 {offsets = [0, 0, 112], sizes = [2, 16, 16], strides = [1, 1, 1]} : vector<2x16x128xbf16> to vector<2x16x16xbf16>
    "tpu.trace_start"() <{level = 10 : i32, message = "bqd,bkd->bqk"}> : () -> ()
    %cst_118 = arith.constant dense<0.000000e+00> : vector<2x8x16xf32>
    %359 = tpu.matmul %356, %357, %cst_118 {dimension_numbers = #tpu.dot_dimension_numbers<[2], [2], [1], [1], [0, 0, 0, 1, 1, 1], [0], [0]>} : vector<2x8x16xbf16>, vector<2x16x16xbf16>, vector<2x8x16xf32> -> vector<2x8x16xf32>
    "tpu.trace_stop"() : () -> ()
    %cst_119 = arith.constant dense<0xFF800000> : vector<2x8xf32>
    %360 = vector.multi_reduction <maximumf>, %359, %cst_119 [2] : vector<2x8x16xf32> to vector<2x8xf32>
    %361 = vector.shape_cast %360 : vector<2x8xf32> to vector<2x8x1xf32>
    %362 = vector.broadcast %361 : vector<2x8x1xf32> to vector<2x8x16xf32>
    %363 = arith.subf %359, %362 : vector<2x8x16xf32>
    %364 = math.exp %363 : vector<2x8x16xf32>
    %cst_120 = arith.constant dense<0.000000e+00> : vector<2x8xf32>
    %365 = vector.multi_reduction <add>, %364, %cst_120 [2] : vector<2x8x16xf32> to vector<2x8xf32>
    %366 = vector.shape_cast %365 : vector<2x8xf32> to vector<2x8x1xf32>
    %367 = tpu.reciprocal %366 {approx = true} : vector<2x8x1xf32> -> vector<2x8x1xf32>
    %368 = vector.broadcast %367 : vector<2x8x1xf32> to vector<2x8x16xf32>
    %369 = arith.mulf %364, %368 : vector<2x8x16xf32>
    %370 = arith.truncf %369 : vector<2x8x16xf32> to vector<2x8x16xbf16>
    "tpu.trace_start"() <{level = 10 : i32, message = "bqk,bkd->bqd"}> : () -> ()
    %cst_121 = arith.constant dense<0.000000e+00> : vector<2x8x16xf32>
    %371 = tpu.matmul %370, %358, %cst_121 {dimension_numbers = #tpu.dot_dimension_numbers<[2], [1], [1], [2], [0, 0, 0, 1, 1, 2], [0], [0]>} : vector<2x8x16xbf16>, vector<2x16x16xbf16>, vector<2x8x16xf32> -> vector<2x8x16xf32>
    "tpu.trace_stop"() : () -> ()
    %372 = vector.shape_cast %371 : vector<2x8x16xf32> to vector<16x16xf32>
    %373 = arith.truncf %372 : vector<16x16xf32> to vector<16x16xbf16>
    %c0_122 = arith.constant 0 : index
    %c112_123 = arith.constant 112 : index
    %374 = vector.load %arg16[%c0_122, %c112_123] : memref<16x128xbf16, #tpu.memory_space<vmem>>, vector<16x16xbf16>
    tpu.vector_store %arg16[%c0_122, %c112_123], %373 {strides = array<i32>} : memref<16x128xbf16, #tpu.memory_space<vmem>>, vector<16x16xbf16>,
    %c0_124 = arith.constant 0 : index
    %c0_125 = arith.constant 0 : index
    %375 = vector.load %arg16[%c0_124, %c0_125] : memref<16x128xbf16, #tpu.memory_space<vmem>>, vector<16x128xbf16>
    %c0_126 = arith.constant 0 : index
    %c0_127 = arith.constant 0 : index
    %376 = vector.load %arg13[%c0_126, %c0_127] : memref<128x128xbf16, #tpu.memory_space<vmem>>, vector<128x128xbf16>
    %cst_128 = arith.constant dense<0.000000e+00> : vector<16x128xf32>
    %377 = tpu.matmul %375, %376, %cst_128 {dimension_numbers = #tpu.dot_dimension_numbers<[1], [0], [0], [1], [0, 0, 1, 1], [], []>} : vector<16x128xbf16>, vector<128x128xbf16>, vector<16x128xf32> -> vector<16x128xf32>
    %c0_129 = arith.constant 0 : index
    %c0_130 = arith.constant 0 : index
    %378 = vector.load %arg14[%c0_129, %c0_130] : memref<1x128xf32, #tpu.memory_space<vmem>>, vector<1x128xf32>
    %379 = vector.broadcast %378 : vector<1x128xf32> to vector<16x128xf32>
    %380 = arith.addf %377, %379 : vector<16x128xf32>
    %381 = vector.shape_cast %380 : vector<16x128xf32> to vector<2x8x128xf32>
    %c0_131 = arith.constant 0 : index
    %c0_132 = arith.constant 0 : index
    %c0_133 = arith.constant 0 : index
    %382 = vector.load %arg15[%c0_131, %c0_132, %c0_133] : memref<2x8x128xf32, #tpu.memory_space<vmem>>, vector<2x8x128xf32>
    tpu.vector_store %arg15[%c0_131, %c0_132, %c0_133], %381 {strides = array<i32>} : memref<2x8x128xf32, #tpu.memory_space<vmem>>, vector<2x8x128xf32>,
    return
  }
  func.func @transform_0(%arg0: i32) -> (i32, i32, i32) {
    %c0_i32 = arith.constant 0 : i32
    %c0_i32_0 = arith.constant 0 : i32
    %c0_i32_1 = arith.constant 0 : i32
    return %arg0, %c0_i32, %c0_i32_0 : i32, i32, i32
  }
  func.func @transform_1(%arg0: i32) -> (i32, i32, i32) {
    %c0_i32 = arith.constant 0 : i32
    %c0_i32_0 = arith.constant 0 : i32
    %c0_i32_1 = arith.constant 0 : i32
    return %arg0, %c0_i32, %c0_i32_0 : i32, i32, i32
  }
  func.func @transform_2(%arg0: i32) -> (i32, i32) {
    %c0_i32 = arith.constant 0 : i32
    %c0_i32_0 = arith.constant 0 : i32
    %c0_i32_1 = arith.constant 0 : i32
    return %c0_i32, %c0_i32_0 : i32, i32
  }
  func.func @transform_3(%arg0: i32) -> (i32, i32) {
    %c0_i32 = arith.constant 0 : i32
    %c0_i32_0 = arith.constant 0 : i32
    %c0_i32_1 = arith.constant 0 : i32
    return %c0_i32, %c0_i32_0 : i32, i32
  }
  func.func @transform_4(%arg0: i32) -> (i32, i32) {
    %c0_i32 = arith.constant 0 : i32
    %c0_i32_0 = arith.constant 0 : i32
    %c0_i32_1 = arith.constant 0 : i32
    return %c0_i32, %c0_i32_0 : i32, i32
  }
  func.func @transform_5(%arg0: i32) -> (i32, i32) {
    %c0_i32 = arith.constant 0 : i32
    %c0_i32_0 = arith.constant 0 : i32
    %c0_i32_1 = arith.constant 0 : i32
    return %c0_i32, %c0_i32_0 : i32, i32
  }
  func.func @transform_6(%arg0: i32) -> (i32, i32) {
    %c0_i32 = arith.constant 0 : i32
    %c0_i32_0 = arith.constant 0 : i32
    %c0_i32_1 = arith.constant 0 : i32
    return %c0_i32, %c0_i32_0 : i32, i32
  }
  func.func @transform_7(%arg0: i32) -> (i32, i32) {
    %c0_i32 = arith.constant 0 : i32
    %c0_i32_0 = arith.constant 0 : i32
    %c0_i32_1 = arith.constant 0 : i32
    return %c0_i32, %c0_i32_0 : i32, i32
  }
  func.func @transform_8(%arg0: i32) -> (i32, i32) {
    %c0_i32 = arith.constant 0 : i32
    %c0_i32_0 = arith.constant 0 : i32
    %c0_i32_1 = arith.constant 0 : i32
    return %c0_i32, %c0_i32_0 : i32, i32
  }
  func.func @transform_9(%arg0: i32) -> (i32, i32) {
    %c0_i32 = arith.constant 0 : i32
    %c0_i32_0 = arith.constant 0 : i32
    %c0_i32_1 = arith.constant 0 : i32
    return %c0_i32, %c0_i32_0 : i32, i32
  }
  func.func @transform_10(%arg0: i32) -> (i32, i32) {
    %c0_i32 = arith.constant 0 : i32
    %c0_i32_0 = arith.constant 0 : i32
    %c0_i32_1 = arith.constant 0 : i32
    return %c0_i32, %c0_i32_0 : i32, i32
  }
  func.func @transform_11(%arg0: i32) -> (i32, i32) {
    %c0_i32 = arith.constant 0 : i32
    %c0_i32_0 = arith.constant 0 : i32
    %c0_i32_1 = arith.constant 0 : i32
    return %c0_i32, %c0_i32_0 : i32, i32
  }
  func.func @transform_12(%arg0: i32) -> (i32, i32) {
    %c0_i32 = arith.constant 0 : i32
    %c0_i32_0 = arith.constant 0 : i32
    %c0_i32_1 = arith.constant 0 : i32
    return %c0_i32, %c0_i32_0 : i32, i32
  }
  func.func @transform_13(%arg0: i32) -> (i32, i32) {
    %c0_i32 = arith.constant 0 : i32
    %c0_i32_0 = arith.constant 0 : i32
    %c0_i32_1 = arith.constant 0 : i32
    return %c0_i32, %c0_i32_0 : i32, i32
  }
  func.func @transform_14(%arg0: i32) -> (i32, i32, i32) {
    %c0_i32 = arith.constant 0 : i32
    %c0_i32_0 = arith.constant 0 : i32
    %c0_i32_1 = arith.constant 0 : i32
    return %arg0, %c0_i32, %c0_i32_0 : i32, i32, i32
  }
}

</mosaic_0001>

<llo_original>
// kernel: tpu_custom_call.1
$region0: #{tpu_custom_call.1}
  #allocation0 [shape = 'u32[]', space=smem, size = 0x4, offset = 0x4, fixed_abs, tag = 'smem constant byte address 0x4 - core index']
  #allocation1 [shape = 'u32[72,128]{1,0:T(1,128)}', space=vmem, size = 0x9000, scoped, tag = 'internal scratch']
  #allocation2 [shape = 'bf16[16,128]{1,0:T(8,128)(2,1)}', space=vmem, size = 0x1000, scoped, tag = 'scratch operand']
  %s0 = inlined_call_operand.hbm [shape: f32[2,8,128], index: 0, kind: input, shape index: {}]
  %s1 = inlined_call_operand.hbm [shape: bf16[2,16,128], index: 1, kind: input, shape index: {}]
  %s2 = inlined_call_operand.hbm [shape: bf16[128,384], index: 2, kind: input, shape index: {}]
  %s3 = inlined_call_operand.hbm [shape: f32[1,384], index: 3, kind: input, shape index: {}]
  %s4 = inlined_call_operand.hbm [shape: bf16[128,128], index: 4, kind: input, shape index: {}]
  %s5 = inlined_call_operand.vmem [shape: f32[1,128], index: 5, kind: input, shape index: {}]
  %s6 = inlined_call_operand.vmem [shape: f32[1,128], index: 6, kind: input, shape index: {}]
  %s7 = inlined_call_operand.vmem [shape: f32[1,128], index: 7, kind: input, shape index: {}]
  %s8 = inlined_call_operand.hbm [shape: bf16[128,128], index: 8, kind: input, shape index: {}]
  %s9 = inlined_call_operand.vmem [shape: f32[1,128], index: 9, kind: input, shape index: {}]
  %s10 = inlined_call_operand.hbm [shape: bf16[128,256], index: 10, kind: input, shape index: {}]
  %s11 = inlined_call_operand.vmem [shape: f32[1,256], index: 11, kind: input, shape index: {}]
  %s12 = inlined_call_operand.hbm [shape: bf16[128,128], index: 12, kind: input, shape index: {}]
  %s13 = inlined_call_operand.vmem [shape: f32[1,128], index: 13, kind: input, shape index: {}]
  %s14 = inlined_call_operand.hbm [shape: f32[2,8,128], index: 14, kind: output, shape index: {}]
  %s15 = sld [smem:[#allocation0]]
  $region98: #{tpu_custom_call.1} parent=0
    _
  %s17 = ssub.s32 1, %s15
  %s18 = scalar_select 0, %s17, %s15
  $region1: #{tpu_custom_call.1} parent=0
    #allocation3 [shape = 'u8[8192]{0}', space=vmem, size = 0x2000, scoped, tag = 'input window, operand 0, single buffered']
    #allocation4 [shape = 's32[1]{0}', space=sflag, size = 0x4, scoped, tag = 'scoped memory for tpu_custom_call.1']
    #allocation5 [shape = 's32[1]{0}', space=sflag, size = 0x4, scoped, tag = 'scoped memory for tpu_custom_call.1']
    #allocation6 [shape = 'u8[8192]{0}', space=vmem, size = 0x2000, scoped, tag = 'input window, operand 1, single buffered']
    #allocation7 [shape = 's32[1]{0}', space=sflag, size = 0x4, scoped, tag = 'scoped memory for tpu_custom_call.1']
    #allocation8 [shape = 'u8[98304]{0}', space=vmem, size = 0x18000, scoped, tag = 'input window, operand 2, single buffered']
    #allocation9 [shape = 'u8[1536]{0}', space=vmem, size = 0x800, scoped, tag = 'input window, operand 3, single buffered']
    #allocation10 [shape = 's32[1]{0}', space=sflag, size = 0x4, scoped, tag = 'scoped memory for tpu_custom_call.1']
    #allocation11 [shape = 'u8[32768]{0}', space=vmem, size = 0x8000, scoped, tag = 'input window, operand 4, single buffered']
    #allocation12 [shape = 'u8[32768]{0}', space=vmem, size = 0x8000, scoped, tag = 'input window, operand 8, single buffered']
    #allocation13 [shape = 's32[1]{0}', space=sflag, size = 0x4, scoped, tag = 'scoped memory for tpu_custom_call.1']
    #allocation14 [shape = 'u8[65536]{0}', space=vmem, size = 0x10000, scoped, tag = 'input window, operand 10, single buffered']
    #allocation15 [shape = 'u8[32768]{0}', space=vmem, size = 0x8000, scoped, tag = 'input window, operand 12, single buffered']
    #allocation16 [shape = 's32[1]{0}', space=sflag, size = 0x4, scoped, tag = 'scoped memory for tpu_custom_call.1']
    #allocation17 [shape = 'u8[8192]{0}', space=vmem, size = 0x2000, scoped, tag = 'output window, operand 0, single buffered']
    %19 = vsyncpa [#allocation4], 0
    %20 = vsyncpa [#allocation7], 0
    %21 = vsyncpa [#allocation10], 0
    %22 = vsyncpa [#allocation13], 0
    %23 = vsyncpa [#allocation16], 0
    %24 = vsyncpa [#allocation5], 0
    // Predicated region
    $region2: #{tpu_custom_call.1} parent=1 // pred_check
      _
    $region3: #{tpu_custom_call.1} parent=1 // pred_check_branch
      %26 = sbr.rel (0) target = $region5
    $region4: #{tpu_custom_call.1} parent=1 // pred_region
      %28 = vsyncadd [#allocation4], 0
      %s29 = sshll.u32 %s0, 4
      %s30 = int_to_ptr.hbm [resolvable:$true] %s29
      %s31 = sshll.u32 [#allocation3], 4
      %s32 = int_to_ptr.vmem [resolvable:$true] %s31
      %37 = dma.hbm_to_vmem [thread:$0]  %s30, 256, %s32, [#allocation4], 128, 128, 8
    $region5: #{tpu_custom_call.1} parent=1 // pred_fallthru
      _
    // Predicated region
    $region6: #{tpu_custom_call.1} parent=1 // pred_check
      _
    $region7: #{tpu_custom_call.1} parent=1 // pred_check_branch
      %39 = sbr.rel (0) target = $region9
    $region8: #{tpu_custom_call.1} parent=1 // pred_region
      %41 = vsyncadd [#allocation7], 0
      %s42 = sshll.u32 %s1, 4
      %s43 = int_to_ptr.hbm [resolvable:$true] %s42
      %s44 = sshll.u32 [#allocation6], 4
      %s45 = int_to_ptr.vmem [resolvable:$true] %s44
      %50 = dma.hbm_to_vmem [thread:$0]  %s43, 256, %s45, [#allocation7], 64, 64, 4
    $region9: #{tpu_custom_call.1} parent=1 // pred_fallthru
      _
    // Predicated region
    $region10: #{tpu_custom_call.1} parent=1 // pred_check
      _
    $region11: #{tpu_custom_call.1} parent=1 // pred_check_branch
      %52 = sbr.rel (0) target = $region13
    $region12: #{tpu_custom_call.1} parent=1 // pred_region
      %54 = vsyncadd [#allocation7], 0
      %s55 = sshll.u32 %s2, 4
      %s56 = int_to_ptr.hbm [resolvable:$true] %s55
      %s57 = sshll.u32 [#allocation8], 4
      %s58 = int_to_ptr.vmem [resolvable:$true] %s57
      %63 = dma.hbm_to_vmem [thread:$0]  %s56, 3072, %s58, [#allocation7], 192, 192, 12
    $region13: #{tpu_custom_call.1} parent=1 // pred_fallthru
      _
    // Predicated region
    $region14: #{tpu_custom_call.1} parent=1 // pred_check
      _
    $region15: #{tpu_custom_call.1} parent=1 // pred_check_branch
      %65 = sbr.rel (0) target = $region17
    $region16: #{tpu_custom_call.1} parent=1 // pred_region
      %67 = vsyncadd [#allocation10], 0
      %s69 = sshll.u32 %s3, 4
      %s70 = int_to_ptr.hbm [resolvable:$true] %s69
      %s71 = sshll.u32 [#allocation9], 4
      %s72 = int_to_ptr.vmem [resolvable:$true] %s71
      %74 = dma.hbm_to_vmem [thread:$0]  %s70, 48, %s72, [#allocation10]
    $region17: #{tpu_custom_call.1} parent=1 // pred_fallthru
      _
    // Predicated region
    $region18: #{tpu_custom_call.1} parent=1 // pred_check
      _
    $region19: #{tpu_custom_call.1} parent=1 // pred_check_branch
      %76 = sbr.rel (0) target = $region21
    $region20: #{tpu_custom_call.1} parent=1 // pred_region
      %78 = vsyncadd [#allocation10], 0
      %s79 = sshll.u32 %s4, 4
      %s80 = int_to_ptr.hbm [resolvable:$true] %s79
      %s81 = sshll.u32 [#allocation11], 4
      %s82 = int_to_ptr.vmem [resolvable:$true] %s81
      %87 = dma.hbm_to_vmem [thread:$0]  %s80, 1024, %s82, [#allocation10], 64, 64, 4
    $region21: #{tpu_custom_call.1} parent=1 // pred_fallthru
      _
    // Predicated region
    $region22: #{tpu_custom_call.1} parent=1 // pred_check
      _
    $region23: #{tpu_custom_call.1} parent=1 // pred_check_branch
      %89 = sbr.rel (0) target = $region25
    $region24: #{tpu_custom_call.1} parent=1 // pred_region
      _
    $region25: #{tpu_custom_call.1} parent=1 // pred_fallthru
      _
    // Predicated region
    $region26: #{tpu_custom_call.1} parent=1 // pred_check
      _
    $region27: #{tpu_custom_call.1} parent=1 // pred_check_branch
      %91 = sbr.rel (0) target = $region29
    $region28: #{tpu_custom_call.1} parent=1 // pred_region
      _
    $region29: #{tpu_custom_call.1} parent=1 // pred_fallthru
      _
    // Predicated region
    $region30: #{tpu_custom_call.1} parent=1 // pred_check
      _
    $region31: #{tpu_custom_call.1} parent=1 // pred_check_branch
      %93 = sbr.rel (0) target = $region33
    $region32: #{tpu_custom_call.1} parent=1 // pred_region
      _
    $region33: #{tpu_custom_call.1} parent=1 // pred_fallthru
      _
    // Predicated region
    $region34: #{tpu_custom_call.1} parent=1 // pred_check
      _
    $region35: #{tpu_custom_call.1} parent=1 // pred_check_branch
      %95 = sbr.rel (0) target = $region37
    $region36: #{tpu_custom_call.1} parent=1 // pred_region
      %97 = vsyncadd [#allocation13], 0
      %s98 = sshll.u32 %s8, 4
      %s99 = int_to_ptr.hbm [resolvable:$true] %s98
      %s100 = sshll.u32 [#allocation12], 4
      %s101 = int_to_ptr.vmem [resolvable:$true] %s100
      %106 = dma.hbm_to_vmem [thread:$0]  %s99, 1024, %s101, [#allocation13], 64, 64, 4
    $region37: #{tpu_custom_call.1} parent=1 // pred_fallthru
      _
    // Predicated region
    $region38: #{tpu_custom_call.1} parent=1 // pred_check
      _
    $region39: #{tpu_custom_call.1} parent=1 // pred_check_branch
      %108 = sbr.rel (0) target = $region41
    $region40: #{tpu_custom_call.1} parent=1 // pred_region
      _
    $region41: #{tpu_custom_call.1} parent=1 // pred_fallthru
      _
    // Predicated region
    $region42: #{tpu_custom_call.1} parent=1 // pred_check
      _
    $region43: #{tpu_custom_call.1} parent=1 // pred_check_branch
      %110 = sbr.rel (0) target = $region45
    $region44: #{tpu_custom_call.1} parent=1 // pred_region
      %112 = vsyncadd [#allocation13], 0
      %s113 = sshll.u32 %s10, 4
      %s114 = int_to_ptr.hbm [resolvable:$true] %s113
      %s115 = sshll.u32 [#allocation14], 4
      %s116 = int_to_ptr.vmem [resolvable:$true] %s115
      %121 = dma.hbm_to_vmem [thread:$0]  %s114, 2048, %s116, [#allocation13], 128, 128, 8
    $region45: #{tpu_custom_call.1} parent=1 // pred_fallthru
      _
    // Predicated region
    $region46: #{tpu_custom_call.1} parent=1 // pred_check
      _
    $region47: #{tpu_custom_call.1} parent=1 // pred_check_branch
      %123 = sbr.rel (0) target = $region49
    $region48: #{tpu_custom_call.1} parent=1 // pred_region
      _
    $region49: #{tpu_custom_call.1} parent=1 // pred_fallthru
      _
    // Predicated region
    $region50: #{tpu_custom_call.1} parent=1 // pred_check
      _
    $region51: #{tpu_custom_call.1} parent=1 // pred_check_branch
      %125 = sbr.rel (0) target = $region53
    $region52: #{tpu_custom_call.1} parent=1 // pred_region
      %127 = vsyncadd [#allocation16], 0
      %s128 = sshll.u32 %s12, 4
      %s129 = int_to_ptr.hbm [resolvable:$true] %s128
      %s130 = sshll.u32 [#allocation15], 4
      %s131 = int_to_ptr.vmem [resolvable:$true] %s130
      %136 = dma.hbm_to_vmem [thread:$0]  %s129, 1024, %s131, [#allocation16], 64, 64, 4
    $region53: #{tpu_custom_call.1} parent=1 // pred_fallthru
      _
    // Predicated region
    $region54: #{tpu_custom_call.1} parent=1 // pred_check
      _
    $region55: #{tpu_custom_call.1} parent=1 // pred_check_branch
      %138 = sbr.rel (0) target = $region57
    $region56: #{tpu_custom_call.1} parent=1 // pred_region
      _
    $region57: #{tpu_custom_call.1} parent=1 // pred_fallthru
      _
    // Predicated region
    $region58: #{tpu_custom_call.1} parent=1 // pred_check
      _
    $region59: #{tpu_custom_call.1} parent=1 // pred_check_branch
      %140 = sbr.rel (0) target = $region61
    $region60: #{tpu_custom_call.1} parent=1 // pred_region
      %142 = dma.done [#allocation4], 256
    $region61: #{tpu_custom_call.1} parent=1 // pred_fallthru
      _
    // Predicated region
    $region62: #{tpu_custom_call.1} parent=1 // pred_check
      _
    $region63: #{tpu_custom_call.1} parent=1 // pred_check_branch
      %144 = sbr.rel (0) target = $region65
    $region64: #{tpu_custom_call.1} parent=1 // pred_region
      %146 = dma.done [#allocation7], 256
    $region65: #{tpu_custom_call.1} parent=1 // pred_fallthru
      _
    // Predicated region
    $region66: #{tpu_custom_call.1} parent=1 // pred_check
      _
    $region67: #{tpu_custom_call.1} parent=1 // pred_check_branch
      %148 = sbr.rel (0) target = $region69
    $region68: #{tpu_custom_call.1} parent=1 // pred_region
      %150 = dma.done [#allocation7], 3072
    $region69: #{tpu_custom_call.1} parent=1 // pred_fallthru
      _
    // Predicated region
    $region70: #{tpu_custom_call.1} parent=1 // pred_check
      _
    $region71: #{tpu_custom_call.1} parent=1 // pred_check_branch
      %152 = sbr.rel (0) target = $region73
    $region72: #{tpu_custom_call.1} parent=1 // pred_region
      %154 = dma.done [#allocation10], 48
    $region73: #{tpu_custom_call.1} parent=1 // pred_fallthru
      _
    // Predicated region
    $region74: #{tpu_custom_call.1} parent=1 // pred_check
      _
    $region75: #{tpu_custom_call.1} parent=1 // pred_check_branch
      %156 = sbr.rel (0) target = $region77
    $region76: #{tpu_custom_call.1} parent=1 // pred_region
      %158 = dma.done [#allocation10], 1024
    $region77: #{tpu_custom_call.1} parent=1 // pred_fallthru
      _
    // Predicated region
    $region78: #{tpu_custom_call.1} parent=1 // pred_check
      _
    $region79: #{tpu_custom_call.1} parent=1 // pred_check_branch
      %160 = sbr.rel (0) target = $region81
    $region80: #{tpu_custom_call.1} parent=1 // pred_region
      %162 = dma.done [#allocation13], 1024
    $region81: #{tpu_custom_call.1} parent=1 // pred_fallthru
      _
    // Predicated region
    $region82: #{tpu_custom_call.1} parent=1 // pred_check
      _
    $region83: #{tpu_custom_call.1} parent=1 // pred_check_branch
      %164 = sbr.rel (0) target = $region85
    $region84: #{tpu_custom_call.1} parent=1 // pred_region
      %166 = dma.done [#allocation13], 2048
    $region85: #{tpu_custom_call.1} parent=1 // pred_fallthru
      _
    // Predicated region
    $region86: #{tpu_custom_call.1} parent=1 // pred_check
      _
    $region87: #{tpu_custom_call.1} parent=1 // pred_check_branch
      %168 = sbr.rel (0) target = $region89
    $region88: #{tpu_custom_call.1} parent=1 // pred_region
      %170 = dma.done [#allocation16], 1024
    $region89: #{tpu_custom_call.1} parent=1 // pred_fallthru
      _
    %v172 = vld [vmem:[#allocation3] sm:$0xff]
    %v173 = vld [vmem:[#allocation3 + $0x8] sm:$0xff]
    %v174 = vld [vmem:[#allocation6] sm:$0xf]
    %v175 = vld [vmem:[#allocation6 + $0x4] sm:$0xf]
    %v176 = vld [vmem:[#allocation6 + $0x8] sm:$0xf]
    %v177 = vld [vmem:[#allocation6 + $0xc] sm:$0xf]
    %v178 = vpack.c.bf16 %v173, %v172
    %v179 = vld [vmem:[#allocation8] sm:$0xff]
    %v180 = vld [vmem:[#allocation8 + $0x8] sm:$0xf]
    %v181 = vld [vmem:[#allocation8 + $0xc] sm:$0xff]
    %v182 = vld [vmem:[#allocation8 + $0x14] sm:$0xf]
    %v183 = vld [vmem:[#allocation8 + $0x18] sm:$0xff]
    %v184 = vld [vmem:[#allocation8 + $0x20] sm:$0xf]
    %v185 = vld [vmem:[#allocation8 + $0x24] sm:$0xff]
    %v186 = vld [vmem:[#allocation8 + $0x2c] sm:$0xf]
    %v187 = vld [vmem:[#allocation8 + $0x30] sm:$0xff]
    %v188 = vld [vmem:[#allocation8 + $0x38] sm:$0xf]
    %v189 = vld [vmem:[#allocation8 + $0x3c] sm:$0xff]
    %v190 = vld [vmem:[#allocation8 + $0x44] sm:$0xf]
    %v191 = vld [vmem:[#allocation8 + $0x48] sm:$0xff]
    %v192 = vld [vmem:[#allocation8 + $0x50] sm:$0xf]
    %v193 = vld [vmem:[#allocation8 + $0x54] sm:$0xff]
    %v194 = vld [vmem:[#allocation8 + $0x5c] sm:$0xf]
    %v195 = vld [vmem:[#allocation8 + $0x60] sm:$0xff]
    %v196 = vld [vmem:[#allocation8 + $0x68] sm:$0xf]
    %v197 = vld [vmem:[#allocation8 + $0x6c] sm:$0xff]
    %v198 = vld [vmem:[#allocation8 + $0x74] sm:$0xf]
    %v199 = vld [vmem:[#allocation8 + $0x78] sm:$0xff]
    %v200 = vld [vmem:[#allocation8 + $0x80] sm:$0xf]
    %v201 = vld [vmem:[#allocation8 + $0x84] sm:$0xff]
    %v202 = vld [vmem:[#allocation8 + $0x8c] sm:$0xf]
    %v203 = vld [vmem:[#allocation8 + $0x90] sm:$0xff]
    %v204 = vld [vmem:[#allocation8 + $0x98] sm:$0xf]
    %v205 = vld [vmem:[#allocation8 + $0x9c] sm:$0xff]
    %v206 = vld [vmem:[#allocation8 + $0xa4] sm:$0xf]
    %v207 = vld [vmem:[#allocation8 + $0xa8] sm:$0xff]
    %v208 = vld [vmem:[#allocation8 + $0xb0] sm:$0xf]
    %v209 = vld [vmem:[#allocation8 + $0xb4] sm:$0xff]
    %v210 = vld [vmem:[#allocation8 + $0xbc] sm:$0xf]
    %v211 = vld [vmem:[#allocation9] sm:$0x7]
    %v213 = vperm.slane %v211, 0
    %v214 = vperm.slane %v211, 1
    %v215 = vperm.slane %v211, 2
    %v251 = vunpack.c.l.b16 %v179
    %v252 = vunpack.c.h.b16 %v179
    %v253 = vunpack.c.l.b16 %v180
    %v254 = vunpack.c.l.b16 %v181
    %v255 = vunpack.c.h.b16 %v181
    %v256 = vunpack.c.l.b16 %v182
    %v257 = vunpack.c.l.b16 %v183
    %v258 = vunpack.c.h.b16 %v183
    %v259 = vunpack.c.l.b16 %v184
    %v260 = vunpack.c.l.b16 %v185
    %v261 = vunpack.c.h.b16 %v185
    %v262 = vunpack.c.l.b16 %v186
    %v263 = vunpack.c.l.b16 %v187
    %v264 = vunpack.c.h.b16 %v187
    %v265 = vunpack.c.l.b16 %v188
    %v266 = vunpack.c.l.b16 %v189
    %v267 = vunpack.c.h.b16 %v189
    %v268 = vunpack.c.l.b16 %v190
    %v269 = vunpack.c.l.b16 %v191
    %v270 = vunpack.c.h.b16 %v191
    %v271 = vunpack.c.l.b16 %v192
    %v272 = vunpack.c.l.b16 %v193
    %v273 = vunpack.c.h.b16 %v193
    %v274 = vunpack.c.l.b16 %v194
    %v275 = vunpack.c.l.b16 %v195
    %v276 = vunpack.c.h.b16 %v195
    %v277 = vunpack.c.l.b16 %v196
    %v278 = vunpack.c.l.b16 %v197
    %v279 = vunpack.c.h.b16 %v197
    %v280 = vunpack.c.l.b16 %v198
    %v281 = vunpack.c.l.b16 %v199
    %v282 = vunpack.c.h.b16 %v199
    %v283 = vunpack.c.l.b16 %v200
    %v284 = vunpack.c.l.b16 %v201
    %v285 = vunpack.c.h.b16 %v201
    %v286 = vunpack.c.l.b16 %v202
    %v287 = vunpack.c.l.b16 %v203
    %v288 = vunpack.c.h.b16 %v203
    %v289 = vunpack.c.l.b16 %v204
    %v290 = vunpack.c.l.b16 %v205
    %v291 = vunpack.c.h.b16 %v205
    %v292 = vunpack.c.l.b16 %v206
    %v293 = vunpack.c.l.b16 %v207
    %v294 = vunpack.c.h.b16 %v207
    %v295 = vunpack.c.l.b16 %v208
    %v296 = vunpack.c.l.b16 %v209
    %v297 = vunpack.c.h.b16 %v209
    %v298 = vunpack.c.l.b16 %v210
    %v299 = vpack.c.b16 %v254, %v251
    %v300 = vpack.c.b16 %v255, %v252
    %v301 = vpack.c.b16 %v256, %v253
    %v302 = vpack.c.b16 %v260, %v257
    %v303 = vpack.c.b16 %v261, %v258
    %v304 = vpack.c.b16 %v262, %v259
    %v305 = vpack.c.b16 %v266, %v263
    %v306 = vpack.c.b16 %v267, %v264
    %v307 = vpack.c.b16 %v268, %v265
    %v308 = vpack.c.b16 %v272, %v269
    %v309 = vpack.c.b16 %v273, %v270
    %v310 = vpack.c.b16 %v274, %v271
    %v311 = vpack.c.b16 %v278, %v275
    %v312 = vpack.c.b16 %v279, %v276
    %v313 = vpack.c.b16 %v280, %v277
    %v314 = vpack.c.b16 %v284, %v281
    %v315 = vpack.c.b16 %v285, %v282
    %v316 = vpack.c.b16 %v286, %v283
    %v317 = vpack.c.b16 %v290, %v287
    %v318 = vpack.c.b16 %v291, %v288
    %v319 = vpack.c.b16 %v292, %v289
    %v320 = vpack.c.b16 %v296, %v293
    %v321 = vpack.c.b16 %v297, %v294
    %v322 = vpack.c.b16 %v298, %v295
    %347 = vmatpush.bf16.msra.mxu0 %v320
    %348 = vmatpush.bf16.msra.mxu0 %v317
    %349 = vmatpush.bf16.msra.mxu0 %v314
    %350 = vmatpush.bf16.msra.mxu0 %v311
    %351 = vmatpush.bf16.msra.mxu0 %v308
    %352 = vmatpush.bf16.msra.mxu0 %v305
    %353 = vmatpush.bf16.msra.mxu0 %v302
    %354 = vmatpush.bf16.msra.mxu0 %v299
    %355 = vmatmul.bf16.gmra.mxu0 %v178
    %v356 = vpop.f32.mrf.mxu0
    %v357 = vadd.f32 %v213, %v356
    %v358 = vpop.f32.mrf.mxu0
    %v359 = vadd.f32 %v213, %v358
    %360 = vdwg.mxu0
    %361 = vmatpush.bf16.msra.mxu0 %v321
    %362 = vmatpush.bf16.msra.mxu0 %v318
    %363 = vmatpush.bf16.msra.mxu0 %v315
    %364 = vmatpush.bf16.msra.mxu0 %v312
    %365 = vmatpush.bf16.msra.mxu0 %v309
    %366 = vmatpush.bf16.msra.mxu0 %v306
    %367 = vmatpush.bf16.msra.mxu0 %v303
    %368 = vmatpush.bf16.msra.mxu0 %v300
    %369 = vmatmul.bf16.gmra.mxu0 %v178
    %v370 = vpop.f32.mrf.mxu0
    %v371 = vadd.f32 %v214, %v370
    %v372 = vpop.f32.mrf.mxu0
    %v373 = vadd.f32 %v214, %v372
    %374 = vdwg.mxu0
    %375 = vmatpush.bf16.msra.mxu0 %v322
    %376 = vmatpush.bf16.msra.mxu0 %v319
    %377 = vmatpush.bf16.msra.mxu0 %v316
    %378 = vmatpush.bf16.msra.mxu0 %v313
    %379 = vmatpush.bf16.msra.mxu0 %v310
    %380 = vmatpush.bf16.msra.mxu0 %v307
    %381 = vmatpush.bf16.msra.mxu0 %v304
    %382 = vmatpush.bf16.msra.mxu0 %v301
    %383 = vmatmul.bf16.gmra.mxu0 %v178
    %v384 = vpop.f32.mrf.mxu0
    %v385 = vadd.f32 %v215, %v384
    %v386 = vpop.f32.mrf.mxu0
    %v387 = vadd.f32 %v215, %v386
    %388 = vdwg.mxu0
    %v389 = vpack.c.bf16 %v357, %v357
    %v390 = vpack.c.bf16 %v359, %v359
    %v391 = vpack.c.bf16 %v371, %v371
    %v392 = vpack.c.bf16 %v373, %v373
    %v393 = vpack.c.bf16 %v385, %v385
    %v394 = vpack.c.bf16 %v387, %v387
    %vm395 = vcmask 130048
    %v397 = vsel %vm395, %v389, 0
    %v400 = vsel %vm395, %v391, 0
    %402 = vmatpush.bf16.xpose.msra.mxu0 0
    %403 = vmatpush.bf16.xpose.msra.mxu0 0
    %404 = vmatpush.bf16.xpose.msra.mxu0 0
    %405 = vmatpush.bf16.xpose.msra.mxu0 0
    %406 = vmatpush.bf16.xpose.msra.mxu0 0
    %407 = vmatpush.bf16.xpose.msra.mxu0 0
    %408 = vmatpush.bf16.xpose.msra.mxu0 0
    %409 = vmatpush.bf16.xpose.msra.mxu0 %v400
    %410 = vmatmul.bf16.gmra.mxu0 %v397
    %v411 = vpop.f32.mrf.mxu0
    %v412 = vadd.f32 0.0, %v411
    %v413 = vpop.f32.mrf.mxu0
    %414 = vdwg.mxu0
    %v416 = vsel %vm395, %v390, 0
    %v419 = vsel %vm395, %v392, 0
    %421 = vmatpush.bf16.xpose.msra.mxu0 0
    %422 = vmatpush.bf16.xpose.msra.mxu0 0
    %423 = vmatpush.bf16.xpose.msra.mxu0 0
    %424 = vmatpush.bf16.xpose.msra.mxu0 0
    %425 = vmatpush.bf16.xpose.msra.mxu0 0
    %426 = vmatpush.bf16.xpose.msra.mxu0 0
    %427 = vmatpush.bf16.xpose.msra.mxu0 0
    %428 = vmatpush.bf16.xpose.msra.mxu0 %v419
    %429 = vmatmul.bf16.gmra.mxu0 %v416
    %v430 = vpop.f32.mrf.mxu0
    %v431 = vadd.f32 0.0, %v430
    %v432 = vpop.f32.mrf.mxu0
    %433 = vdwg.mxu0
    %vm434 = vcmask 64512
    %v435 = vsel %vm434, %v412, -inf
    %436 = vmax.xlane.f32.xlu0 %v435
    %v437 = vpop.xlane.xlu0 %436
    %v438 = vsel %vm434, %v431, -inf
    %439 = vmax.xlane.f32.xlu0 %v438
    %v440 = vpop.xlane.xlu0 %439
    %v441 = vsub.f32 %v412, %v437
    %v442 = vsub.f32 %v431, %v440
    %v443 = vmul.f32 %v441, 1.442695
    %v444 = vpow.pop %v443
    %v445 = vmul.f32 %v442, 1.442695
    %v446 = vpow.pop %v445
    %v447 = vsel %vm434, %v444, 0.0
    %448 = vadd.xlane.f32.xlu0 %v447
    %v449 = vpop.xlane.xlu0 %448
    %v450 = vsel %vm434, %v446, 0.0
    %451 = vadd.xlane.f32.xlu0 %v450
    %v452 = vpop.xlane.xlu0 %451
    %v453 = vrcp.pop %v449
    %v454 = vrcp.pop %v452
    %v455 = vmul.f32 %v444, %v453
    %v456 = vmul.f32 %v446, %v454
    %v457 = vpack.c.bf16 %v455, %v455
    %v458 = vpack.c.bf16 %v456, %v456
    %v460 = vsel %vm434, %v457, 0
    %vm462 = vcmask 1043456
    %v464 = vsel %vm462, %v393, 0
    %466 = vmatpush.bf16.msra.mxu0 0
    %467 = vmatpush.bf16.msra.mxu0 0
    %468 = vmatpush.bf16.msra.mxu0 0
    %469 = vmatpush.bf16.msra.mxu0 0
    %470 = vmatpush.bf16.msra.mxu0 0
    %471 = vmatpush.bf16.msra.mxu0 0
    %472 = vmatpush.bf16.msra.mxu0 0
    %473 = vmatpush.bf16.msra.mxu0 %v464
    %474 = vmatmul.bf16.gmra.mxu0 %v460
    %v475 = vpop.f32.mrf.mxu0
    %v476 = vadd.f32 0.0, %v475
    %v477 = vpop.f32.mrf.mxu0
    %478 = vdwg.mxu0
    %v480 = vsel %vm434, %v458, 0
    %v483 = vsel %vm462, %v394, 0
    %485 = vmatpush.bf16.msra.mxu0 0
    %486 = vmatpush.bf16.msra.mxu0 0
    %487 = vmatpush.bf16.msra.mxu0 0
    %488 = vmatpush.bf16.msra.mxu0 0
    %489 = vmatpush.bf16.msra.mxu0 0
    %490 = vmatpush.bf16.msra.mxu0 0
    %491 = vmatpush.bf16.msra.mxu0 0
    %492 = vmatpush.bf16.msra.mxu0 %v483
    %493 = vmatmul.bf16.gmra.mxu0 %v480
    %v494 = vpop.f32.mrf.mxu0
    %v495 = vadd.f32 0.0, %v494
    %v496 = vpop.f32.mrf.mxu0
    %497 = vdwg.mxu0
    %v498 = vpack.c.bf16 %v476, %v476
    %v499 = vpack.c.bf16 %v495, %v495
    %vm500 = vcmask 125952
    %501 = vst.msk [vmem:[#allocation2] sm:$0xf] %vm500, %v498
    %502 = vst.msk [vmem:[#allocation2 + $0x4] sm:$0xf] %vm500, %v499
    %v504 = vunpack.c.l.b16 %v389
    %v505 = vpack.c.b16 %v504, %v504
    %506 = vrot.lane.b32.xlu0 %v505, 112
    %v507 = vpop.permute.xlu0 %506
    %v509 = vunpack.c.l.b16 %v391
    %v510 = vpack.c.b16 %v509, %v509
    %511 = vrot.lane.b32.xlu0 %v510, 112
    %v512 = vpop.permute.xlu0 %511
    %v514 = vsel %vm395, %v507, 0
    %v517 = vsel %vm395, %v512, 0
    %519 = vmatpush.bf16.xpose.msra.mxu0 0
    %520 = vmatpush.bf16.xpose.msra.mxu0 0
    %521 = vmatpush.bf16.xpose.msra.mxu0 0
    %522 = vmatpush.bf16.xpose.msra.mxu0 0
    %523 = vmatpush.bf16.xpose.msra.mxu0 0
    %524 = vmatpush.bf16.xpose.msra.mxu0 0
    %525 = vmatpush.bf16.xpose.msra.mxu0 0
    %526 = vmatpush.bf16.xpose.msra.mxu0 %v517
    %527 = vmatmul.bf16.gmra.mxu0 %v514
    %v528 = vpop.f32.mrf.mxu0
    %v529 = vadd.f32 0.0, %v528
    %v530 = vpop.f32.mrf.mxu0
    %531 = vdwg.mxu0
    %v533 = vunpack.c.l.b16 %v390
    %v534 = vpack.c.b16 %v533, %v533
    %535 = vrot.lane.b32.xlu0 %v534, 112
    %v536 = vpop.permute.xlu0 %535
    %v538 = vunpack.c.l.b16 %v392
    %v539 = vpack.c.b16 %v538, %v538
    %540 = vrot.lane.b32.xlu0 %v539, 112
    %v541 = vpop.permute.xlu0 %540
    %v543 = vsel %vm395, %v536, 0
    %v546 = vsel %vm395, %v541, 0
    %548 = vmatpush.bf16.xpose.msra.mxu0 0
    %549 = vmatpush.bf16.xpose.msra.mxu0 0
    %550 = vmatpush.bf16.xpose.msra.mxu0 0
    %551 = vmatpush.bf16.xpose.msra.mxu0 0
    %552 = vmatpush.bf16.xpose.msra.mxu0 0
    %553 = vmatpush.bf16.xpose.msra.mxu0 0
    %554 = vmatpush.bf16.xpose.msra.mxu0 0
    %555 = vmatpush.bf16.xpose.msra.mxu0 %v546
    %556 = vmatmul.bf16.gmra.mxu0 %v543
    %v557 = vpop.f32.mrf.mxu0
    %v558 = vadd.f32 0.0, %v557
    %v559 = vpop.f32.mrf.mxu0
    %560 = vdwg.mxu0
    %v561 = vsel %vm434, %v529, -inf
    %562 = vmax.xlane.f32.xlu0 %v561
    %v563 = vpop.xlane.xlu0 %562
    %v564 = vsel %vm434, %v558, -inf
    %565 = vmax.xlane.f32.xlu0 %v564
    %v566 = vpop.xlane.xlu0 %565
    %v567 = vsub.f32 %v529, %v563
    %v568 = vsub.f32 %v558, %v566
    %v569 = vmul.f32 %v567, 1.442695
    %v570 = vpow.pop %v569
    %v571 = vmul.f32 %v568, 1.442695
    %v572 = vpow.pop %v571
    %v573 = vsel %vm434, %v570, 0.0
    %574 = vadd.xlane.f32.xlu0 %v573
    %v575 = vpop.xlane.xlu0 %574
    %v576 = vsel %vm434, %v572, 0.0
    %577 = vadd.xlane.f32.xlu0 %v576
    %v578 = vpop.xlane.xlu0 %577
    %v579 = vrcp.pop %v575
    %v580 = vrcp.pop %v578
    %v581 = vmul.f32 %v570, %v579
    %v582 = vmul.f32 %v572, %v580
    %v583 = vpack.c.bf16 %v581, %v581
    %v584 = vpack.c.bf16 %v582, %v582
    %v586 = vunpack.c.l.b16 %v393
    %v587 = vpack.c.b16 %v586, %v586
    %588 = vrot.lane.b32.xlu0 %v587, 112
    %v589 = vpop.permute.xlu0 %588
    %v591 = vsel %vm434, %v583, 0
    %v594 = vsel %vm462, %v589, 0
    %596 = vmatpush.bf16.msra.mxu0 0
    %597 = vmatpush.bf16.msra.mxu0 0
    %598 = vmatpush.bf16.msra.mxu0 0
    %599 = vmatpush.bf16.msra.mxu0 0
    %600 = vmatpush.bf16.msra.mxu0 0
    %601 = vmatpush.bf16.msra.mxu0 0
    %602 = vmatpush.bf16.msra.mxu0 0
    %603 = vmatpush.bf16.msra.mxu0 %v594
    %604 = vmatmul.bf16.gmra.mxu0 %v591
    %v605 = vpop.f32.mrf.mxu0
    %v606 = vadd.f32 0.0, %v605
    %v607 = vpop.f32.mrf.mxu0
    %608 = vdwg.mxu0
    %v610 = vunpack.c.l.b16 %v394
    %v611 = vpack.c.b16 %v610, %v610
    %612 = vrot.lane.b32.xlu0 %v611, 112
    %v613 = vpop.permute.xlu0 %612
    %v615 = vsel %vm434, %v584, 0
    %v618 = vsel %vm462, %v613, 0
    %620 = vmatpush.bf16.msra.mxu0 0
    %621 = vmatpush.bf16.msra.mxu0 0
    %622 = vmatpush.bf16.msra.mxu0 0
    %623 = vmatpush.bf16.msra.mxu0 0
    %624 = vmatpush.bf16.msra.mxu0 0
    %625 = vmatpush.bf16.msra.mxu0 0
    %626 = vmatpush.bf16.msra.mxu0 0
    %627 = vmatpush.bf16.msra.mxu0 %v618
    %628 = vmatmul.bf16.gmra.mxu0 %v615
    %v629 = vpop.f32.mrf.mxu0
    %v630 = vadd.f32 0.0, %v629
    %v631 = vpop.f32.mrf.mxu0
    %632 = vdwg.mxu0
    %v633 = vpack.c.bf16 %v606, %v606
    %v634 = vpack.c.bf16 %v630, %v630
    %637 = vrot.lane.b32.xlu0 %v633, 16
    %v638 = vpop.permute.xlu0 %637
    %639 = vrot.lane.b32.xlu0 %v634, 16
    %v640 = vpop.permute.xlu0 %639
    %vm643 = vcmask 257152
    %644 = vst.msk [vmem:[#allocation2] sm:$0xf] %vm643, %v638
    %645 = vst.msk [vmem:[#allocation2 + $0x4] sm:$0xf] %vm643, %v640
    %646 = vrot.lane.b32.xlu0 %v505, 96
    %v647 = vpop.permute.xlu0 %646
    %648 = vrot.lane.b32.xlu0 %v510, 96
    %v649 = vpop.permute.xlu0 %648
    %v651 = vsel %vm395, %v647, 0
    %v654 = vsel %vm395, %v649, 0
    %656 = vmatpush.bf16.xpose.msra.mxu0 0
    %657 = vmatpush.bf16.xpose.msra.mxu0 0
    %658 = vmatpush.bf16.xpose.msra.mxu0 0
    %659 = vmatpush.bf16.xpose.msra.mxu0 0
    %660 = vmatpush.bf16.xpose.msra.mxu0 0
    %661 = vmatpush.bf16.xpose.msra.mxu0 0
    %662 = vmatpush.bf16.xpose.msra.mxu0 0
    %663 = vmatpush.bf16.xpose.msra.mxu0 %v654
    %664 = vmatmul.bf16.gmra.mxu0 %v651
    %v665 = vpop.f32.mrf.mxu0
    %v666 = vadd.f32 0.0, %v665
    %v667 = vpop.f32.mrf.mxu0
    %668 = vdwg.mxu0
    %669 = vrot.lane.b32.xlu0 %v534, 96
    %v670 = vpop.permute.xlu0 %669
    %671 = vrot.lane.b32.xlu0 %v539, 96
    %v672 = vpop.permute.xlu0 %671
    %v674 = vsel %vm395, %v670, 0
    %v677 = vsel %vm395, %v672, 0
    %679 = vmatpush.bf16.xpose.msra.mxu0 0
    %680 = vmatpush.bf16.xpose.msra.mxu0 0
    %681 = vmatpush.bf16.xpose.msra.mxu0 0
    %682 = vmatpush.bf16.xpose.msra.mxu0 0
    %683 = vmatpush.bf16.xpose.msra.mxu0 0
    %684 = vmatpush.bf16.xpose.msra.mxu0 0
    %685 = vmatpush.bf16.xpose.msra.mxu0 0
    %686 = vmatpush.bf16.xpose.msra.mxu0 %v677
    %687 = vmatmul.bf16.gmra.mxu0 %v674
    %v688 = vpop.f32.mrf.mxu0
    %v689 = vadd.f32 0.0, %v688
    %v690 = vpop.f32.mrf.mxu0
    %691 = vdwg.mxu0
    %v692 = vsel %vm434, %v666, -inf
    %693 = vmax.xlane.f32.xlu0 %v692
    %v694 = vpop.xlane.xlu0 %693
    %v695 = vsel %vm434, %v689, -inf
    %696 = vmax.xlane.f32.xlu0 %v695
    %v697 = vpop.xlane.xlu0 %696
    %v698 = vsub.f32 %v666, %v694
    %v699 = vsub.f32 %v689, %v697
    %v700 = vmul.f32 %v698, 1.442695
    %v701 = vpow.pop %v700
    %v702 = vmul.f32 %v699, 1.442695
    %v703 = vpow.pop %v702
    %v704 = vsel %vm434, %v701, 0.0
    %705 = vadd.xlane.f32.xlu0 %v704
    %v706 = vpop.xlane.xlu0 %705
    %v707 = vsel %vm434, %v703, 0.0
    %708 = vadd.xlane.f32.xlu0 %v707
    %v709 = vpop.xlane.xlu0 %708
    %v710 = vrcp.pop %v706
    %v711 = vrcp.pop %v709
    %v712 = vmul.f32 %v701, %v710
    %v713 = vmul.f32 %v703, %v711
    %v714 = vpack.c.bf16 %v712, %v712
    %v715 = vpack.c.bf16 %v713, %v713
    %716 = vrot.lane.b32.xlu0 %v587, 96
    %v717 = vpop.permute.xlu0 %716
    %v719 = vsel %vm434, %v714, 0
    %v722 = vsel %vm462, %v717, 0
    %724 = vmatpush.bf16.msra.mxu0 0
    %725 = vmatpush.bf16.msra.mxu0 0
    %726 = vmatpush.bf16.msra.mxu0 0
    %727 = vmatpush.bf16.msra.mxu0 0
    %728 = vmatpush.bf16.msra.mxu0 0
    %729 = vmatpush.bf16.msra.mxu0 0
    %730 = vmatpush.bf16.msra.mxu0 0
    %731 = vmatpush.bf16.msra.mxu0 %v722
    %732 = vmatmul.bf16.gmra.mxu0 %v719
    %v733 = vpop.f32.mrf.mxu0
    %v734 = vadd.f32 0.0, %v733
    %v735 = vpop.f32.mrf.mxu0
    %736 = vdwg.mxu0
    %737 = vrot.lane.b32.xlu0 %v611, 96
    %v738 = vpop.permute.xlu0 %737
    %v740 = vsel %vm434, %v715, 0
    %v743 = vsel %vm462, %v738, 0
    %745 = vmatpush.bf16.msra.mxu0 0
    %746 = vmatpush.bf16.msra.mxu0 0
    %747 = vmatpush.bf16.msra.mxu0 0
    %748 = vmatpush.bf16.msra.mxu0 0
    %749 = vmatpush.bf16.msra.mxu0 0
    %750 = vmatpush.bf16.msra.mxu0 0
    %751 = vmatpush.bf16.msra.mxu0 0
    %752 = vmatpush.bf16.msra.mxu0 %v743
    %753 = vmatmul.bf16.gmra.mxu0 %v740
    %v754 = vpop.f32.mrf.mxu0
    %v755 = vadd.f32 0.0, %v754
    %v756 = vpop.f32.mrf.mxu0
    %757 = vdwg.mxu0
    %v758 = vpack.c.bf16 %v734, %v734
    %v759 = vpack.c.bf16 %v755, %v755
    %762 = vrot.lane.b32.xlu0 %v758, 32
    %v763 = vpop.permute.xlu0 %762
    %764 = vrot.lane.b32.xlu0 %v759, 32
    %v765 = vpop.permute.xlu0 %764
    %vm768 = vcmask 388352
    %769 = vst.msk [vmem:[#allocation2] sm:$0xf] %vm768, %v763
    %770 = vst.msk [vmem:[#allocation2 + $0x4] sm:$0xf] %vm768, %v765
    %771 = vrot.lane.b32.xlu0 %v505, 80
    %v772 = vpop.permute.xlu0 %771
    %773 = vrot.lane.b32.xlu0 %v510, 80
    %v774 = vpop.permute.xlu0 %773
    %v776 = vsel %vm395, %v772, 0
    %v779 = vsel %vm395, %v774, 0
    %781 = vmatpush.bf16.xpose.msra.mxu0 0
    %782 = vmatpush.bf16.xpose.msra.mxu0 0
    %783 = vmatpush.bf16.xpose.msra.mxu0 0
    %784 = vmatpush.bf16.xpose.msra.mxu0 0
    %785 = vmatpush.bf16.xpose.msra.mxu0 0
    %786 = vmatpush.bf16.xpose.msra.mxu0 0
    %787 = vmatpush.bf16.xpose.msra.mxu0 0
    %788 = vmatpush.bf16.xpose.msra.mxu0 %v779
    %789 = vmatmul.bf16.gmra.mxu0 %v776
    %v790 = vpop.f32.mrf.mxu0
    %v791 = vadd.f32 0.0, %v790
    %v792 = vpop.f32.mrf.mxu0
    %793 = vdwg.mxu0
    %794 = vrot.lane.b32.xlu0 %v534, 80
    %v795 = vpop.permute.xlu0 %794
    %796 = vrot.lane.b32.xlu0 %v539, 80
    %v797 = vpop.permute.xlu0 %796
    %v799 = vsel %vm395, %v795, 0
    %v802 = vsel %vm395, %v797, 0
    %804 = vmatpush.bf16.xpose.msra.mxu0 0
    %805 = vmatpush.bf16.xpose.msra.mxu0 0
    %806 = vmatpush.bf16.xpose.msra.mxu0 0
    %807 = vmatpush.bf16.xpose.msra.mxu0 0
    %808 = vmatpush.bf16.xpose.msra.mxu0 0
    %809 = vmatpush.bf16.xpose.msra.mxu0 0
    %810 = vmatpush.bf16.xpose.msra.mxu0 0
    %811 = vmatpush.bf16.xpose.msra.mxu0 %v802
    %812 = vmatmul.bf16.gmra.mxu0 %v799
    %v813 = vpop.f32.mrf.mxu0
    %v814 = vadd.f32 0.0, %v813
    %v815 = vpop.f32.mrf.mxu0
    %816 = vdwg.mxu0
    %v817 = vsel %vm434, %v791, -inf
    %818 = vmax.xlane.f32.xlu0 %v817
    %v819 = vpop.xlane.xlu0 %818
    %v820 = vsel %vm434, %v814, -inf
    %821 = vmax.xlane.f32.xlu0 %v820
    %v822 = vpop.xlane.xlu0 %821
    %v823 = vsub.f32 %v791, %v819
    %v824 = vsub.f32 %v814, %v822
    %v825 = vmul.f32 %v823, 1.442695
    %v826 = vpow.pop %v825
    %v827 = vmul.f32 %v824, 1.442695
    %v828 = vpow.pop %v827
    %v829 = vsel %vm434, %v826, 0.0
    %830 = vadd.xlane.f32.xlu0 %v829
    %v831 = vpop.xlane.xlu0 %830
    %v832 = vsel %vm434, %v828, 0.0
    %833 = vadd.xlane.f32.xlu0 %v832
    %v834 = vpop.xlane.xlu0 %833
    %v835 = vrcp.pop %v831
    %v836 = vrcp.pop %v834
    %v837 = vmul.f32 %v826, %v835
    %v838 = vmul.f32 %v828, %v836
    %v839 = vpack.c.bf16 %v837, %v837
    %v840 = vpack.c.bf16 %v838, %v838
    %841 = vrot.lane.b32.xlu0 %v587, 80
    %v842 = vpop.permute.xlu0 %841
    %v844 = vsel %vm434, %v839, 0
    %v847 = vsel %vm462, %v842, 0
    %849 = vmatpush.bf16.msra.mxu0 0
    %850 = vmatpush.bf16.msra.mxu0 0
    %851 = vmatpush.bf16.msra.mxu0 0
    %852 = vmatpush.bf16.msra.mxu0 0
    %853 = vmatpush.bf16.msra.mxu0 0
    %854 = vmatpush.bf16.msra.mxu0 0
    %855 = vmatpush.bf16.msra.mxu0 0
    %856 = vmatpush.bf16.msra.mxu0 %v847
    %857 = vmatmul.bf16.gmra.mxu0 %v844
    %v858 = vpop.f32.mrf.mxu0
    %v859 = vadd.f32 0.0, %v858
    %v860 = vpop.f32.mrf.mxu0
    %861 = vdwg.mxu0
    %862 = vrot.lane.b32.xlu0 %v611, 80
    %v863 = vpop.permute.xlu0 %862
    %v865 = vsel %vm434, %v840, 0
    %v868 = vsel %vm462, %v863, 0
    %870 = vmatpush.bf16.msra.mxu0 0
    %871 = vmatpush.bf16.msra.mxu0 0
    %872 = vmatpush.bf16.msra.mxu0 0
    %873 = vmatpush.bf16.msra.mxu0 0
    %874 = vmatpush.bf16.msra.mxu0 0
    %875 = vmatpush.bf16.msra.mxu0 0
    %876 = vmatpush.bf16.msra.mxu0 0
    %877 = vmatpush.bf16.msra.mxu0 %v868
    %878 = vmatmul.bf16.gmra.mxu0 %v865
    %v879 = vpop.f32.mrf.mxu0
    %v880 = vadd.f32 0.0, %v879
    %v881 = vpop.f32.mrf.mxu0
    %882 = vdwg.mxu0
    %v883 = vpack.c.bf16 %v859, %v859
    %v884 = vpack.c.bf16 %v880, %v880
    %887 = vrot.lane.b32.xlu0 %v883, 48
    %v888 = vpop.permute.xlu0 %887
    %889 = vrot.lane.b32.xlu0 %v884, 48
    %v890 = vpop.permute.xlu0 %889
    %vm893 = vcmask 519552
    %894 = vst.msk [vmem:[#allocation2] sm:$0xf] %vm893, %v888
    %895 = vst.msk [vmem:[#allocation2 + $0x4] sm:$0xf] %vm893, %v890
    %896 = vrot.lane.b32.xlu0 %v505, 64
    %v897 = vpop.permute.xlu0 %896
    %898 = vrot.lane.b32.xlu0 %v510, 64
    %v899 = vpop.permute.xlu0 %898
    %v901 = vsel %vm395, %v897, 0
    %v904 = vsel %vm395, %v899, 0
    %906 = vmatpush.bf16.xpose.msra.mxu0 0
    %907 = vmatpush.bf16.xpose.msra.mxu0 0
    %908 = vmatpush.bf16.xpose.msra.mxu0 0
    %909 = vmatpush.bf16.xpose.msra.mxu0 0
    %910 = vmatpush.bf16.xpose.msra.mxu0 0
    %911 = vmatpush.bf16.xpose.msra.mxu0 0
    %912 = vmatpush.bf16.xpose.msra.mxu0 0
    %913 = vmatpush.bf16.xpose.msra.mxu0 %v904
    %914 = vmatmul.bf16.gmra.mxu0 %v901
    %v915 = vpop.f32.mrf.mxu0
    %v916 = vadd.f32 0.0, %v915
    %v917 = vpop.f32.mrf.mxu0
    %918 = vdwg.mxu0
    %919 = vrot.lane.b32.xlu0 %v534, 64
    %v920 = vpop.permute.xlu0 %919
    %921 = vrot.lane.b32.xlu0 %v539, 64
    %v922 = vpop.permute.xlu0 %921
    %v924 = vsel %vm395, %v920, 0
    %v927 = vsel %vm395, %v922, 0
    %929 = vmatpush.bf16.xpose.msra.mxu0 0
    %930 = vmatpush.bf16.xpose.msra.mxu0 0
    %931 = vmatpush.bf16.xpose.msra.mxu0 0
    %932 = vmatpush.bf16.xpose.msra.mxu0 0
    %933 = vmatpush.bf16.xpose.msra.mxu0 0
    %934 = vmatpush.bf16.xpose.msra.mxu0 0
    %935 = vmatpush.bf16.xpose.msra.mxu0 0
    %936 = vmatpush.bf16.xpose.msra.mxu0 %v927
    %937 = vmatmul.bf16.gmra.mxu0 %v924
    %v938 = vpop.f32.mrf.mxu0
    %v939 = vadd.f32 0.0, %v938
    %v940 = vpop.f32.mrf.mxu0
    %941 = vdwg.mxu0
    %v942 = vsel %vm434, %v916, -inf
    %943 = vmax.xlane.f32.xlu0 %v942
    %v944 = vpop.xlane.xlu0 %943
    %v945 = vsel %vm434, %v939, -inf
    %946 = vmax.xlane.f32.xlu0 %v945
    %v947 = vpop.xlane.xlu0 %946
    %v948 = vsub.f32 %v916, %v944
    %v949 = vsub.f32 %v939, %v947
    %v950 = vmul.f32 %v948, 1.442695
    %v951 = vpow.pop %v950
    %v952 = vmul.f32 %v949, 1.442695
    %v953 = vpow.pop %v952
    %v954 = vsel %vm434, %v951, 0.0
    %955 = vadd.xlane.f32.xlu0 %v954
    %v956 = vpop.xlane.xlu0 %955
    %v957 = vsel %vm434, %v953, 0.0
    %958 = vadd.xlane.f32.xlu0 %v957
    %v959 = vpop.xlane.xlu0 %958
    %v960 = vrcp.pop %v956
    %v961 = vrcp.pop %v959
    %v962 = vmul.f32 %v951, %v960
    %v963 = vmul.f32 %v953, %v961
    %v964 = vpack.c.bf16 %v962, %v962
    %v965 = vpack.c.bf16 %v963, %v963
    %966 = vrot.lane.b32.xlu0 %v587, 64
    %v967 = vpop.permute.xlu0 %966
    %v969 = vsel %vm434, %v964, 0
    %v972 = vsel %vm462, %v967, 0
    %974 = vmatpush.bf16.msra.mxu0 0
    %975 = vmatpush.bf16.msra.mxu0 0
    %976 = vmatpush.bf16.msra.mxu0 0
    %977 = vmatpush.bf16.msra.mxu0 0
    %978 = vmatpush.bf16.msra.mxu0 0
    %979 = vmatpush.bf16.msra.mxu0 0
    %980 = vmatpush.bf16.msra.mxu0 0
    %981 = vmatpush.bf16.msra.mxu0 %v972
    %982 = vmatmul.bf16.gmra.mxu0 %v969
    %v983 = vpop.f32.mrf.mxu0
    %v984 = vadd.f32 0.0, %v983
    %v985 = vpop.f32.mrf.mxu0
    %986 = vdwg.mxu0
    %987 = vrot.lane.b32.xlu0 %v611, 64
    %v988 = vpop.permute.xlu0 %987
    %v990 = vsel %vm434, %v965, 0
    %v993 = vsel %vm462, %v988, 0
    %995 = vmatpush.bf16.msra.mxu0 0
    %996 = vmatpush.bf16.msra.mxu0 0
    %997 = vmatpush.bf16.msra.mxu0 0
    %998 = vmatpush.bf16.msra.mxu0 0
    %999 = vmatpush.bf16.msra.mxu0 0
    %1000 = vmatpush.bf16.msra.mxu0 0
    %1001 = vmatpush.bf16.msra.mxu0 0
    %1002 = vmatpush.bf16.msra.mxu0 %v993
    %1003 = vmatmul.bf16.gmra.mxu0 %v990
    %v1004 = vpop.f32.mrf.mxu0
    %v1005 = vadd.f32 0.0, %v1004
    %v1006 = vpop.f32.mrf.mxu0
    %1007 = vdwg.mxu0
    %v1008 = vpack.c.bf16 %v984, %v984
    %v1009 = vpack.c.bf16 %v1005, %v1005
    %1012 = vrot.lane.b32.xlu0 %v1008, 64
    %v1013 = vpop.permute.xlu0 %1012
    %1014 = vrot.lane.b32.xlu0 %v1009, 64
    %v1015 = vpop.permute.xlu0 %1014
    %vm1018 = vcmask 650752
    %1019 = vst.msk [vmem:[#allocation2] sm:$0xf] %vm1018, %v1013
    %1020 = vst.msk [vmem:[#allocation2 + $0x4] sm:$0xf] %vm1018, %v1015
    %1021 = vrot.lane.b32.xlu0 %v505, 48
    %v1022 = vpop.permute.xlu0 %1021
    %1023 = vrot.lane.b32.xlu0 %v510, 48
    %v1024 = vpop.permute.xlu0 %1023
    %v1026 = vsel %vm395, %v1022, 0
    %v1029 = vsel %vm395, %v1024, 0
    %1031 = vmatpush.bf16.xpose.msra.mxu0 0
    %1032 = vmatpush.bf16.xpose.msra.mxu0 0
    %1033 = vmatpush.bf16.xpose.msra.mxu0 0
    %1034 = vmatpush.bf16.xpose.msra.mxu0 0
    %1035 = vmatpush.bf16.xpose.msra.mxu0 0
    %1036 = vmatpush.bf16.xpose.msra.mxu0 0
    %1037 = vmatpush.bf16.xpose.msra.mxu0 0
    %1038 = vmatpush.bf16.xpose.msra.mxu0 %v1029
    %1039 = vmatmul.bf16.gmra.mxu0 %v1026
    %v1040 = vpop.f32.mrf.mxu0
    %v1041 = vadd.f32 0.0, %v1040
    %v1042 = vpop.f32.mrf.mxu0
    %1043 = vdwg.mxu0
    %1044 = vrot.lane.b32.xlu0 %v534, 48
    %v1045 = vpop.permute.xlu0 %1044
    %1046 = vrot.lane.b32.xlu0 %v539, 48
    %v1047 = vpop.permute.xlu0 %1046
    %v1049 = vsel %vm395, %v1045, 0
    %v1052 = vsel %vm395, %v1047, 0
    %1054 = vmatpush.bf16.xpose.msra.mxu0 0
    %1055 = vmatpush.bf16.xpose.msra.mxu0 0
    %1056 = vmatpush.bf16.xpose.msra.mxu0 0
    %1057 = vmatpush.bf16.xpose.msra.mxu0 0
    %1058 = vmatpush.bf16.xpose.msra.mxu0 0
    %1059 = vmatpush.bf16.xpose.msra.mxu0 0
    %1060 = vmatpush.bf16.xpose.msra.mxu0 0
    %1061 = vmatpush.bf16.xpose.msra.mxu0 %v1052
    %1062 = vmatmul.bf16.gmra.mxu0 %v1049
    %v1063 = vpop.f32.mrf.mxu0
    %v1064 = vadd.f32 0.0, %v1063
    %v1065 = vpop.f32.mrf.mxu0
    %1066 = vdwg.mxu0
    %v1067 = vsel %vm434, %v1041, -inf
    %1068 = vmax.xlane.f32.xlu0 %v1067
    %v1069 = vpop.xlane.xlu0 %1068
    %v1070 = vsel %vm434, %v1064, -inf
    %1071 = vmax.xlane.f32.xlu0 %v1070
    %v1072 = vpop.xlane.xlu0 %1071
    %v1073 = vsub.f32 %v1041, %v1069
    %v1074 = vsub.f32 %v1064, %v1072
    %v1075 = vmul.f32 %v1073, 1.442695
    %v1076 = vpow.pop %v1075
    %v1077 = vmul.f32 %v1074, 1.442695
    %v1078 = vpow.pop %v1077
    %v1079 = vsel %vm434, %v1076, 0.0
    %1080 = vadd.xlane.f32.xlu0 %v1079
    %v1081 = vpop.xlane.xlu0 %1080
    %v1082 = vsel %vm434, %v1078, 0.0
    %1083 = vadd.xlane.f32.xlu0 %v1082
    %v1084 = vpop.xlane.xlu0 %1083
    %v1085 = vrcp.pop %v1081
    %v1086 = vrcp.pop %v1084
    %v1087 = vmul.f32 %v1076, %v1085
    %v1088 = vmul.f32 %v1078, %v1086
    %v1089 = vpack.c.bf16 %v1087, %v1087
    %v1090 = vpack.c.bf16 %v1088, %v1088
    %1091 = vrot.lane.b32.xlu0 %v587, 48
    %v1092 = vpop.permute.xlu0 %1091
    %v1094 = vsel %vm434, %v1089, 0
    %v1097 = vsel %vm462, %v1092, 0
    %1099 = vmatpush.bf16.msra.mxu0 0
    %1100 = vmatpush.bf16.msra.mxu0 0
    %1101 = vmatpush.bf16.msra.mxu0 0
    %1102 = vmatpush.bf16.msra.mxu0 0
    %1103 = vmatpush.bf16.msra.mxu0 0
    %1104 = vmatpush.bf16.msra.mxu0 0
    %1105 = vmatpush.bf16.msra.mxu0 0
    %1106 = vmatpush.bf16.msra.mxu0 %v1097
    %1107 = vmatmul.bf16.gmra.mxu0 %v1094
    %v1108 = vpop.f32.mrf.mxu0
    %v1109 = vadd.f32 0.0, %v1108
    %v1110 = vpop.f32.mrf.mxu0
    %1111 = vdwg.mxu0
    %1112 = vrot.lane.b32.xlu0 %v611, 48
    %v1113 = vpop.permute.xlu0 %1112
    %v1115 = vsel %vm434, %v1090, 0
    %v1118 = vsel %vm462, %v1113, 0
    %1120 = vmatpush.bf16.msra.mxu0 0
    %1121 = vmatpush.bf16.msra.mxu0 0
    %1122 = vmatpush.bf16.msra.mxu0 0
    %1123 = vmatpush.bf16.msra.mxu0 0
    %1124 = vmatpush.bf16.msra.mxu0 0
    %1125 = vmatpush.bf16.msra.mxu0 0
    %1126 = vmatpush.bf16.msra.mxu0 0
    %1127 = vmatpush.bf16.msra.mxu0 %v1118
    %1128 = vmatmul.bf16.gmra.mxu0 %v1115
    %v1129 = vpop.f32.mrf.mxu0
    %v1130 = vadd.f32 0.0, %v1129
    %v1131 = vpop.f32.mrf.mxu0
    %1132 = vdwg.mxu0
    %v1133 = vpack.c.bf16 %v1109, %v1109
    %v1134 = vpack.c.bf16 %v1130, %v1130
    %1137 = vrot.lane.b32.xlu0 %v1133, 80
    %v1138 = vpop.permute.xlu0 %1137
    %1139 = vrot.lane.b32.xlu0 %v1134, 80
    %v1140 = vpop.permute.xlu0 %1139
    %vm1143 = vcmask 781952
    %1144 = vst.msk [vmem:[#allocation2] sm:$0xf] %vm1143, %v1138
    %1145 = vst.msk [vmem:[#allocation2 + $0x4] sm:$0xf] %vm1143, %v1140
    %1146 = vrot.lane.b32.xlu0 %v505, 32
    %v1147 = vpop.permute.xlu0 %1146
    %1148 = vrot.lane.b32.xlu0 %v510, 32
    %v1149 = vpop.permute.xlu0 %1148
    %v1151 = vsel %vm395, %v1147, 0
    %v1154 = vsel %vm395, %v1149, 0
    %1156 = vmatpush.bf16.xpose.msra.mxu0 0
    %1157 = vmatpush.bf16.xpose.msra.mxu0 0
    %1158 = vmatpush.bf16.xpose.msra.mxu0 0
    %1159 = vmatpush.bf16.xpose.msra.mxu0 0
    %1160 = vmatpush.bf16.xpose.msra.mxu0 0
    %1161 = vmatpush.bf16.xpose.msra.mxu0 0
    %1162 = vmatpush.bf16.xpose.msra.mxu0 0
    %1163 = vmatpush.bf16.xpose.msra.mxu0 %v1154
    %1164 = vmatmul.bf16.gmra.mxu0 %v1151
    %v1165 = vpop.f32.mrf.mxu0
    %v1166 = vadd.f32 0.0, %v1165
    %v1167 = vpop.f32.mrf.mxu0
    %1168 = vdwg.mxu0
    %1169 = vrot.lane.b32.xlu0 %v534, 32
    %v1170 = vpop.permute.xlu0 %1169
    %1171 = vrot.lane.b32.xlu0 %v539, 32
    %v1172 = vpop.permute.xlu0 %1171
    %v1174 = vsel %vm395, %v1170, 0
    %v1177 = vsel %vm395, %v1172, 0
    %1179 = vmatpush.bf16.xpose.msra.mxu0 0
    %1180 = vmatpush.bf16.xpose.msra.mxu0 0
    %1181 = vmatpush.bf16.xpose.msra.mxu0 0
    %1182 = vmatpush.bf16.xpose.msra.mxu0 0
    %1183 = vmatpush.bf16.xpose.msra.mxu0 0
    %1184 = vmatpush.bf16.xpose.msra.mxu0 0
    %1185 = vmatpush.bf16.xpose.msra.mxu0 0
    %1186 = vmatpush.bf16.xpose.msra.mxu0 %v1177
    %1187 = vmatmul.bf16.gmra.mxu0 %v1174
    %v1188 = vpop.f32.mrf.mxu0
    %v1189 = vadd.f32 0.0, %v1188
    %v1190 = vpop.f32.mrf.mxu0
    %1191 = vdwg.mxu0
    %v1192 = vsel %vm434, %v1166, -inf
    %1193 = vmax.xlane.f32.xlu0 %v1192
    %v1194 = vpop.xlane.xlu0 %1193
    %v1195 = vsel %vm434, %v1189, -inf
    %1196 = vmax.xlane.f32.xlu0 %v1195
    %v1197 = vpop.xlane.xlu0 %1196
    %v1198 = vsub.f32 %v1166, %v1194
    %v1199 = vsub.f32 %v1189, %v1197
    %v1200 = vmul.f32 %v1198, 1.442695
    %v1201 = vpow.pop %v1200
    %v1202 = vmul.f32 %v1199, 1.442695
    %v1203 = vpow.pop %v1202
    %v1204 = vsel %vm434, %v1201, 0.0
    %1205 = vadd.xlane.f32.xlu0 %v1204
    %v1206 = vpop.xlane.xlu0 %1205
    %v1207 = vsel %vm434, %v1203, 0.0
    %1208 = vadd.xlane.f32.xlu0 %v1207
    %v1209 = vpop.xlane.xlu0 %1208
    %v1210 = vrcp.pop %v1206
    %v1211 = vrcp.pop %v1209
    %v1212 = vmul.f32 %v1201, %v1210
    %v1213 = vmul.f32 %v1203, %v1211
    %v1214 = vpack.c.bf16 %v1212, %v1212
    %v1215 = vpack.c.bf16 %v1213, %v1213
    %1216 = vrot.lane.b32.xlu0 %v587, 32
    %v1217 = vpop.permute.xlu0 %1216
    %v1219 = vsel %vm434, %v1214, 0
    %v1222 = vsel %vm462, %v1217, 0
    %1224 = vmatpush.bf16.msra.mxu0 0
    %1225 = vmatpush.bf16.msra.mxu0 0
    %1226 = vmatpush.bf16.msra.mxu0 0
    %1227 = vmatpush.bf16.msra.mxu0 0
    %1228 = vmatpush.bf16.msra.mxu0 0
    %1229 = vmatpush.bf16.msra.mxu0 0
    %1230 = vmatpush.bf16.msra.mxu0 0
    %1231 = vmatpush.bf16.msra.mxu0 %v1222
    %1232 = vmatmul.bf16.gmra.mxu0 %v1219
    %v1233 = vpop.f32.mrf.mxu0
    %v1234 = vadd.f32 0.0, %v1233
    %v1235 = vpop.f32.mrf.mxu0
    %1236 = vdwg.mxu0
    %1237 = vrot.lane.b32.xlu0 %v611, 32
    %v1238 = vpop.permute.xlu0 %1237
    %v1240 = vsel %vm434, %v1215, 0
    %v1243 = vsel %vm462, %v1238, 0
    %1245 = vmatpush.bf16.msra.mxu0 0
    %1246 = vmatpush.bf16.msra.mxu0 0
    %1247 = vmatpush.bf16.msra.mxu0 0
    %1248 = vmatpush.bf16.msra.mxu0 0
    %1249 = vmatpush.bf16.msra.mxu0 0
    %1250 = vmatpush.bf16.msra.mxu0 0
    %1251 = vmatpush.bf16.msra.mxu0 0
    %1252 = vmatpush.bf16.msra.mxu0 %v1243
    %1253 = vmatmul.bf16.gmra.mxu0 %v1240
    %v1254 = vpop.f32.mrf.mxu0
    %v1255 = vadd.f32 0.0, %v1254
    %v1256 = vpop.f32.mrf.mxu0
    %1257 = vdwg.mxu0
    %v1258 = vpack.c.bf16 %v1234, %v1234
    %v1259 = vpack.c.bf16 %v1255, %v1255
    %1262 = vrot.lane.b32.xlu0 %v1258, 96
    %v1263 = vpop.permute.xlu0 %1262
    %1264 = vrot.lane.b32.xlu0 %v1259, 96
    %v1265 = vpop.permute.xlu0 %1264
    %vm1268 = vcmask 913152
    %1269 = vst.msk [vmem:[#allocation2] sm:$0xf] %vm1268, %v1263
    %1270 = vst.msk [vmem:[#allocation2 + $0x4] sm:$0xf] %vm1268, %v1265
    %1271 = vrot.lane.b32.xlu0 %v505, 16
    %v1272 = vpop.permute.xlu0 %1271
    %1273 = vrot.lane.b32.xlu0 %v510, 16
    %v1274 = vpop.permute.xlu0 %1273
    %v1276 = vsel %vm395, %v1272, 0
    %v1279 = vsel %vm395, %v1274, 0
    %1281 = vmatpush.bf16.xpose.msra.mxu0 0
    %1282 = vmatpush.bf16.xpose.msra.mxu0 0
    %1283 = vmatpush.bf16.xpose.msra.mxu0 0
    %1284 = vmatpush.bf16.xpose.msra.mxu0 0
    %1285 = vmatpush.bf16.xpose.msra.mxu0 0
    %1286 = vmatpush.bf16.xpose.msra.mxu0 0
    %1287 = vmatpush.bf16.xpose.msra.mxu0 0
    %1288 = vmatpush.bf16.xpose.msra.mxu0 %v1279
    %1289 = vmatmul.bf16.gmra.mxu0 %v1276
    %v1290 = vpop.f32.mrf.mxu0
    %v1291 = vadd.f32 0.0, %v1290
    %v1292 = vpop.f32.mrf.mxu0
    %1293 = vdwg.mxu0
    %1294 = vrot.lane.b32.xlu0 %v534, 16
    %v1295 = vpop.permute.xlu0 %1294
    %1296 = vrot.lane.b32.xlu0 %v539, 16
    %v1297 = vpop.permute.xlu0 %1296
    %v1299 = vsel %vm395, %v1295, 0
    %v1302 = vsel %vm395, %v1297, 0
    %1304 = vmatpush.bf16.xpose.msra.mxu0 0
    %1305 = vmatpush.bf16.xpose.msra.mxu0 0
    %1306 = vmatpush.bf16.xpose.msra.mxu0 0
    %1307 = vmatpush.bf16.xpose.msra.mxu0 0
    %1308 = vmatpush.bf16.xpose.msra.mxu0 0
    %1309 = vmatpush.bf16.xpose.msra.mxu0 0
    %1310 = vmatpush.bf16.xpose.msra.mxu0 0
    %1311 = vmatpush.bf16.xpose.msra.mxu0 %v1302
    %1312 = vmatmul.bf16.gmra.mxu0 %v1299
    %v1313 = vpop.f32.mrf.mxu0
    %v1314 = vadd.f32 0.0, %v1313
    %v1315 = vpop.f32.mrf.mxu0
    %1316 = vdwg.mxu0
    %v1317 = vsel %vm434, %v1291, -inf
    %1318 = vmax.xlane.f32.xlu0 %v1317
    %v1319 = vpop.xlane.xlu0 %1318
    %v1320 = vsel %vm434, %v1314, -inf
    %1321 = vmax.xlane.f32.xlu0 %v1320
    %v1322 = vpop.xlane.xlu0 %1321
    %v1323 = vsub.f32 %v1291, %v1319
    %v1324 = vsub.f32 %v1314, %v1322
    %v1325 = vmul.f32 %v1323, 1.442695
    %v1326 = vpow.pop %v1325
    %v1327 = vmul.f32 %v1324, 1.442695
    %v1328 = vpow.pop %v1327
    %v1329 = vsel %vm434, %v1326, 0.0
    %1330 = vadd.xlane.f32.xlu0 %v1329
    %v1331 = vpop.xlane.xlu0 %1330
    %v1332 = vsel %vm434, %v1328, 0.0
    %1333 = vadd.xlane.f32.xlu0 %v1332
    %v1334 = vpop.xlane.xlu0 %1333
    %v1335 = vrcp.pop %v1331
    %v1336 = vrcp.pop %v1334
    %v1337 = vmul.f32 %v1326, %v1335
    %v1338 = vmul.f32 %v1328, %v1336
    %v1339 = vpack.c.bf16 %v1337, %v1337
    %v1340 = vpack.c.bf16 %v1338, %v1338
    %1341 = vrot.lane.b32.xlu0 %v587, 16
    %v1342 = vpop.permute.xlu0 %1341
    %v1344 = vsel %vm434, %v1339, 0
    %v1347 = vsel %vm462, %v1342, 0
    %1349 = vmatpush.bf16.msra.mxu0 0
    %1350 = vmatpush.bf16.msra.mxu0 0
    %1351 = vmatpush.bf16.msra.mxu0 0
    %1352 = vmatpush.bf16.msra.mxu0 0
    %1353 = vmatpush.bf16.msra.mxu0 0
    %1354 = vmatpush.bf16.msra.mxu0 0
    %1355 = vmatpush.bf16.msra.mxu0 0
    %1356 = vmatpush.bf16.msra.mxu0 %v1347
    %1357 = vmatmul.bf16.gmra.mxu0 %v1344
    %v1358 = vpop.f32.mrf.mxu0
    %v1359 = vadd.f32 0.0, %v1358
    %v1360 = vpop.f32.mrf.mxu0
    %1361 = vdwg.mxu0
    %1362 = vrot.lane.b32.xlu0 %v611, 16
    %v1363 = vpop.permute.xlu0 %1362
    %v1365 = vsel %vm434, %v1340, 0
    %v1368 = vsel %vm462, %v1363, 0
    %1370 = vmatpush.bf16.msra.mxu0 0
    %1371 = vmatpush.bf16.msra.mxu0 0
    %1372 = vmatpush.bf16.msra.mxu0 0
    %1373 = vmatpush.bf16.msra.mxu0 0
    %1374 = vmatpush.bf16.msra.mxu0 0
    %1375 = vmatpush.bf16.msra.mxu0 0
    %1376 = vmatpush.bf16.msra.mxu0 0
    %1377 = vmatpush.bf16.msra.mxu0 %v1368
    %1378 = vmatmul.bf16.gmra.mxu0 %v1365
    %v1379 = vpop.f32.mrf.mxu0
    %v1380 = vadd.f32 0.0, %v1379
    %v1381 = vpop.f32.mrf.mxu0
    %1382 = vdwg.mxu0
    %v1383 = vpack.c.bf16 %v1359, %v1359
    %v1384 = vpack.c.bf16 %v1380, %v1380
    %1387 = vrot.lane.b32.xlu0 %v1383, 112
    %v1388 = vpop.permute.xlu0 %1387
    %1389 = vrot.lane.b32.xlu0 %v1384, 112
    %v1390 = vpop.permute.xlu0 %1389
    %vm1393 = vcmask 1044352
    %1394 = vst.msk [vmem:[#allocation2] sm:$0xf] %vm1393, %v1388
    %1395 = vst.msk [vmem:[#allocation2 + $0x4] sm:$0xf] %vm1393, %v1390
    %v1396 = vld [vmem:[#allocation2] sm:$0xf]
    %v1397 = vld [vmem:[#allocation2 + $0x4] sm:$0xf]
    %v1398 = vld [vmem:[#allocation11] sm:$0xf]
    %v1399 = vld [vmem:[#allocation11 + $0x4] sm:$0xf]
    %v1400 = vld [vmem:[#allocation11 + $0x8] sm:$0xf]
    %v1401 = vld [vmem:[#allocation11 + $0xc] sm:$0xf]
    %v1402 = vld [vmem:[#allocation11 + $0x10] sm:$0xf]
    %v1403 = vld [vmem:[#allocation11 + $0x14] sm:$0xf]
    %v1404 = vld [vmem:[#allocation11 + $0x18] sm:$0xf]
    %v1405 = vld [vmem:[#allocation11 + $0x1c] sm:$0xf]
    %v1406 = vld [vmem:[#allocation11 + $0x20] sm:$0xf]
    %v1407 = vld [vmem:[#allocation11 + $0x24] sm:$0xf]
    %v1408 = vld [vmem:[#allocation11 + $0x28] sm:$0xf]
    %v1409 = vld [vmem:[#allocation11 + $0x2c] sm:$0xf]
    %v1410 = vld [vmem:[#allocation11 + $0x30] sm:$0xf]
    %v1411 = vld [vmem:[#allocation11 + $0x34] sm:$0xf]
    %v1412 = vld [vmem:[#allocation11 + $0x38] sm:$0xf]
    %v1413 = vld [vmem:[#allocation11 + $0x3c] sm:$0xf]
    %v1414 = vld [vmem:[%s5] sm:$0x1]
    %v1416 = vperm.slane %v1414, 0
    %v1420 = vunpack.c.l.b16 %v1396
    %v1421 = vunpack.c.l.b16 %v1397
    %v1422 = vpack.c.b16 %v1421, %v1420
    %v1440 = vunpack.c.l.b16 %v1398
    %v1441 = vunpack.c.l.b16 %v1399
    %v1442 = vunpack.c.l.b16 %v1400
    %v1443 = vunpack.c.l.b16 %v1401
    %v1444 = vunpack.c.l.b16 %v1402
    %v1445 = vunpack.c.l.b16 %v1403
    %v1446 = vunpack.c.l.b16 %v1404
    %v1447 = vunpack.c.l.b16 %v1405
    %v1448 = vunpack.c.l.b16 %v1406
    %v1449 = vunpack.c.l.b16 %v1407
    %v1450 = vunpack.c.l.b16 %v1408
    %v1451 = vunpack.c.l.b16 %v1409
    %v1452 = vunpack.c.l.b16 %v1410
    %v1453 = vunpack.c.l.b16 %v1411
    %v1454 = vunpack.c.l.b16 %v1412
    %v1455 = vunpack.c.l.b16 %v1413
    %v1456 = vpack.c.b16 %v1441, %v1440
    %v1457 = vpack.c.b16 %v1443, %v1442
    %v1458 = vpack.c.b16 %v1445, %v1444
    %v1459 = vpack.c.b16 %v1447, %v1446
    %v1460 = vpack.c.b16 %v1449, %v1448
    %v1461 = vpack.c.b16 %v1451, %v1450
    %v1462 = vpack.c.b16 %v1453, %v1452
    %v1463 = vpack.c.b16 %v1455, %v1454
    %1472 = vmatpush.bf16.msra.mxu0 %v1463
    %1473 = vmatpush.bf16.msra.mxu0 %v1462
    %1474 = vmatpush.bf16.msra.mxu0 %v1461
    %1475 = vmatpush.bf16.msra.mxu0 %v1460
    %1476 = vmatpush.bf16.msra.mxu0 %v1459
    %1477 = vmatpush.bf16.msra.mxu0 %v1458
    %1478 = vmatpush.bf16.msra.mxu0 %v1457
    %1479 = vmatpush.bf16.msra.mxu0 %v1456
    %1480 = vmatmul.bf16.gmra.mxu0 %v1422
    %v1481 = vpop.f32.mrf.mxu0
    %v1482 = vadd.f32 %v1416, %v1481
    %v1483 = vpop.f32.mrf.mxu0
    %v1484 = vadd.f32 %v1416, %v1483
    %1485 = vdwg.mxu0
    %v1486 = vadd.f32 %v172, %v1482
    %v1487 = vadd.f32 %v173, %v1484
    %1488 = vadd.xlane.f32.xlu0 %v1486
    %v1489 = vpop.xlane.xlu0 %1488
    %1490 = vadd.xlane.f32.xlu0 %v1487
    %v1491 = vpop.xlane.xlu0 %1490
    %v1492 = vrcp.pop 128.0
    %v1493 = vmul.f32 128.0, %v1492
    %v1494 = vsub.f32 1.0, %v1493
    %v1495 = vmul.f32 %v1492, %v1494
    %v1496 = vadd.f32 %v1492, %v1495
    %vm1497 = vweird.f32 %v1492
    %v1498 = vsel %vm1497, %v1492, %v1496
    %v1499 = vmul.f32 %v1489, %v1498
    %v1500 = vmul.f32 %v1491, %v1498
    %v1501 = vsub.f32 %v1486, %v1499
    %v1502 = vsub.f32 %v1487, %v1500
    %v1503 = vmul.f32 %v1501, %v1501
    %v1504 = vmul.f32 %v1502, %v1502
    %1505 = vadd.xlane.f32.xlu0 %v1503
    %v1506 = vpop.xlane.xlu0 %1505
    %1507 = vadd.xlane.f32.xlu0 %v1504
    %v1508 = vpop.xlane.xlu0 %1507
    %v1509 = vmul.f32 %v1506, %v1498
    %v1510 = vmul.f32 %v1508, %v1498
    %v1511 = vadd.f32 %v1509, 1e-05
    %v1512 = vadd.f32 %v1510, 1e-05
    %v1513 = vrsqrt.pop %v1511
    %v1514 = vmul.f32 %v1513, %v1511
    %v1515 = vmul.f32 %v1514, %v1513
    %v1516 = vmul.f32 0.5, %v1515
    %v1517 = vsub.f32 1.5, %v1516
    %v1518 = vmul.f32 %v1513, %v1517
    %vm1519 = vweird.f32 %v1511
    %vm1520 = vweird.f32 %v1513
    %vm1521 = vmor %vm1519, %vm1520
    %v1522 = vsel %vm1521, %v1513, %v1518
    %v1523 = vrsqrt.pop %v1512
    %v1524 = vmul.f32 %v1523, %v1512
    %v1525 = vmul.f32 %v1524, %v1523
    %v1526 = vmul.f32 0.5, %v1525
    %v1527 = vsub.f32 1.5, %v1526
    %v1528 = vmul.f32 %v1523, %v1527
    %vm1529 = vweird.f32 %v1512
    %vm1530 = vweird.f32 %v1523
    %vm1531 = vmor %vm1529, %vm1530
    %v1532 = vsel %vm1531, %v1523, %v1528
    %v1533 = vmul.f32 %v1501, %v1522
    %v1534 = vmul.f32 %v1502, %v1532
    %v1535 = vld [vmem:[%s6] sm:$0x1]
    %v1537 = vperm.slane %v1535, 0
    %v1539 = vmul.f32 %v1533, %v1537
    %v1540 = vmul.f32 %v1534, %v1537
    %v1541 = vld [vmem:[%s7] sm:$0x1]
    %v1543 = vperm.slane %v1541, 0
    %v1545 = vadd.f32 %v1539, %v1543
    %v1546 = vadd.f32 %v1540, %v1543
    %v1547 = vpack.c.bf16 %v1546, %v1545
    %v1548 = vld [vmem:[#allocation12] sm:$0xf]
    %v1549 = vld [vmem:[#allocation12 + $0x4] sm:$0xf]
    %v1550 = vld [vmem:[#allocation12 + $0x8] sm:$0xf]
    %v1551 = vld [vmem:[#allocation12 + $0xc] sm:$0xf]
    %v1552 = vld [vmem:[#allocation12 + $0x10] sm:$0xf]
    %v1553 = vld [vmem:[#allocation12 + $0x14] sm:$0xf]
    %v1554 = vld [vmem:[#allocation12 + $0x18] sm:$0xf]
    %v1555 = vld [vmem:[#allocation12 + $0x1c] sm:$0xf]
    %v1556 = vld [vmem:[#allocation12 + $0x20] sm:$0xf]
    %v1557 = vld [vmem:[#allocation12 + $0x24] sm:$0xf]
    %v1558 = vld [vmem:[#allocation12 + $0x28] sm:$0xf]
    %v1559 = vld [vmem:[#allocation12 + $0x2c] sm:$0xf]
    %v1560 = vld [vmem:[#allocation12 + $0x30] sm:$0xf]
    %v1561 = vld [vmem:[#allocation12 + $0x34] sm:$0xf]
    %v1562 = vld [vmem:[#allocation12 + $0x38] sm:$0xf]
    %v1563 = vld [vmem:[#allocation12 + $0x3c] sm:$0xf]
    %v1564 = vld [vmem:[%s9] sm:$0x1]
    %v1566 = vperm.slane %v1564, 0
    %v1584 = vunpack.c.l.b16 %v1548
    %v1585 = vunpack.c.l.b16 %v1549
    %v1586 = vunpack.c.l.b16 %v1550
    %v1587 = vunpack.c.l.b16 %v1551
    %v1588 = vunpack.c.l.b16 %v1552
    %v1589 = vunpack.c.l.b16 %v1553
    %v1590 = vunpack.c.l.b16 %v1554
    %v1591 = vunpack.c.l.b16 %v1555
    %v1592 = vunpack.c.l.b16 %v1556
    %v1593 = vunpack.c.l.b16 %v1557
    %v1594 = vunpack.c.l.b16 %v1558
    %v1595 = vunpack.c.l.b16 %v1559
    %v1596 = vunpack.c.l.b16 %v1560
    %v1597 = vunpack.c.l.b16 %v1561
    %v1598 = vunpack.c.l.b16 %v1562
    %v1599 = vunpack.c.l.b16 %v1563
    %v1600 = vpack.c.b16 %v1585, %v1584
    %v1601 = vpack.c.b16 %v1587, %v1586
    %v1602 = vpack.c.b16 %v1589, %v1588
    %v1603 = vpack.c.b16 %v1591, %v1590
    %v1604 = vpack.c.b16 %v1593, %v1592
    %v1605 = vpack.c.b16 %v1595, %v1594
    %v1606 = vpack.c.b16 %v1597, %v1596
    %v1607 = vpack.c.b16 %v1599, %v1598
    %1616 = vmatpush.bf16.msra.mxu0 %v1607
    %1617 = vmatpush.bf16.msra.mxu0 %v1606
    %1618 = vmatpush.bf16.msra.mxu0 %v1605
    %1619 = vmatpush.bf16.msra.mxu0 %v1604
    %1620 = vmatpush.bf16.msra.mxu0 %v1603
    %1621 = vmatpush.bf16.msra.mxu0 %v1602
    %1622 = vmatpush.bf16.msra.mxu0 %v1601
    %1623 = vmatpush.bf16.msra.mxu0 %v1600
    %1624 = vmatmul.bf16.gmra.mxu0 %v1547
    %v1625 = vpop.f32.mrf.mxu0
    %v1626 = vadd.f32 %v1566, %v1625
    %v1627 = vpop.f32.mrf.mxu0
    %v1628 = vadd.f32 %v1566, %v1627
    %1629 = vdwg.mxu0
    %v1630 = vld [vmem:[#allocation14] sm:$0xff]
    %v1631 = vld [vmem:[#allocation14 + $0x8] sm:$0xff]
    %v1632 = vld [vmem:[#allocation14 + $0x10] sm:$0xff]
    %v1633 = vld [vmem:[#allocation14 + $0x18] sm:$0xff]
    %v1634 = vld [vmem:[#allocation14 + $0x20] sm:$0xff]
    %v1635 = vld [vmem:[#allocation14 + $0x28] sm:$0xff]
    %v1636 = vld [vmem:[#allocation14 + $0x30] sm:$0xff]
    %v1637 = vld [vmem:[#allocation14 + $0x38] sm:$0xff]
    %v1638 = vld [vmem:[#allocation14 + $0x40] sm:$0xff]
    %v1639 = vld [vmem:[#allocation14 + $0x48] sm:$0xff]
    %v1640 = vld [vmem:[#allocation14 + $0x50] sm:$0xff]
    %v1641 = vld [vmem:[#allocation14 + $0x58] sm:$0xff]
    %v1642 = vld [vmem:[#allocation14 + $0x60] sm:$0xff]
    %v1643 = vld [vmem:[#allocation14 + $0x68] sm:$0xff]
    %v1644 = vld [vmem:[#allocation14 + $0x70] sm:$0xff]
    %v1645 = vld [vmem:[#allocation14 + $0x78] sm:$0xff]
    %v1646 = vld [vmem:[%s11] sm:$0x3]
    %v1648 = vperm.slane %v1646, 0
    %v1649 = vperm.slane %v1646, 1
    %v1656 = vunpack.c.l.b16 %v174
    %v1657 = vunpack.c.l.b16 %v175
    %v1658 = vunpack.c.l.b16 %v176
    %v1659 = vunpack.c.l.b16 %v177
    %v1660 = vpack.c.b16 %v1657, %v1656
    %v1661 = vpack.c.b16 %v1659, %v1658
    %v1680 = vunpack.c.l.b16 %v1630
    %v1681 = vunpack.c.h.b16 %v1630
    %v1682 = vunpack.c.l.b16 %v1631
    %v1683 = vunpack.c.h.b16 %v1631
    %v1684 = vunpack.c.l.b16 %v1632
    %v1685 = vunpack.c.h.b16 %v1632
    %v1686 = vunpack.c.l.b16 %v1633
    %v1687 = vunpack.c.h.b16 %v1633
    %v1688 = vunpack.c.l.b16 %v1634
    %v1689 = vunpack.c.h.b16 %v1634
    %v1690 = vunpack.c.l.b16 %v1635
    %v1691 = vunpack.c.h.b16 %v1635
    %v1692 = vunpack.c.l.b16 %v1636
    %v1693 = vunpack.c.h.b16 %v1636
    %v1694 = vunpack.c.l.b16 %v1637
    %v1695 = vunpack.c.h.b16 %v1637
    %v1696 = vunpack.c.l.b16 %v1638
    %v1697 = vunpack.c.h.b16 %v1638
    %v1698 = vunpack.c.l.b16 %v1639
    %v1699 = vunpack.c.h.b16 %v1639
    %v1700 = vunpack.c.l.b16 %v1640
    %v1701 = vunpack.c.h.b16 %v1640
    %v1702 = vunpack.c.l.b16 %v1641
    %v1703 = vunpack.c.h.b16 %v1641
    %v1704 = vunpack.c.l.b16 %v1642
    %v1705 = vunpack.c.h.b16 %v1642
    %v1706 = vunpack.c.l.b16 %v1643
    %v1707 = vunpack.c.h.b16 %v1643
    %v1708 = vunpack.c.l.b16 %v1644
    %v1709 = vunpack.c.h.b16 %v1644
    %v1710 = vunpack.c.l.b16 %v1645
    %v1711 = vunpack.c.h.b16 %v1645
    %v1712 = vpack.c.b16 %v1682, %v1680
    %v1713 = vpack.c.b16 %v1683, %v1681
    %v1714 = vpack.c.b16 %v1686, %v1684
    %v1715 = vpack.c.b16 %v1687, %v1685
    %v1716 = vpack.c.b16 %v1690, %v1688
    %v1717 = vpack.c.b16 %v1691, %v1689
    %v1718 = vpack.c.b16 %v1694, %v1692
    %v1719 = vpack.c.b16 %v1695, %v1693
    %v1720 = vpack.c.b16 %v1698, %v1696
    %v1721 = vpack.c.b16 %v1699, %v1697
    %v1722 = vpack.c.b16 %v1702, %v1700
    %v1723 = vpack.c.b16 %v1703, %v1701
    %v1724 = vpack.c.b16 %v1706, %v1704
    %v1725 = vpack.c.b16 %v1707, %v1705
    %v1726 = vpack.c.b16 %v1710, %v1708
    %v1727 = vpack.c.b16 %v1711, %v1709
    %1744 = vmatpush.bf16.msra.mxu0 %v1726
    %1745 = vmatpush.bf16.msra.mxu0 %v1724
    %1746 = vmatpush.bf16.msra.mxu0 %v1722
    %1747 = vmatpush.bf16.msra.mxu0 %v1720
    %1748 = vmatpush.bf16.msra.mxu0 %v1718
    %1749 = vmatpush.bf16.msra.mxu0 %v1716
    %1750 = vmatpush.bf16.msra.mxu0 %v1714
    %1751 = vmatpush.bf16.msra.mxu0 %v1712
    %1752 = vmatmul.bf16.gmra.mxu0 %v1660
    %v1753 = vpop.f32.mrf.mxu0
    %v1754 = vadd.f32 %v1648, %v1753
    %v1755 = vpop.f32.mrf.mxu0
    %v1756 = vadd.f32 %v1648, %v1755
    %1757 = vmatmul.bf16.gmra.mxu0 %v1661
    %v1758 = vpop.f32.mrf.mxu0
    %v1759 = vadd.f32 %v1648, %v1758
    %v1760 = vpop.f32.mrf.mxu0
    %v1761 = vadd.f32 %v1648, %v1760
    %1762 = vdwg.mxu0
    %1763 = vmatpush.bf16.msra.mxu0 %v1727
    %1764 = vmatpush.bf16.msra.mxu0 %v1725
    %1765 = vmatpush.bf16.msra.mxu0 %v1723
    %1766 = vmatpush.bf16.msra.mxu0 %v1721
    %1767 = vmatpush.bf16.msra.mxu0 %v1719
    %1768 = vmatpush.bf16.msra.mxu0 %v1717
    %1769 = vmatpush.bf16.msra.mxu0 %v1715
    %1770 = vmatpush.bf16.msra.mxu0 %v1713
    %1771 = vmatmul.bf16.gmra.mxu0 %v1660
    %v1772 = vpop.f32.mrf.mxu0
    %v1773 = vadd.f32 %v1649, %v1772
    %v1774 = vpop.f32.mrf.mxu0
    %v1775 = vadd.f32 %v1649, %v1774
    %1776 = vmatmul.bf16.gmra.mxu0 %v1661
    %v1777 = vpop.f32.mrf.mxu0
    %v1778 = vadd.f32 %v1649, %v1777
    %v1779 = vpop.f32.mrf.mxu0
    %v1780 = vadd.f32 %v1649, %v1779
    %1781 = vdwg.mxu0
    %v1782 = vpack.c.bf16 %v1626, %v1626
    %v1783 = vpack.c.bf16 %v1628, %v1628
    %v1784 = vpack.c.bf16 %v1754, %v1754
    %v1785 = vpack.c.bf16 %v1756, %v1756
    %v1786 = vpack.c.bf16 %v1759, %v1759
    %v1787 = vpack.c.bf16 %v1761, %v1761
    %v1788 = vpack.c.bf16 %v1773, %v1773
    %v1789 = vpack.c.bf16 %v1775, %v1775
    %v1790 = vpack.c.bf16 %v1778, %v1778
    %v1791 = vpack.c.bf16 %v1780, %v1780
    %v1794 = vunpack.c.l.b16 %v1784
    %v1795 = vunpack.c.l.b16 %v1785
    %v1796 = vpack.c.b16 %v1795, %v1794
    %v1798 = vsel %vm395, %v1782, 0
    %v1801 = vsel %vm395, %v1796, 0
    %1803 = vmatpush.bf16.xpose.msra.mxu0 0
    %1804 = vmatpush.bf16.xpose.msra.mxu0 0
    %1805 = vmatpush.bf16.xpose.msra.mxu0 0
    %1806 = vmatpush.bf16.xpose.msra.mxu0 0
    %1807 = vmatpush.bf16.xpose.msra.mxu0 0
    %1808 = vmatpush.bf16.xpose.msra.mxu0 0
    %1809 = vmatpush.bf16.xpose.msra.mxu0 0
    %1810 = vmatpush.bf16.xpose.msra.mxu0 %v1801
    %1811 = vmatmul.bf16.gmra.mxu0 %v1798
    %v1812 = vpop.f32.mrf.mxu0
    %v1813 = vadd.f32 0.0, %v1812
    %v1814 = vpop.f32.mrf.mxu0
    %1815 = vdwg.mxu0
    %v1818 = vunpack.c.l.b16 %v1786
    %v1819 = vunpack.c.l.b16 %v1787
    %v1820 = vpack.c.b16 %v1819, %v1818
    %v1822 = vsel %vm395, %v1783, 0
    %v1825 = vsel %vm395, %v1820, 0
    %1827 = vmatpush.bf16.xpose.msra.mxu0 0
    %1828 = vmatpush.bf16.xpose.msra.mxu0 0
    %1829 = vmatpush.bf16.xpose.msra.mxu0 0
    %1830 = vmatpush.bf16.xpose.msra.mxu0 0
    %1831 = vmatpush.bf16.xpose.msra.mxu0 0
    %1832 = vmatpush.bf16.xpose.msra.mxu0 0
    %1833 = vmatpush.bf16.xpose.msra.mxu0 0
    %1834 = vmatpush.bf16.xpose.msra.mxu0 %v1825
    %1835 = vmatmul.bf16.gmra.mxu0 %v1822
    %v1836 = vpop.f32.mrf.mxu0
    %v1837 = vadd.f32 0.0, %v1836
    %v1838 = vpop.f32.mrf.mxu0
    %1839 = vdwg.mxu0
    %v1840 = vsel %vm395, %v1813, -inf
    %1841 = vmax.xlane.f32.xlu0 %v1840
    %v1842 = vpop.xlane.xlu0 %1841
    %v1843 = vsel %vm395, %v1837, -inf
    %1844 = vmax.xlane.f32.xlu0 %v1843
    %v1845 = vpop.xlane.xlu0 %1844
    %v1846 = vsub.f32 %v1813, %v1842
    %v1847 = vsub.f32 %v1837, %v1845
    %v1848 = vmul.f32 %v1846, 1.442695
    %v1849 = vpow.pop %v1848
    %v1850 = vmul.f32 %v1847, 1.442695
    %v1851 = vpow.pop %v1850
    %v1852 = vsel %vm395, %v1849, 0.0
    %1853 = vadd.xlane.f32.xlu0 %v1852
    %v1854 = vpop.xlane.xlu0 %1853
    %v1855 = vsel %vm395, %v1851, 0.0
    %1856 = vadd.xlane.f32.xlu0 %v1855
    %v1857 = vpop.xlane.xlu0 %1856
    %v1858 = vrcp.pop %v1854
    %v1859 = vrcp.pop %v1857
    %v1860 = vmul.f32 %v1849, %v1858
    %v1861 = vmul.f32 %v1851, %v1859
    %v1862 = vpack.c.bf16 %v1860, %v1860
    %v1863 = vpack.c.bf16 %v1861, %v1861
    %v1866 = vunpack.c.l.b16 %v1788
    %v1867 = vunpack.c.l.b16 %v1789
    %v1868 = vpack.c.b16 %v1867, %v1866
    %v1871 = vsel %vm395, %v1862, 0
    %1873 = vmatpush.bf16.msra.mxu0 0
    %1874 = vmatpush.bf16.msra.mxu0 0
    %1875 = vmatpush.bf16.msra.mxu0 0
    %1876 = vmatpush.bf16.msra.mxu0 0
    %1877 = vmatpush.bf16.msra.mxu0 0
    %1878 = vmatpush.bf16.msra.mxu0 0
    %1879 = vmatpush.bf16.msra.mxu0 0
    %1880 = vmatpush.bf16.msra.mxu0 %v1868
    %1881 = vmatmul.bf16.gmra.mxu0 %v1871
    %v1882 = vpop.f32.mrf.mxu0
    %v1883 = vadd.f32 0.0, %v1882
    %v1884 = vpop.f32.mrf.mxu0
    %1885 = vdwg.mxu0
    %v1888 = vunpack.c.l.b16 %v1790
    %v1889 = vunpack.c.l.b16 %v1791
    %v1890 = vpack.c.b16 %v1889, %v1888
    %v1893 = vsel %vm395, %v1863, 0
    %1895 = vmatpush.bf16.msra.mxu0 0
    %1896 = vmatpush.bf16.msra.mxu0 0
    %1897 = vmatpush.bf16.msra.mxu0 0
    %1898 = vmatpush.bf16.msra.mxu0 0
    %1899 = vmatpush.bf16.msra.mxu0 0
    %1900 = vmatpush.bf16.msra.mxu0 0
    %1901 = vmatpush.bf16.msra.mxu0 0
    %1902 = vmatpush.bf16.msra.mxu0 %v1890
    %1903 = vmatmul.bf16.gmra.mxu0 %v1893
    %v1904 = vpop.f32.mrf.mxu0
    %v1905 = vadd.f32 0.0, %v1904
    %v1906 = vpop.f32.mrf.mxu0
    %1907 = vdwg.mxu0
    %v1908 = vpack.c.bf16 %v1883, %v1883
    %v1909 = vpack.c.bf16 %v1905, %v1905
    %1910 = vst.msk [vmem:[#allocation2] sm:$0xf] %vm500, %v1908
    %1911 = vst.msk [vmem:[#allocation2 + $0x4] sm:$0xf] %vm500, %v1909
    %v1913 = vunpack.c.l.b16 %v1782
    %v1914 = vpack.c.b16 %v1913, %v1913
    %1915 = vrot.lane.b32.xlu0 %v1914, 112
    %v1916 = vpop.permute.xlu0 %1915
    %1917 = vrot.lane.b32.xlu0 %v1796, 112
    %v1918 = vpop.permute.xlu0 %1917
    %v1920 = vsel %vm395, %v1916, 0
    %v1923 = vsel %vm395, %v1918, 0
    %1925 = vmatpush.bf16.xpose.msra.mxu0 0
    %1926 = vmatpush.bf16.xpose.msra.mxu0 0
    %1927 = vmatpush.bf16.xpose.msra.mxu0 0
    %1928 = vmatpush.bf16.xpose.msra.mxu0 0
    %1929 = vmatpush.bf16.xpose.msra.mxu0 0
    %1930 = vmatpush.bf16.xpose.msra.mxu0 0
    %1931 = vmatpush.bf16.xpose.msra.mxu0 0
    %1932 = vmatpush.bf16.xpose.msra.mxu0 %v1923
    %1933 = vmatmul.bf16.gmra.mxu0 %v1920
    %v1934 = vpop.f32.mrf.mxu0
    %v1935 = vadd.f32 0.0, %v1934
    %v1936 = vpop.f32.mrf.mxu0
    %1937 = vdwg.mxu0
    %v1939 = vunpack.c.l.b16 %v1783
    %v1940 = vpack.c.b16 %v1939, %v1939
    %1941 = vrot.lane.b32.xlu0 %v1940, 112
    %v1942 = vpop.permute.xlu0 %1941
    %1943 = vrot.lane.b32.xlu0 %v1820, 112
    %v1944 = vpop.permute.xlu0 %1943
    %v1946 = vsel %vm395, %v1942, 0
    %v1949 = vsel %vm395, %v1944, 0
    %1951 = vmatpush.bf16.xpose.msra.mxu0 0
    %1952 = vmatpush.bf16.xpose.msra.mxu0 0
    %1953 = vmatpush.bf16.xpose.msra.mxu0 0
    %1954 = vmatpush.bf16.xpose.msra.mxu0 0
    %1955 = vmatpush.bf16.xpose.msra.mxu0 0
    %1956 = vmatpush.bf16.xpose.msra.mxu0 0
    %1957 = vmatpush.bf16.xpose.msra.mxu0 0
    %1958 = vmatpush.bf16.xpose.msra.mxu0 %v1949
    %1959 = vmatmul.bf16.gmra.mxu0 %v1946
    %v1960 = vpop.f32.mrf.mxu0
    %v1961 = vadd.f32 0.0, %v1960
    %v1962 = vpop.f32.mrf.mxu0
    %1963 = vdwg.mxu0
    %v1964 = vsel %vm395, %v1935, -inf
    %1965 = vmax.xlane.f32.xlu0 %v1964
    %v1966 = vpop.xlane.xlu0 %1965
    %v1967 = vsel %vm395, %v1961, -inf
    %1968 = vmax.xlane.f32.xlu0 %v1967
    %v1969 = vpop.xlane.xlu0 %1968
    %v1970 = vsub.f32 %v1935, %v1966
    %v1971 = vsub.f32 %v1961, %v1969
    %v1972 = vmul.f32 %v1970, 1.442695
    %v1973 = vpow.pop %v1972
    %v1974 = vmul.f32 %v1971, 1.442695
    %v1975 = vpow.pop %v1974
    %v1976 = vsel %vm395, %v1973, 0.0
    %1977 = vadd.xlane.f32.xlu0 %v1976
    %v1978 = vpop.xlane.xlu0 %1977
    %v1979 = vsel %vm395, %v1975, 0.0
    %1980 = vadd.xlane.f32.xlu0 %v1979
    %v1981 = vpop.xlane.xlu0 %1980
    %v1982 = vrcp.pop %v1978
    %v1983 = vrcp.pop %v1981
    %v1984 = vmul.f32 %v1973, %v1982
    %v1985 = vmul.f32 %v1975, %v1983
    %v1986 = vpack.c.bf16 %v1984, %v1984
    %v1987 = vpack.c.bf16 %v1985, %v1985
    %1988 = vrot.lane.b32.xlu0 %v1868, 112
    %v1989 = vpop.permute.xlu0 %1988
    %v1992 = vsel %vm395, %v1986, 0
    %1994 = vmatpush.bf16.msra.mxu0 0
    %1995 = vmatpush.bf16.msra.mxu0 0
    %1996 = vmatpush.bf16.msra.mxu0 0
    %1997 = vmatpush.bf16.msra.mxu0 0
    %1998 = vmatpush.bf16.msra.mxu0 0
    %1999 = vmatpush.bf16.msra.mxu0 0
    %2000 = vmatpush.bf16.msra.mxu0 0
    %2001 = vmatpush.bf16.msra.mxu0 %v1989
    %2002 = vmatmul.bf16.gmra.mxu0 %v1992
    %v2003 = vpop.f32.mrf.mxu0
    %v2004 = vadd.f32 0.0, %v2003
    %v2005 = vpop.f32.mrf.mxu0
    %2006 = vdwg.mxu0
    %2007 = vrot.lane.b32.xlu0 %v1890, 112
    %v2008 = vpop.permute.xlu0 %2007
    %v2011 = vsel %vm395, %v1987, 0
    %2013 = vmatpush.bf16.msra.mxu0 0
    %2014 = vmatpush.bf16.msra.mxu0 0
    %2015 = vmatpush.bf16.msra.mxu0 0
    %2016 = vmatpush.bf16.msra.mxu0 0
    %2017 = vmatpush.bf16.msra.mxu0 0
    %2018 = vmatpush.bf16.msra.mxu0 0
    %2019 = vmatpush.bf16.msra.mxu0 0
    %2020 = vmatpush.bf16.msra.mxu0 %v2008
    %2021 = vmatmul.bf16.gmra.mxu0 %v2011
    %v2022 = vpop.f32.mrf.mxu0
    %v2023 = vadd.f32 0.0, %v2022
    %v2024 = vpop.f32.mrf.mxu0
    %2025 = vdwg.mxu0
    %v2026 = vpack.c.bf16 %v2004, %v2004
    %v2027 = vpack.c.bf16 %v2023, %v2023
    %2030 = vrot.lane.b32.xlu0 %v2026, 16
    %v2031 = vpop.permute.xlu0 %2030
    %2032 = vrot.lane.b32.xlu0 %v2027, 16
    %v2033 = vpop.permute.xlu0 %2032
    %2036 = vst.msk [vmem:[#allocation2] sm:$0xf] %vm643, %v2031
    %2037 = vst.msk [vmem:[#allocation2 + $0x4] sm:$0xf] %vm643, %v2033
    %2038 = vrot.lane.b32.xlu0 %v1914, 96
    %v2039 = vpop.permute.xlu0 %2038
    %2040 = vrot.lane.b32.xlu0 %v1796, 96
    %v2041 = vpop.permute.xlu0 %2040
    %v2043 = vsel %vm395, %v2039, 0
    %v2046 = vsel %vm395, %v2041, 0
    %2048 = vmatpush.bf16.xpose.msra.mxu0 0
    %2049 = vmatpush.bf16.xpose.msra.mxu0 0
    %2050 = vmatpush.bf16.xpose.msra.mxu0 0
    %2051 = vmatpush.bf16.xpose.msra.mxu0 0
    %2052 = vmatpush.bf16.xpose.msra.mxu0 0
    %2053 = vmatpush.bf16.xpose.msra.mxu0 0
    %2054 = vmatpush.bf16.xpose.msra.mxu0 0
    %2055 = vmatpush.bf16.xpose.msra.mxu0 %v2046
    %2056 = vmatmul.bf16.gmra.mxu0 %v2043
    %v2057 = vpop.f32.mrf.mxu0
    %v2058 = vadd.f32 0.0, %v2057
    %v2059 = vpop.f32.mrf.mxu0
    %2060 = vdwg.mxu0
    %2061 = vrot.lane.b32.xlu0 %v1940, 96
    %v2062 = vpop.permute.xlu0 %2061
    %2063 = vrot.lane.b32.xlu0 %v1820, 96
    %v2064 = vpop.permute.xlu0 %2063
    %v2066 = vsel %vm395, %v2062, 0
    %v2069 = vsel %vm395, %v2064, 0
    %2071 = vmatpush.bf16.xpose.msra.mxu0 0
    %2072 = vmatpush.bf16.xpose.msra.mxu0 0
    %2073 = vmatpush.bf16.xpose.msra.mxu0 0
    %2074 = vmatpush.bf16.xpose.msra.mxu0 0
    %2075 = vmatpush.bf16.xpose.msra.mxu0 0
    %2076 = vmatpush.bf16.xpose.msra.mxu0 0
    %2077 = vmatpush.bf16.xpose.msra.mxu0 0
    %2078 = vmatpush.bf16.xpose.msra.mxu0 %v2069
    %2079 = vmatmul.bf16.gmra.mxu0 %v2066
    %v2080 = vpop.f32.mrf.mxu0
    %v2081 = vadd.f32 0.0, %v2080
    %v2082 = vpop.f32.mrf.mxu0
    %2083 = vdwg.mxu0
    %v2084 = vsel %vm395, %v2058, -inf
    %2085 = vmax.xlane.f32.xlu0 %v2084
    %v2086 = vpop.xlane.xlu0 %2085
    %v2087 = vsel %vm395, %v2081, -inf
    %2088 = vmax.xlane.f32.xlu0 %v2087
    %v2089 = vpop.xlane.xlu0 %2088
    %v2090 = vsub.f32 %v2058, %v2086
    %v2091 = vsub.f32 %v2081, %v2089
    %v2092 = vmul.f32 %v2090, 1.442695
    %v2093 = vpow.pop %v2092
    %v2094 = vmul.f32 %v2091, 1.442695
    %v2095 = vpow.pop %v2094
    %v2096 = vsel %vm395, %v2093, 0.0
    %2097 = vadd.xlane.f32.xlu0 %v2096
    %v2098 = vpop.xlane.xlu0 %2097
    %v2099 = vsel %vm395, %v2095, 0.0
    %2100 = vadd.xlane.f32.xlu0 %v2099
    %v2101 = vpop.xlane.xlu0 %2100
    %v2102 = vrcp.pop %v2098
    %v2103 = vrcp.pop %v2101
    %v2104 = vmul.f32 %v2093, %v2102
    %v2105 = vmul.f32 %v2095, %v2103
    %v2106 = vpack.c.bf16 %v2104, %v2104
    %v2107 = vpack.c.bf16 %v2105, %v2105
    %2108 = vrot.lane.b32.xlu0 %v1868, 96
    %v2109 = vpop.permute.xlu0 %2108
    %v2112 = vsel %vm395, %v2106, 0
    %2114 = vmatpush.bf16.msra.mxu0 0
    %2115 = vmatpush.bf16.msra.mxu0 0
    %2116 = vmatpush.bf16.msra.mxu0 0
    %2117 = vmatpush.bf16.msra.mxu0 0
    %2118 = vmatpush.bf16.msra.mxu0 0
    %2119 = vmatpush.bf16.msra.mxu0 0
    %2120 = vmatpush.bf16.msra.mxu0 0
    %2121 = vmatpush.bf16.msra.mxu0 %v2109
    %2122 = vmatmul.bf16.gmra.mxu0 %v2112
    %v2123 = vpop.f32.mrf.mxu0
    %v2124 = vadd.f32 0.0, %v2123
    %v2125 = vpop.f32.mrf.mxu0
    %2126 = vdwg.mxu0
    %2127 = vrot.lane.b32.xlu0 %v1890, 96
    %v2128 = vpop.permute.xlu0 %2127
    %v2131 = vsel %vm395, %v2107, 0
    %2133 = vmatpush.bf16.msra.mxu0 0
    %2134 = vmatpush.bf16.msra.mxu0 0
    %2135 = vmatpush.bf16.msra.mxu0 0
    %2136 = vmatpush.bf16.msra.mxu0 0
    %2137 = vmatpush.bf16.msra.mxu0 0
    %2138 = vmatpush.bf16.msra.mxu0 0
    %2139 = vmatpush.bf16.msra.mxu0 0
    %2140 = vmatpush.bf16.msra.mxu0 %v2128
    %2141 = vmatmul.bf16.gmra.mxu0 %v2131
    %v2142 = vpop.f32.mrf.mxu0
    %v2143 = vadd.f32 0.0, %v2142
    %v2144 = vpop.f32.mrf.mxu0
    %2145 = vdwg.mxu0
    %v2146 = vpack.c.bf16 %v2124, %v2124
    %v2147 = vpack.c.bf16 %v2143, %v2143
    %2150 = vrot.lane.b32.xlu0 %v2146, 32
    %v2151 = vpop.permute.xlu0 %2150
    %2152 = vrot.lane.b32.xlu0 %v2147, 32
    %v2153 = vpop.permute.xlu0 %2152
    %2156 = vst.msk [vmem:[#allocation2] sm:$0xf] %vm768, %v2151
    %2157 = vst.msk [vmem:[#allocation2 + $0x4] sm:$0xf] %vm768, %v2153
    %2158 = vrot.lane.b32.xlu0 %v1914, 80
    %v2159 = vpop.permute.xlu0 %2158
    %2160 = vrot.lane.b32.xlu0 %v1796, 80
    %v2161 = vpop.permute.xlu0 %2160
    %v2163 = vsel %vm395, %v2159, 0
    %v2166 = vsel %vm395, %v2161, 0
    %2168 = vmatpush.bf16.xpose.msra.mxu0 0
    %2169 = vmatpush.bf16.xpose.msra.mxu0 0
    %2170 = vmatpush.bf16.xpose.msra.mxu0 0
    %2171 = vmatpush.bf16.xpose.msra.mxu0 0
    %2172 = vmatpush.bf16.xpose.msra.mxu0 0
    %2173 = vmatpush.bf16.xpose.msra.mxu0 0
    %2174 = vmatpush.bf16.xpose.msra.mxu0 0
    %2175 = vmatpush.bf16.xpose.msra.mxu0 %v2166
    %2176 = vmatmul.bf16.gmra.mxu0 %v2163
    %v2177 = vpop.f32.mrf.mxu0
    %v2178 = vadd.f32 0.0, %v2177
    %v2179 = vpop.f32.mrf.mxu0
    %2180 = vdwg.mxu0
    %2181 = vrot.lane.b32.xlu0 %v1940, 80
    %v2182 = vpop.permute.xlu0 %2181
    %2183 = vrot.lane.b32.xlu0 %v1820, 80
    %v2184 = vpop.permute.xlu0 %2183
    %v2186 = vsel %vm395, %v2182, 0
    %v2189 = vsel %vm395, %v2184, 0
    %2191 = vmatpush.bf16.xpose.msra.mxu0 0
    %2192 = vmatpush.bf16.xpose.msra.mxu0 0
    %2193 = vmatpush.bf16.xpose.msra.mxu0 0
    %2194 = vmatpush.bf16.xpose.msra.mxu0 0
    %2195 = vmatpush.bf16.xpose.msra.mxu0 0
    %2196 = vmatpush.bf16.xpose.msra.mxu0 0
    %2197 = vmatpush.bf16.xpose.msra.mxu0 0
    %2198 = vmatpush.bf16.xpose.msra.mxu0 %v2189
    %2199 = vmatmul.bf16.gmra.mxu0 %v2186
    %v2200 = vpop.f32.mrf.mxu0
    %v2201 = vadd.f32 0.0, %v2200
    %v2202 = vpop.f32.mrf.mxu0
    %2203 = vdwg.mxu0
    %v2204 = vsel %vm395, %v2178, -inf
    %2205 = vmax.xlane.f32.xlu0 %v2204
    %v2206 = vpop.xlane.xlu0 %2205
    %v2207 = vsel %vm395, %v2201, -inf
    %2208 = vmax.xlane.f32.xlu0 %v2207
    %v2209 = vpop.xlane.xlu0 %2208
    %v2210 = vsub.f32 %v2178, %v2206
    %v2211 = vsub.f32 %v2201, %v2209
    %v2212 = vmul.f32 %v2210, 1.442695
    %v2213 = vpow.pop %v2212
    %v2214 = vmul.f32 %v2211, 1.442695
    %v2215 = vpow.pop %v2214
    %v2216 = vsel %vm395, %v2213, 0.0
    %2217 = vadd.xlane.f32.xlu0 %v2216
    %v2218 = vpop.xlane.xlu0 %2217
    %v2219 = vsel %vm395, %v2215, 0.0
    %2220 = vadd.xlane.f32.xlu0 %v2219
    %v2221 = vpop.xlane.xlu0 %2220
    %v2222 = vrcp.pop %v2218
    %v2223 = vrcp.pop %v2221
    %v2224 = vmul.f32 %v2213, %v2222
    %v2225 = vmul.f32 %v2215, %v2223
    %v2226 = vpack.c.bf16 %v2224, %v2224
    %v2227 = vpack.c.bf16 %v2225, %v2225
    %2228 = vrot.lane.b32.xlu0 %v1868, 80
    %v2229 = vpop.permute.xlu0 %2228
    %v2232 = vsel %vm395, %v2226, 0
    %2234 = vmatpush.bf16.msra.mxu0 0
    %2235 = vmatpush.bf16.msra.mxu0 0
    %2236 = vmatpush.bf16.msra.mxu0 0
    %2237 = vmatpush.bf16.msra.mxu0 0
    %2238 = vmatpush.bf16.msra.mxu0 0
    %2239 = vmatpush.bf16.msra.mxu0 0
    %2240 = vmatpush.bf16.msra.mxu0 0
    %2241 = vmatpush.bf16.msra.mxu0 %v2229
    %2242 = vmatmul.bf16.gmra.mxu0 %v2232
    %v2243 = vpop.f32.mrf.mxu0
    %v2244 = vadd.f32 0.0, %v2243
    %v2245 = vpop.f32.mrf.mxu0
    %2246 = vdwg.mxu0
    %2247 = vrot.lane.b32.xlu0 %v1890, 80
    %v2248 = vpop.permute.xlu0 %2247
    %v2251 = vsel %vm395, %v2227, 0
    %2253 = vmatpush.bf16.msra.mxu0 0
    %2254 = vmatpush.bf16.msra.mxu0 0
    %2255 = vmatpush.bf16.msra.mxu0 0
    %2256 = vmatpush.bf16.msra.mxu0 0
    %2257 = vmatpush.bf16.msra.mxu0 0
    %2258 = vmatpush.bf16.msra.mxu0 0
    %2259 = vmatpush.bf16.msra.mxu0 0
    %2260 = vmatpush.bf16.msra.mxu0 %v2248
    %2261 = vmatmul.bf16.gmra.mxu0 %v2251
    %v2262 = vpop.f32.mrf.mxu0
    %v2263 = vadd.f32 0.0, %v2262
    %v2264 = vpop.f32.mrf.mxu0
    %2265 = vdwg.mxu0
    %v2266 = vpack.c.bf16 %v2244, %v2244
    %v2267 = vpack.c.bf16 %v2263, %v2263
    %2270 = vrot.lane.b32.xlu0 %v2266, 48
    %v2271 = vpop.permute.xlu0 %2270
    %2272 = vrot.lane.b32.xlu0 %v2267, 48
    %v2273 = vpop.permute.xlu0 %2272
    %2276 = vst.msk [vmem:[#allocation2] sm:$0xf] %vm893, %v2271
    %2277 = vst.msk [vmem:[#allocation2 + $0x4] sm:$0xf] %vm893, %v2273
    %2278 = vrot.lane.b32.xlu0 %v1914, 64
    %v2279 = vpop.permute.xlu0 %2278
    %2280 = vrot.lane.b32.xlu0 %v1796, 64
    %v2281 = vpop.permute.xlu0 %2280
    %v2283 = vsel %vm395, %v2279, 0
    %v2286 = vsel %vm395, %v2281, 0
    %2288 = vmatpush.bf16.xpose.msra.mxu0 0
    %2289 = vmatpush.bf16.xpose.msra.mxu0 0
    %2290 = vmatpush.bf16.xpose.msra.mxu0 0
    %2291 = vmatpush.bf16.xpose.msra.mxu0 0
    %2292 = vmatpush.bf16.xpose.msra.mxu0 0
    %2293 = vmatpush.bf16.xpose.msra.mxu0 0
    %2294 = vmatpush.bf16.xpose.msra.mxu0 0
    %2295 = vmatpush.bf16.xpose.msra.mxu0 %v2286
    %2296 = vmatmul.bf16.gmra.mxu0 %v2283
    %v2297 = vpop.f32.mrf.mxu0
    %v2298 = vadd.f32 0.0, %v2297
    %v2299 = vpop.f32.mrf.mxu0
    %2300 = vdwg.mxu0
    %2301 = vrot.lane.b32.xlu0 %v1940, 64
    %v2302 = vpop.permute.xlu0 %2301
    %2303 = vrot.lane.b32.xlu0 %v1820, 64
    %v2304 = vpop.permute.xlu0 %2303
    %v2306 = vsel %vm395, %v2302, 0
    %v2309 = vsel %vm395, %v2304, 0
    %2311 = vmatpush.bf16.xpose.msra.mxu0 0
    %2312 = vmatpush.bf16.xpose.msra.mxu0 0
    %2313 = vmatpush.bf16.xpose.msra.mxu0 0
    %2314 = vmatpush.bf16.xpose.msra.mxu0 0
    %2315 = vmatpush.bf16.xpose.msra.mxu0 0
    %2316 = vmatpush.bf16.xpose.msra.mxu0 0
    %2317 = vmatpush.bf16.xpose.msra.mxu0 0
    %2318 = vmatpush.bf16.xpose.msra.mxu0 %v2309
    %2319 = vmatmul.bf16.gmra.mxu0 %v2306
    %v2320 = vpop.f32.mrf.mxu0
    %v2321 = vadd.f32 0.0, %v2320
    %v2322 = vpop.f32.mrf.mxu0
    %2323 = vdwg.mxu0
    %v2324 = vsel %vm395, %v2298, -inf
    %2325 = vmax.xlane.f32.xlu0 %v2324
    %v2326 = vpop.xlane.xlu0 %2325
    %v2327 = vsel %vm395, %v2321, -inf
    %2328 = vmax.xlane.f32.xlu0 %v2327
    %v2329 = vpop.xlane.xlu0 %2328
    %v2330 = vsub.f32 %v2298, %v2326
    %v2331 = vsub.f32 %v2321, %v2329
    %v2332 = vmul.f32 %v2330, 1.442695
    %v2333 = vpow.pop %v2332
    %v2334 = vmul.f32 %v2331, 1.442695
    %v2335 = vpow.pop %v2334
    %v2336 = vsel %vm395, %v2333, 0.0
    %2337 = vadd.xlane.f32.xlu0 %v2336
    %v2338 = vpop.xlane.xlu0 %2337
    %v2339 = vsel %vm395, %v2335, 0.0
    %2340 = vadd.xlane.f32.xlu0 %v2339
    %v2341 = vpop.xlane.xlu0 %2340
    %v2342 = vrcp.pop %v2338
    %v2343 = vrcp.pop %v2341
    %v2344 = vmul.f32 %v2333, %v2342
    %v2345 = vmul.f32 %v2335, %v2343
    %v2346 = vpack.c.bf16 %v2344, %v2344
    %v2347 = vpack.c.bf16 %v2345, %v2345
    %2348 = vrot.lane.b32.xlu0 %v1868, 64
    %v2349 = vpop.permute.xlu0 %2348
    %v2352 = vsel %vm395, %v2346, 0
    %2354 = vmatpush.bf16.msra.mxu0 0
    %2355 = vmatpush.bf16.msra.mxu0 0
    %2356 = vmatpush.bf16.msra.mxu0 0
    %2357 = vmatpush.bf16.msra.mxu0 0
    %2358 = vmatpush.bf16.msra.mxu0 0
    %2359 = vmatpush.bf16.msra.mxu0 0
    %2360 = vmatpush.bf16.msra.mxu0 0
    %2361 = vmatpush.bf16.msra.mxu0 %v2349
    %2362 = vmatmul.bf16.gmra.mxu0 %v2352
    %v2363 = vpop.f32.mrf.mxu0
    %v2364 = vadd.f32 0.0, %v2363
    %v2365 = vpop.f32.mrf.mxu0
    %2366 = vdwg.mxu0
    %2367 = vrot.lane.b32.xlu0 %v1890, 64
    %v2368 = vpop.permute.xlu0 %2367
    %v2371 = vsel %vm395, %v2347, 0
    %2373 = vmatpush.bf16.msra.mxu0 0
    %2374 = vmatpush.bf16.msra.mxu0 0
    %2375 = vmatpush.bf16.msra.mxu0 0
    %2376 = vmatpush.bf16.msra.mxu0 0
    %2377 = vmatpush.bf16.msra.mxu0 0
    %2378 = vmatpush.bf16.msra.mxu0 0
    %2379 = vmatpush.bf16.msra.mxu0 0
    %2380 = vmatpush.bf16.msra.mxu0 %v2368
    %2381 = vmatmul.bf16.gmra.mxu0 %v2371
    %v2382 = vpop.f32.mrf.mxu0
    %v2383 = vadd.f32 0.0, %v2382
    %v2384 = vpop.f32.mrf.mxu0
    %2385 = vdwg.mxu0
    %v2386 = vpack.c.bf16 %v2364, %v2364
    %v2387 = vpack.c.bf16 %v2383, %v2383
    %2390 = vrot.lane.b32.xlu0 %v2386, 64
    %v2391 = vpop.permute.xlu0 %2390
    %2392 = vrot.lane.b32.xlu0 %v2387, 64
    %v2393 = vpop.permute.xlu0 %2392
    %2396 = vst.msk [vmem:[#allocation2] sm:$0xf] %vm1018, %v2391
    %2397 = vst.msk [vmem:[#allocation2 + $0x4] sm:$0xf] %vm1018, %v2393
    %2398 = vrot.lane.b32.xlu0 %v1914, 48
    %v2399 = vpop.permute.xlu0 %2398
    %2400 = vrot.lane.b32.xlu0 %v1796, 48
    %v2401 = vpop.permute.xlu0 %2400
    %v2403 = vsel %vm395, %v2399, 0
    %v2406 = vsel %vm395, %v2401, 0
    %2408 = vmatpush.bf16.xpose.msra.mxu0 0
    %2409 = vmatpush.bf16.xpose.msra.mxu0 0
    %2410 = vmatpush.bf16.xpose.msra.mxu0 0
    %2411 = vmatpush.bf16.xpose.msra.mxu0 0
    %2412 = vmatpush.bf16.xpose.msra.mxu0 0
    %2413 = vmatpush.bf16.xpose.msra.mxu0 0
    %2414 = vmatpush.bf16.xpose.msra.mxu0 0
    %2415 = vmatpush.bf16.xpose.msra.mxu0 %v2406
    %2416 = vmatmul.bf16.gmra.mxu0 %v2403
    %v2417 = vpop.f32.mrf.mxu0
    %v2418 = vadd.f32 0.0, %v2417
    %v2419 = vpop.f32.mrf.mxu0
    %2420 = vdwg.mxu0
    %2421 = vrot.lane.b32.xlu0 %v1940, 48
    %v2422 = vpop.permute.xlu0 %2421
    %2423 = vrot.lane.b32.xlu0 %v1820, 48
    %v2424 = vpop.permute.xlu0 %2423
    %v2426 = vsel %vm395, %v2422, 0
    %v2429 = vsel %vm395, %v2424, 0
    %2431 = vmatpush.bf16.xpose.msra.mxu0 0
    %2432 = vmatpush.bf16.xpose.msra.mxu0 0
    %2433 = vmatpush.bf16.xpose.msra.mxu0 0
    %2434 = vmatpush.bf16.xpose.msra.mxu0 0
    %2435 = vmatpush.bf16.xpose.msra.mxu0 0
    %2436 = vmatpush.bf16.xpose.msra.mxu0 0
    %2437 = vmatpush.bf16.xpose.msra.mxu0 0
    %2438 = vmatpush.bf16.xpose.msra.mxu0 %v2429
    %2439 = vmatmul.bf16.gmra.mxu0 %v2426
    %v2440 = vpop.f32.mrf.mxu0
    %v2441 = vadd.f32 0.0, %v2440
    %v2442 = vpop.f32.mrf.mxu0
    %2443 = vdwg.mxu0
    %v2444 = vsel %vm395, %v2418, -inf
    %2445 = vmax.xlane.f32.xlu0 %v2444
    %v2446 = vpop.xlane.xlu0 %2445
    %v2447 = vsel %vm395, %v2441, -inf
    %2448 = vmax.xlane.f32.xlu0 %v2447
    %v2449 = vpop.xlane.xlu0 %2448
    %v2450 = vsub.f32 %v2418, %v2446
    %v2451 = vsub.f32 %v2441, %v2449
    %v2452 = vmul.f32 %v2450, 1.442695
    %v2453 = vpow.pop %v2452
    %v2454 = vmul.f32 %v2451, 1.442695
    %v2455 = vpow.pop %v2454
    %v2456 = vsel %vm395, %v2453, 0.0
    %2457 = vadd.xlane.f32.xlu0 %v2456
    %v2458 = vpop.xlane.xlu0 %2457
    %v2459 = vsel %vm395, %v2455, 0.0
    %2460 = vadd.xlane.f32.xlu0 %v2459
    %v2461 = vpop.xlane.xlu0 %2460
    %v2462 = vrcp.pop %v2458
    %v2463 = vrcp.pop %v2461
    %v2464 = vmul.f32 %v2453, %v2462
    %v2465 = vmul.f32 %v2455, %v2463
    %v2466 = vpack.c.bf16 %v2464, %v2464
    %v2467 = vpack.c.bf16 %v2465, %v2465
    %2468 = vrot.lane.b32.xlu0 %v1868, 48
    %v2469 = vpop.permute.xlu0 %2468
    %v2472 = vsel %vm395, %v2466, 0
    %2474 = vmatpush.bf16.msra.mxu0 0
    %2475 = vmatpush.bf16.msra.mxu0 0
    %2476 = vmatpush.bf16.msra.mxu0 0
    %2477 = vmatpush.bf16.msra.mxu0 0
    %2478 = vmatpush.bf16.msra.mxu0 0
    %2479 = vmatpush.bf16.msra.mxu0 0
    %2480 = vmatpush.bf16.msra.mxu0 0
    %2481 = vmatpush.bf16.msra.mxu0 %v2469
    %2482 = vmatmul.bf16.gmra.mxu0 %v2472
    %v2483 = vpop.f32.mrf.mxu0
    %v2484 = vadd.f32 0.0, %v2483
    %v2485 = vpop.f32.mrf.mxu0
    %2486 = vdwg.mxu0
    %2487 = vrot.lane.b32.xlu0 %v1890, 48
    %v2488 = vpop.permute.xlu0 %2487
    %v2491 = vsel %vm395, %v2467, 0
    %2493 = vmatpush.bf16.msra.mxu0 0
    %2494 = vmatpush.bf16.msra.mxu0 0
    %2495 = vmatpush.bf16.msra.mxu0 0
    %2496 = vmatpush.bf16.msra.mxu0 0
    %2497 = vmatpush.bf16.msra.mxu0 0
    %2498 = vmatpush.bf16.msra.mxu0 0
    %2499 = vmatpush.bf16.msra.mxu0 0
    %2500 = vmatpush.bf16.msra.mxu0 %v2488
    %2501 = vmatmul.bf16.gmra.mxu0 %v2491
    %v2502 = vpop.f32.mrf.mxu0
    %v2503 = vadd.f32 0.0, %v2502
    %v2504 = vpop.f32.mrf.mxu0
    %2505 = vdwg.mxu0
    %v2506 = vpack.c.bf16 %v2484, %v2484
    %v2507 = vpack.c.bf16 %v2503, %v2503
    %2510 = vrot.lane.b32.xlu0 %v2506, 80
    %v2511 = vpop.permute.xlu0 %2510
    %2512 = vrot.lane.b32.xlu0 %v2507, 80
    %v2513 = vpop.permute.xlu0 %2512
    %2516 = vst.msk [vmem:[#allocation2] sm:$0xf] %vm1143, %v2511
    %2517 = vst.msk [vmem:[#allocation2 + $0x4] sm:$0xf] %vm1143, %v2513
    %2518 = vrot.lane.b32.xlu0 %v1914, 32
    %v2519 = vpop.permute.xlu0 %2518
    %2520 = vrot.lane.b32.xlu0 %v1796, 32
    %v2521 = vpop.permute.xlu0 %2520
    %v2523 = vsel %vm395, %v2519, 0
    %v2526 = vsel %vm395, %v2521, 0
    %2528 = vmatpush.bf16.xpose.msra.mxu0 0
    %2529 = vmatpush.bf16.xpose.msra.mxu0 0
    %2530 = vmatpush.bf16.xpose.msra.mxu0 0
    %2531 = vmatpush.bf16.xpose.msra.mxu0 0
    %2532 = vmatpush.bf16.xpose.msra.mxu0 0
    %2533 = vmatpush.bf16.xpose.msra.mxu0 0
    %2534 = vmatpush.bf16.xpose.msra.mxu0 0
    %2535 = vmatpush.bf16.xpose.msra.mxu0 %v2526
    %2536 = vmatmul.bf16.gmra.mxu0 %v2523
    %v2537 = vpop.f32.mrf.mxu0
    %v2538 = vadd.f32 0.0, %v2537
    %v2539 = vpop.f32.mrf.mxu0
    %2540 = vdwg.mxu0
    %2541 = vrot.lane.b32.xlu0 %v1940, 32
    %v2542 = vpop.permute.xlu0 %2541
    %2543 = vrot.lane.b32.xlu0 %v1820, 32
    %v2544 = vpop.permute.xlu0 %2543
    %v2546 = vsel %vm395, %v2542, 0
    %v2549 = vsel %vm395, %v2544, 0
    %2551 = vmatpush.bf16.xpose.msra.mxu0 0
    %2552 = vmatpush.bf16.xpose.msra.mxu0 0
    %2553 = vmatpush.bf16.xpose.msra.mxu0 0
    %2554 = vmatpush.bf16.xpose.msra.mxu0 0
    %2555 = vmatpush.bf16.xpose.msra.mxu0 0
    %2556 = vmatpush.bf16.xpose.msra.mxu0 0
    %2557 = vmatpush.bf16.xpose.msra.mxu0 0
    %2558 = vmatpush.bf16.xpose.msra.mxu0 %v2549
    %2559 = vmatmul.bf16.gmra.mxu0 %v2546
    %v2560 = vpop.f32.mrf.mxu0
    %v2561 = vadd.f32 0.0, %v2560
    %v2562 = vpop.f32.mrf.mxu0
    %2563 = vdwg.mxu0
    %v2564 = vsel %vm395, %v2538, -inf
    %2565 = vmax.xlane.f32.xlu0 %v2564
    %v2566 = vpop.xlane.xlu0 %2565
    %v2567 = vsel %vm395, %v2561, -inf
    %2568 = vmax.xlane.f32.xlu0 %v2567
    %v2569 = vpop.xlane.xlu0 %2568
    %v2570 = vsub.f32 %v2538, %v2566
    %v2571 = vsub.f32 %v2561, %v2569
    %v2572 = vmul.f32 %v2570, 1.442695
    %v2573 = vpow.pop %v2572
    %v2574 = vmul.f32 %v2571, 1.442695
    %v2575 = vpow.pop %v2574
    %v2576 = vsel %vm395, %v2573, 0.0
    %2577 = vadd.xlane.f32.xlu0 %v2576
    %v2578 = vpop.xlane.xlu0 %2577
    %v2579 = vsel %vm395, %v2575, 0.0
    %2580 = vadd.xlane.f32.xlu0 %v2579
    %v2581 = vpop.xlane.xlu0 %2580
    %v2582 = vrcp.pop %v2578
    %v2583 = vrcp.pop %v2581
    %v2584 = vmul.f32 %v2573, %v2582
    %v2585 = vmul.f32 %v2575, %v2583
    %v2586 = vpack.c.bf16 %v2584, %v2584
    %v2587 = vpack.c.bf16 %v2585, %v2585
    %2588 = vrot.lane.b32.xlu0 %v1868, 32
    %v2589 = vpop.permute.xlu0 %2588
    %v2592 = vsel %vm395, %v2586, 0
    %2594 = vmatpush.bf16.msra.mxu0 0
    %2595 = vmatpush.bf16.msra.mxu0 0
    %2596 = vmatpush.bf16.msra.mxu0 0
    %2597 = vmatpush.bf16.msra.mxu0 0
    %2598 = vmatpush.bf16.msra.mxu0 0
    %2599 = vmatpush.bf16.msra.mxu0 0
    %2600 = vmatpush.bf16.msra.mxu0 0
    %2601 = vmatpush.bf16.msra.mxu0 %v2589
    %2602 = vmatmul.bf16.gmra.mxu0 %v2592
    %v2603 = vpop.f32.mrf.mxu0
    %v2604 = vadd.f32 0.0, %v2603
    %v2605 = vpop.f32.mrf.mxu0
    %2606 = vdwg.mxu0
    %2607 = vrot.lane.b32.xlu0 %v1890, 32
    %v2608 = vpop.permute.xlu0 %2607
    %v2611 = vsel %vm395, %v2587, 0
    %2613 = vmatpush.bf16.msra.mxu0 0
    %2614 = vmatpush.bf16.msra.mxu0 0
    %2615 = vmatpush.bf16.msra.mxu0 0
    %2616 = vmatpush.bf16.msra.mxu0 0
    %2617 = vmatpush.bf16.msra.mxu0 0
    %2618 = vmatpush.bf16.msra.mxu0 0
    %2619 = vmatpush.bf16.msra.mxu0 0
    %2620 = vmatpush.bf16.msra.mxu0 %v2608
    %2621 = vmatmul.bf16.gmra.mxu0 %v2611
    %v2622 = vpop.f32.mrf.mxu0
    %v2623 = vadd.f32 0.0, %v2622
    %v2624 = vpop.f32.mrf.mxu0
    %2625 = vdwg.mxu0
    %v2626 = vpack.c.bf16 %v2604, %v2604
    %v2627 = vpack.c.bf16 %v2623, %v2623
    %2630 = vrot.lane.b32.xlu0 %v2626, 96
    %v2631 = vpop.permute.xlu0 %2630
    %2632 = vrot.lane.b32.xlu0 %v2627, 96
    %v2633 = vpop.permute.xlu0 %2632
    %2636 = vst.msk [vmem:[#allocation2] sm:$0xf] %vm1268, %v2631
    %2637 = vst.msk [vmem:[#allocation2 + $0x4] sm:$0xf] %vm1268, %v2633
    %2638 = vrot.lane.b32.xlu0 %v1914, 16
    %v2639 = vpop.permute.xlu0 %2638
    %2640 = vrot.lane.b32.xlu0 %v1796, 16
    %v2641 = vpop.permute.xlu0 %2640
    %v2643 = vsel %vm395, %v2639, 0
    %v2646 = vsel %vm395, %v2641, 0
    %2648 = vmatpush.bf16.xpose.msra.mxu0 0
    %2649 = vmatpush.bf16.xpose.msra.mxu0 0
    %2650 = vmatpush.bf16.xpose.msra.mxu0 0
    %2651 = vmatpush.bf16.xpose.msra.mxu0 0
    %2652 = vmatpush.bf16.xpose.msra.mxu0 0
    %2653 = vmatpush.bf16.xpose.msra.mxu0 0
    %2654 = vmatpush.bf16.xpose.msra.mxu0 0
    %2655 = vmatpush.bf16.xpose.msra.mxu0 %v2646
    %2656 = vmatmul.bf16.gmra.mxu0 %v2643
    %v2657 = vpop.f32.mrf.mxu0
    %v2658 = vadd.f32 0.0, %v2657
    %v2659 = vpop.f32.mrf.mxu0
    %2660 = vdwg.mxu0
    %2661 = vrot.lane.b32.xlu0 %v1940, 16
    %v2662 = vpop.permute.xlu0 %2661
    %2663 = vrot.lane.b32.xlu0 %v1820, 16
    %v2664 = vpop.permute.xlu0 %2663
    %v2666 = vsel %vm395, %v2662, 0
    %v2669 = vsel %vm395, %v2664, 0
    %2671 = vmatpush.bf16.xpose.msra.mxu0 0
    %2672 = vmatpush.bf16.xpose.msra.mxu0 0
    %2673 = vmatpush.bf16.xpose.msra.mxu0 0
    %2674 = vmatpush.bf16.xpose.msra.mxu0 0
    %2675 = vmatpush.bf16.xpose.msra.mxu0 0
    %2676 = vmatpush.bf16.xpose.msra.mxu0 0
    %2677 = vmatpush.bf16.xpose.msra.mxu0 0
    %2678 = vmatpush.bf16.xpose.msra.mxu0 %v2669
    %2679 = vmatmul.bf16.gmra.mxu0 %v2666
    %v2680 = vpop.f32.mrf.mxu0
    %v2681 = vadd.f32 0.0, %v2680
    %v2682 = vpop.f32.mrf.mxu0
    %2683 = vdwg.mxu0
    %v2684 = vsel %vm395, %v2658, -inf
    %2685 = vmax.xlane.f32.xlu0 %v2684
    %v2686 = vpop.xlane.xlu0 %2685
    %v2687 = vsel %vm395, %v2681, -inf
    %2688 = vmax.xlane.f32.xlu0 %v2687
    %v2689 = vpop.xlane.xlu0 %2688
    %v2690 = vsub.f32 %v2658, %v2686
    %v2691 = vsub.f32 %v2681, %v2689
    %v2692 = vmul.f32 %v2690, 1.442695
    %v2693 = vpow.pop %v2692
    %v2694 = vmul.f32 %v2691, 1.442695
    %v2695 = vpow.pop %v2694
    %v2696 = vsel %vm395, %v2693, 0.0
    %2697 = vadd.xlane.f32.xlu0 %v2696
    %v2698 = vpop.xlane.xlu0 %2697
    %v2699 = vsel %vm395, %v2695, 0.0
    %2700 = vadd.xlane.f32.xlu0 %v2699
    %v2701 = vpop.xlane.xlu0 %2700
    %v2702 = vrcp.pop %v2698
    %v2703 = vrcp.pop %v2701
    %v2704 = vmul.f32 %v2693, %v2702
    %v2705 = vmul.f32 %v2695, %v2703
    %v2706 = vpack.c.bf16 %v2704, %v2704
    %v2707 = vpack.c.bf16 %v2705, %v2705
    %2708 = vrot.lane.b32.xlu0 %v1868, 16
    %v2709 = vpop.permute.xlu0 %2708
    %v2712 = vsel %vm395, %v2706, 0
    %2714 = vmatpush.bf16.msra.mxu0 0
    %2715 = vmatpush.bf16.msra.mxu0 0
    %2716 = vmatpush.bf16.msra.mxu0 0
    %2717 = vmatpush.bf16.msra.mxu0 0
    %2718 = vmatpush.bf16.msra.mxu0 0
    %2719 = vmatpush.bf16.msra.mxu0 0
    %2720 = vmatpush.bf16.msra.mxu0 0
    %2721 = vmatpush.bf16.msra.mxu0 %v2709
    %2722 = vmatmul.bf16.gmra.mxu0 %v2712
    %v2723 = vpop.f32.mrf.mxu0
    %v2724 = vadd.f32 0.0, %v2723
    %v2725 = vpop.f32.mrf.mxu0
    %2726 = vdwg.mxu0
    %2727 = vrot.lane.b32.xlu0 %v1890, 16
    %v2728 = vpop.permute.xlu0 %2727
    %v2731 = vsel %vm395, %v2707, 0
    %2733 = vmatpush.bf16.msra.mxu0 0
    %2734 = vmatpush.bf16.msra.mxu0 0
    %2735 = vmatpush.bf16.msra.mxu0 0
    %2736 = vmatpush.bf16.msra.mxu0 0
    %2737 = vmatpush.bf16.msra.mxu0 0
    %2738 = vmatpush.bf16.msra.mxu0 0
    %2739 = vmatpush.bf16.msra.mxu0 0
    %2740 = vmatpush.bf16.msra.mxu0 %v2728
    %2741 = vmatmul.bf16.gmra.mxu0 %v2731
    %v2742 = vpop.f32.mrf.mxu0
    %v2743 = vadd.f32 0.0, %v2742
    %v2744 = vpop.f32.mrf.mxu0
    %2745 = vdwg.mxu0
    %v2746 = vpack.c.bf16 %v2724, %v2724
    %v2747 = vpack.c.bf16 %v2743, %v2743
    %2750 = vrot.lane.b32.xlu0 %v2746, 112
    %v2751 = vpop.permute.xlu0 %2750
    %2752 = vrot.lane.b32.xlu0 %v2747, 112
    %v2753 = vpop.permute.xlu0 %2752
    %2756 = vst.msk [vmem:[#allocation2] sm:$0xf] %vm1393, %v2751
    %2757 = vst.msk [vmem:[#allocation2 + $0x4] sm:$0xf] %vm1393, %v2753
    %v2758 = vld [vmem:[#allocation2] sm:$0xf]
    %v2759 = vld [vmem:[#allocation2 + $0x4] sm:$0xf]
    %v2760 = vld [vmem:[#allocation15] sm:$0xf]
    %v2761 = vld [vmem:[#allocation15 + $0x4] sm:$0xf]
    %v2762 = vld [vmem:[#allocation15 + $0x8] sm:$0xf]
    %v2763 = vld [vmem:[#allocation15 + $0xc] sm:$0xf]
    %v2764 = vld [vmem:[#allocation15 + $0x10] sm:$0xf]
    %v2765 = vld [vmem:[#allocation15 + $0x14] sm:$0xf]
    %v2766 = vld [vmem:[#allocation15 + $0x18] sm:$0xf]
    %v2767 = vld [vmem:[#allocation15 + $0x1c] sm:$0xf]
    %v2768 = vld [vmem:[#allocation15 + $0x20] sm:$0xf]
    %v2769 = vld [vmem:[#allocation15 + $0x24] sm:$0xf]
    %v2770 = vld [vmem:[#allocation15 + $0x28] sm:$0xf]
    %v2771 = vld [vmem:[#allocation15 + $0x2c] sm:$0xf]
    %v2772 = vld [vmem:[#allocation15 + $0x30] sm:$0xf]
    %v2773 = vld [vmem:[#allocation15 + $0x34] sm:$0xf]
    %v2774 = vld [vmem:[#allocation15 + $0x38] sm:$0xf]
    %v2775 = vld [vmem:[#allocation15 + $0x3c] sm:$0xf]
    %v2776 = vld [vmem:[%s13] sm:$0x1]
    %v2778 = vperm.slane %v2776, 0
    %v2782 = vunpack.c.l.b16 %v2758
    %v2783 = vunpack.c.l.b16 %v2759
    %v2784 = vpack.c.b16 %v2783, %v2782
    %v2802 = vunpack.c.l.b16 %v2760
    %v2803 = vunpack.c.l.b16 %v2761
    %v2804 = vunpack.c.l.b16 %v2762
    %v2805 = vunpack.c.l.b16 %v2763
    %v2806 = vunpack.c.l.b16 %v2764
    %v2807 = vunpack.c.l.b16 %v2765
    %v2808 = vunpack.c.l.b16 %v2766
    %v2809 = vunpack.c.l.b16 %v2767
    %v2810 = vunpack.c.l.b16 %v2768
    %v2811 = vunpack.c.l.b16 %v2769
    %v2812 = vunpack.c.l.b16 %v2770
    %v2813 = vunpack.c.l.b16 %v2771
    %v2814 = vunpack.c.l.b16 %v2772
    %v2815 = vunpack.c.l.b16 %v2773
    %v2816 = vunpack.c.l.b16 %v2774
    %v2817 = vunpack.c.l.b16 %v2775
    %v2818 = vpack.c.b16 %v2803, %v2802
    %v2819 = vpack.c.b16 %v2805, %v2804
    %v2820 = vpack.c.b16 %v2807, %v2806
    %v2821 = vpack.c.b16 %v2809, %v2808
    %v2822 = vpack.c.b16 %v2811, %v2810
    %v2823 = vpack.c.b16 %v2813, %v2812
    %v2824 = vpack.c.b16 %v2815, %v2814
    %v2825 = vpack.c.b16 %v2817, %v2816
    %2834 = vmatpush.bf16.msra.mxu0 %v2825
    %2835 = vmatpush.bf16.msra.mxu0 %v2824
    %2836 = vmatpush.bf16.msra.mxu0 %v2823
    %2837 = vmatpush.bf16.msra.mxu0 %v2822
    %2838 = vmatpush.bf16.msra.mxu0 %v2821
    %2839 = vmatpush.bf16.msra.mxu0 %v2820
    %2840 = vmatpush.bf16.msra.mxu0 %v2819
    %2841 = vmatpush.bf16.msra.mxu0 %v2818
    %2842 = vmatmul.bf16.gmra.mxu0 %v2784
    %v2843 = vpop.f32.mrf.mxu0
    %v2844 = vadd.f32 %v2778, %v2843
    %v2845 = vpop.f32.mrf.mxu0
    %v2846 = vadd.f32 %v2778, %v2845
    %2847 = vdwg.mxu0
    %2848 = vst [vmem:[#allocation17] sm:$0xff] %v2844
    %2849 = vst [vmem:[#allocation17 + $0x8] sm:$0xff] %v2846
    // Predicated region
    $region90: #{tpu_custom_call.1} parent=1 // pred_check
      _
    $region91: #{tpu_custom_call.1} parent=1 // pred_check_branch
      %2851 = sbr.rel (0) target = $region93
    $region92: #{tpu_custom_call.1} parent=1 // pred_region
      %2853 = vsyncadd [#allocation5], 0
      %s2854 = sshll.u32 [#allocation17], 4
      %s2855 = int_to_ptr.vmem [resolvable:$true] %s2854
      %s2856 = sshll.u32 %s14, 4
      %s2857 = int_to_ptr.hbm [resolvable:$true] %s2856
      %2862 = dma.vmem_to_hbm [thread:$0]  %s2855, 256, %s2857, [#allocation5], 128, 128, 8
    $region93: #{tpu_custom_call.1} parent=1 // pred_fallthru
      _
    // Predicated region
    $region94: #{tpu_custom_call.1} parent=1 // pred_check
      _
    $region95: #{tpu_custom_call.1} parent=1 // pred_check_branch
      %2864 = sbr.rel (0) target = $region97
    $region96: #{tpu_custom_call.1} parent=1 // pred_region
      %2866 = dma.done [#allocation5], 256
    $region97: #{tpu_custom_call.1} parent=1 // pred_fallthru
      _
    %2867 = vsyncpa [#allocation4], 1
    %2868 = vsyncpa [#allocation7], 1
    %2869 = vsyncpa [#allocation10], 1
    %2870 = vsyncpa [#allocation13], 1
    %2871 = vsyncpa [#allocation16], 1
    %2872 = vsyncpa [#allocation5], 1

</llo_original>
